<compile_context>
chip_gen: v5e
topology: v5e:2x2
jax: 0.10.0
libtpu: 0.0.40
codegen_flags: <defaults>
</compile_context>

<pallas_src>
import jax
import jax.numpy as jnp
from jax import lax
from jax.experimental import pallas as pl
from jax.experimental.pallas import tpu as pltpu


def _packed_kernel(cause_ref, a_ref, b_ref, noise_ref, out_ref):
    """All refs are lane-major: problem index on the last (lane) axis.

    cause_ref: (N, indim, TB)     a_ref:     (N, outdim, TB)
    b_ref:     (indim, outdim, TB) noise_ref/out_ref: (N, outdim, TB)

    Per lane t:
      m      = cause[:,:,t].T @ a[:,:,t] + b[:,:,t]
      effect = cause[:,:,t] @ m + noise[:,:,t]
      out    = (effect - mean) / std(ddof=1)   with stats over that problem only
    """
    n, indim, _ = cause_ref.shape
    outdim = a_ref.shape[1]

    cause = cause_ref[...]
    a = a_ref[...]

    # First contraction (over n), re-associated form m = cause^T @ a + b.
    # Rank-1 updates broadcast over the lane (problem) axis; no transpose
    # is materialized.
    m = b_ref[...]                                       # (indim, outdim, TB)
    for nn in range(n):
        m = m + cause[nn, :, None, :] * a[nn, None, :, :]

    # Second contraction (over indim): effect = cause @ m + noise.
    effect = noise_ref[...]                              # (n, outdim, TB)
    for ii in range(indim):
        effect = effect + cause[:, ii : ii + 1, :] * m[ii, None, :, :]

    # Per-problem standardization. Two-pass mean/variance (unbiased, matching
    # torch.std correction=1); reductions keep the lane axis, so statistics
    # never mix problems.
    n_elems = n * outdim
    s = jnp.sum(jnp.sum(effect, axis=0, keepdims=True), axis=1, keepdims=True)
    mean = s * jnp.float32(1.0 / n_elems)
    centered = effect - mean
    ss = jnp.sum(
        jnp.sum(centered * centered, axis=0, keepdims=True), axis=1, keepdims=True
    )
    inv_std = lax.rsqrt(ss * jnp.float32(1.0 / (n_elems - 1)))
    out_ref[...] = centered * inv_std


def _choose_block(bsz, max_block):
    """Problems per grid step: lane-dense (multiple of 128) and at least two
    grid steps when the batch allows it (keeps both v7x TensorCores busy)."""
    if bsz < 256:
        return bsz                        # single full-extent block
    tb = min(max_block, bsz // 2)         # >= 2 grid steps
    return max(128, (tb // 128) * 128)


def quadratic_fun_batched(cause, a, b, noise, *, max_block_problems=512):
    """Batch of independent QuadraticFun forwards.

    cause: (B, N, indim), a: (B, N, outdim), b: (B, indim, outdim),
    noise: (B, N, outdim) -> (B, N, outdim); each problem standardized on its own.
    """
    bsz, n, indim = cause.shape
    outdim = a.shape[-1]
    assert a.shape == (bsz, n, outdim)
    assert b.shape == (bsz, indim, outdim)
    assert noise.shape == (bsz, n, outdim)

    tb = _choose_block(bsz, max_block_problems)
    num_chunks = pl.cdiv(bsz, tb)
    bp = num_chunks * tb
    if bp != bsz:
        pad = ((0, bp - bsz), (0, 0), (0, 0))
        cause = jnp.pad(cause, pad, mode="edge")
        a = jnp.pad(a, pad, mode="edge")
        b = jnp.pad(b, pad, mode="edge")
        noise = jnp.pad(noise, pad, mode="edge")

    # Lane-major layout: problem index last -> full 128-lane density for every
    # operand and an unmasked lane-dense output store.  Wrapper-side layout
    # plumbing only; reversed (for free, contiguity-wise) after the call.
    cause_lm = jnp.transpose(cause.astype(jnp.float32), (1, 2, 0))
    a_lm = jnp.transpose(a.astype(jnp.float32), (1, 2, 0))
    b_lm = jnp.transpose(b.astype(jnp.float32), (1, 2, 0))
    noise_lm = jnp.transpose(noise.astype(jnp.float32), (1, 2, 0))

    flops_per_problem = 4 * n * indim * outdim + 8 * n * outdim
    bytes_per_problem = 4 * (n * indim + 3 * n * outdim + indim * outdim)
    cost = pl.CostEstimate(
        flops=bp * flops_per_problem,
        transcendentals=bp,
        bytes_accessed=bp * bytes_per_problem,
    )

    out_lm = pl.pallas_call(
        _packed_kernel,
        out_shape=jax.ShapeDtypeStruct((n, outdim, bp), jnp.float32),
        grid=(num_chunks,),
        in_specs=[
            pl.BlockSpec((n, indim, tb), lambda i: (0, 0, i)),
            pl.BlockSpec((n, outdim, tb), lambda i: (0, 0, i)),
            pl.BlockSpec((indim, outdim, tb), lambda i: (0, 0, i)),
            pl.BlockSpec((n, outdim, tb), lambda i: (0, 0, i)),
        ],
        out_specs=pl.BlockSpec((n, outdim, tb), lambda i: (0, 0, i)),
        compiler_params=pltpu.CompilerParams(
            dimension_semantics=("parallel",),
            vmem_limit_bytes=40 * 1024 * 1024,
        ),
        cost_estimate=cost,
    )(cause_lm, a_lm, b_lm, noise_lm)

    out = jnp.transpose(out_lm, (2, 0, 1))
    return out[:bsz] if bp != bsz else out


def quadratic_fun(cause, a, b, noise):
    """Single QuadraticFun forward, routed through the packed batched kernel."""
    return quadratic_fun_batched(cause[None], a[None], b[None], noise[None])[0]


def draw_quadratic_params(key, n, indim, outdim):
    """jax.random equivalent of the module's per-call torch.rand / normal_noise
    (randomness hoisted out of the kernel)."""
    ka, kb, ks, kn, ksign = jax.random.split(key, 5)
    a = jax.random.uniform(ka, (n, outdim), dtype=jnp.float32)
    b = jax.random.uniform(kb, (indim, outdim), dtype=jnp.float32)
    sign = jnp.where(jax.random.bernoulli(ksign), 1.0, -1.0).astype(jnp.float32)
    noise = (
        jax.random.uniform(ks, (1,), dtype=jnp.float32)
        * jax.random.normal(kn, (n, outdim), dtype=jnp.float32)
        + sign
    )
    return a, b, noise


if __name__ == "__main__":
    N, INDIM, OUTDIM = 8, 16, 32

    def ref_one(c, a_, b_, nz):
        eff = c @ c.T @ a_ + c @ b_ + nz
        return (eff - eff.mean()) / jnp.std(eff, ddof=1)

    # ---- single forward (exact module semantics, B=1 through the batched path) ----
    key = jax.random.PRNGKey(0)
    k_cause, k_params = jax.random.split(key)
    cause = jax.random.normal(k_cause, (N, INDIM), dtype=jnp.float32)
    a, b, noise = draw_quadratic_params(k_params, N, INDIM, OUTDIM)

    out = quadratic_fun(cause, a, b, noise)
    jax.block_until_ready(out)
    ref = ref_one(cause, a, b, noise)
    assert jnp.allclose(out, ref, atol=1e-3, rtol=1e-3), "single-problem mismatch"

    # ---- small batch (single grid step, full-extent lane block) ----
    BATCH_SMALL = 8
    kb = jax.random.split(jax.random.PRNGKey(1), 5)
    cause_b = jax.random.normal(kb[0], (BATCH_SMALL, N, INDIM), dtype=jnp.float32)
    a_b = jax.random.uniform(kb[1], (BATCH_SMALL, N, OUTDIM), dtype=jnp.float32)
    b_b = jax.random.uniform(kb[2], (BATCH_SMALL, INDIM, OUTDIM), dtype=jnp.float32)
    noise_b = (
        jax.random.uniform(kb[3], (BATCH_SMALL, 1, 1), dtype=jnp.float32)
        * jax.random.normal(kb[4], (BATCH_SMALL, N, OUTDIM), dtype=jnp.float32)
        + 1.0
    )
    out_b = quadratic_fun_batched(cause_b, a_b, b_b, noise_b)
    jax.block_until_ready(out_b)
    ref_b = jax.vmap(ref_one)(cause_b, a_b, b_b, noise_b)
    assert jnp.allclose(out_b, ref_b, atol=1e-3, rtol=1e-3), "small-batch mismatch"

    # ---- packed batch: multi-step grid, 128-problem lane-dense blocks, edge pad ----
    BATCH_BIG = 400
    kc = jax.random.split(jax.random.PRNGKey(2), 5)
    cause_c = jax.random.normal(kc[0], (BATCH_BIG, N, INDIM), dtype=jnp.float32)
    a_c = jax.random.uniform(kc[1], (BATCH_BIG, N, OUTDIM), dtype=jnp.float32)
    b_c = jax.random.uniform(kc[2], (BATCH_BIG, INDIM, OUTDIM), dtype=jnp.float32)
    noise_c = (
        jax.random.uniform(kc[3], (BATCH_BIG, 1, 1), dtype=jnp.float32)
        * jax.random.normal(kc[4], (BATCH_BIG, N, OUTDIM), dtype=jnp.float32)
        - 1.0
    )
    out_c = quadratic_fun_batched(cause_c, a_c, b_c, noise_c)
    jax.block_until_ready(out_c)
    ref_c = jax.vmap(ref_one)(cause_c, a_c, b_c, noise_c)
    assert jnp.allclose(out_c, ref_c, atol=1e-3, rtol=1e-3), "packed-batch mismatch"

    print("KERNEL_OK")
</pallas_src>

<mosaic_0001>
module attributes {stable_mosaic.version = 11 : i64} {
  func.func @_packed_kernel(%arg0: i32, %arg1: memref<8x16x1xf32, #tpu.memory_space<vmem>>, %arg2: memref<8x32x1xf32, #tpu.memory_space<vmem>>, %arg3: memref<16x32x1xf32, #tpu.memory_space<vmem>>, %arg4: memref<8x32x1xf32, #tpu.memory_space<vmem>>, %arg5: memref<8x32x1xf32, #tpu.memory_space<vmem>>) attributes {dimension_semantics = [#tpu.dimension_semantics<parallel>], iteration_bounds = array<i64: 1>, scalar_prefetch = 0 : i64, scratch_operands = 0 : i64, tpu.core_type = #tpu.core_type<tc>, window_params = [{transform_indices = @transform_0, window_bounds = array<i64: 8, 16, 1>}, {transform_indices = @transform_1, window_bounds = array<i64: 8, 32, 1>}, {transform_indices = @transform_2, window_bounds = array<i64: 16, 32, 1>}, {transform_indices = @transform_3, window_bounds = array<i64: 8, 32, 1>}, {transform_indices = @transform_4, window_bounds = array<i64: 8, 32, 1>}]} {
    %c0 = arith.constant 0 : index
    %c0_0 = arith.constant 0 : index
    %c0_1 = arith.constant 0 : index
    %0 = vector.load %arg1[%c0, %c0_0, %c0_1] : memref<8x16x1xf32, #tpu.memory_space<vmem>>, vector<8x16x1xf32>
    %c0_2 = arith.constant 0 : index
    %c0_3 = arith.constant 0 : index
    %c0_4 = arith.constant 0 : index
    %1 = vector.load %arg2[%c0_2, %c0_3, %c0_4] : memref<8x32x1xf32, #tpu.memory_space<vmem>>, vector<8x32x1xf32>
    %c0_5 = arith.constant 0 : index
    %c0_6 = arith.constant 0 : index
    %c0_7 = arith.constant 0 : index
    %2 = vector.load %arg3[%c0_5, %c0_6, %c0_7] : memref<16x32x1xf32, #tpu.memory_space<vmem>>, vector<16x32x1xf32>
    %3 = vector.extract_strided_slice %0 {offsets = [0, 0, 0], sizes = [1, 16, 1], strides = [1, 1, 1]} : vector<8x16x1xf32> to vector<1x16x1xf32>
    %4 = vector.shape_cast %3 : vector<1x16x1xf32> to vector<16x1xf32>
    %5 = vector.shape_cast %4 : vector<16x1xf32> to vector<16x1x1xf32>
    %6 = vector.extract_strided_slice %1 {offsets = [0, 0, 0], sizes = [1, 32, 1], strides = [1, 1, 1]} : vector<8x32x1xf32> to vector<1x32x1xf32>
    %7 = vector.shape_cast %6 : vector<1x32x1xf32> to vector<32x1xf32>
    %8 = vector.shape_cast %7 : vector<32x1xf32> to vector<1x32x1xf32>
    %9 = vector.broadcast %5 : vector<16x1x1xf32> to vector<16x32x1xf32>
    %10 = vector.broadcast %8 : vector<1x32x1xf32> to vector<16x32x1xf32>
    %11 = arith.mulf %9, %10 : vector<16x32x1xf32>
    %12 = arith.addf %2, %11 : vector<16x32x1xf32>
    %13 = vector.extract_strided_slice %0 {offsets = [1, 0, 0], sizes = [1, 16, 1], strides = [1, 1, 1]} : vector<8x16x1xf32> to vector<1x16x1xf32>
    %14 = vector.shape_cast %13 : vector<1x16x1xf32> to vector<16x1xf32>
    %15 = vector.shape_cast %14 : vector<16x1xf32> to vector<16x1x1xf32>
    %16 = vector.extract_strided_slice %1 {offsets = [1, 0, 0], sizes = [1, 32, 1], strides = [1, 1, 1]} : vector<8x32x1xf32> to vector<1x32x1xf32>
    %17 = vector.shape_cast %16 : vector<1x32x1xf32> to vector<32x1xf32>
    %18 = vector.shape_cast %17 : vector<32x1xf32> to vector<1x32x1xf32>
    %19 = vector.broadcast %15 : vector<16x1x1xf32> to vector<16x32x1xf32>
    %20 = vector.broadcast %18 : vector<1x32x1xf32> to vector<16x32x1xf32>
    %21 = arith.mulf %19, %20 : vector<16x32x1xf32>
    %22 = arith.addf %12, %21 : vector<16x32x1xf32>
    %23 = vector.extract_strided_slice %0 {offsets = [2, 0, 0], sizes = [1, 16, 1], strides = [1, 1, 1]} : vector<8x16x1xf32> to vector<1x16x1xf32>
    %24 = vector.shape_cast %23 : vector<1x16x1xf32> to vector<16x1xf32>
    %25 = vector.shape_cast %24 : vector<16x1xf32> to vector<16x1x1xf32>
    %26 = vector.extract_strided_slice %1 {offsets = [2, 0, 0], sizes = [1, 32, 1], strides = [1, 1, 1]} : vector<8x32x1xf32> to vector<1x32x1xf32>
    %27 = vector.shape_cast %26 : vector<1x32x1xf32> to vector<32x1xf32>
    %28 = vector.shape_cast %27 : vector<32x1xf32> to vector<1x32x1xf32>
    %29 = vector.broadcast %25 : vector<16x1x1xf32> to vector<16x32x1xf32>
    %30 = vector.broadcast %28 : vector<1x32x1xf32> to vector<16x32x1xf32>
    %31 = arith.mulf %29, %30 : vector<16x32x1xf32>
    %32 = arith.addf %22, %31 : vector<16x32x1xf32>
    %33 = vector.extract_strided_slice %0 {offsets = [3, 0, 0], sizes = [1, 16, 1], strides = [1, 1, 1]} : vector<8x16x1xf32> to vector<1x16x1xf32>
    %34 = vector.shape_cast %33 : vector<1x16x1xf32> to vector<16x1xf32>
    %35 = vector.shape_cast %34 : vector<16x1xf32> to vector<16x1x1xf32>
    %36 = vector.extract_strided_slice %1 {offsets = [3, 0, 0], sizes = [1, 32, 1], strides = [1, 1, 1]} : vector<8x32x1xf32> to vector<1x32x1xf32>
    %37 = vector.shape_cast %36 : vector<1x32x1xf32> to vector<32x1xf32>
    %38 = vector.shape_cast %37 : vector<32x1xf32> to vector<1x32x1xf32>
    %39 = vector.broadcast %35 : vector<16x1x1xf32> to vector<16x32x1xf32>
    %40 = vector.broadcast %38 : vector<1x32x1xf32> to vector<16x32x1xf32>
    %41 = arith.mulf %39, %40 : vector<16x32x1xf32>
    %42 = arith.addf %32, %41 : vector<16x32x1xf32>
    %43 = vector.extract_strided_slice %0 {offsets = [4, 0, 0], sizes = [1, 16, 1], strides = [1, 1, 1]} : vector<8x16x1xf32> to vector<1x16x1xf32>
    %44 = vector.shape_cast %43 : vector<1x16x1xf32> to vector<16x1xf32>
    %45 = vector.shape_cast %44 : vector<16x1xf32> to vector<16x1x1xf32>
    %46 = vector.extract_strided_slice %1 {offsets = [4, 0, 0], sizes = [1, 32, 1], strides = [1, 1, 1]} : vector<8x32x1xf32> to vector<1x32x1xf32>
    %47 = vector.shape_cast %46 : vector<1x32x1xf32> to vector<32x1xf32>
    %48 = vector.shape_cast %47 : vector<32x1xf32> to vector<1x32x1xf32>
    %49 = vector.broadcast %45 : vector<16x1x1xf32> to vector<16x32x1xf32>
    %50 = vector.broadcast %48 : vector<1x32x1xf32> to vector<16x32x1xf32>
    %51 = arith.mulf %49, %50 : vector<16x32x1xf32>
    %52 = arith.addf %42, %51 : vector<16x32x1xf32>
    %53 = vector.extract_strided_slice %0 {offsets = [5, 0, 0], sizes = [1, 16, 1], strides = [1, 1, 1]} : vector<8x16x1xf32> to vector<1x16x1xf32>
    %54 = vector.shape_cast %53 : vector<1x16x1xf32> to vector<16x1xf32>
    %55 = vector.shape_cast %54 : vector<16x1xf32> to vector<16x1x1xf32>
    %56 = vector.extract_strided_slice %1 {offsets = [5, 0, 0], sizes = [1, 32, 1], strides = [1, 1, 1]} : vector<8x32x1xf32> to vector<1x32x1xf32>
    %57 = vector.shape_cast %56 : vector<1x32x1xf32> to vector<32x1xf32>
    %58 = vector.shape_cast %57 : vector<32x1xf32> to vector<1x32x1xf32>
    %59 = vector.broadcast %55 : vector<16x1x1xf32> to vector<16x32x1xf32>
    %60 = vector.broadcast %58 : vector<1x32x1xf32> to vector<16x32x1xf32>
    %61 = arith.mulf %59, %60 : vector<16x32x1xf32>
    %62 = arith.addf %52, %61 : vector<16x32x1xf32>
    %63 = vector.extract_strided_slice %0 {offsets = [6, 0, 0], sizes = [1, 16, 1], strides = [1, 1, 1]} : vector<8x16x1xf32> to vector<1x16x1xf32>
    %64 = vector.shape_cast %63 : vector<1x16x1xf32> to vector<16x1xf32>
    %65 = vector.shape_cast %64 : vector<16x1xf32> to vector<16x1x1xf32>
    %66 = vector.extract_strided_slice %1 {offsets = [6, 0, 0], sizes = [1, 32, 1], strides = [1, 1, 1]} : vector<8x32x1xf32> to vector<1x32x1xf32>
    %67 = vector.shape_cast %66 : vector<1x32x1xf32> to vector<32x1xf32>
    %68 = vector.shape_cast %67 : vector<32x1xf32> to vector<1x32x1xf32>
    %69 = vector.broadcast %65 : vector<16x1x1xf32> to vector<16x32x1xf32>
    %70 = vector.broadcast %68 : vector<1x32x1xf32> to vector<16x32x1xf32>
    %71 = arith.mulf %69, %70 : vector<16x32x1xf32>
    %72 = arith.addf %62, %71 : vector<16x32x1xf32>
    %73 = vector.extract_strided_slice %0 {offsets = [7, 0, 0], sizes = [1, 16, 1], strides = [1, 1, 1]} : vector<8x16x1xf32> to vector<1x16x1xf32>
    %74 = vector.shape_cast %73 : vector<1x16x1xf32> to vector<16x1xf32>
    %75 = vector.shape_cast %74 : vector<16x1xf32> to vector<16x1x1xf32>
    %76 = vector.extract_strided_slice %1 {offsets = [7, 0, 0], sizes = [1, 32, 1], strides = [1, 1, 1]} : vector<8x32x1xf32> to vector<1x32x1xf32>
    %77 = vector.shape_cast %76 : vector<1x32x1xf32> to vector<32x1xf32>
    %78 = vector.shape_cast %77 : vector<32x1xf32> to vector<1x32x1xf32>
    %79 = vector.broadcast %75 : vector<16x1x1xf32> to vector<16x32x1xf32>
    %80 = vector.broadcast %78 : vector<1x32x1xf32> to vector<16x32x1xf32>
    %81 = arith.mulf %79, %80 : vector<16x32x1xf32>
    %82 = arith.addf %72, %81 : vector<16x32x1xf32>
    %c0_8 = arith.constant 0 : index
    %c0_9 = arith.constant 0 : index
    %c0_10 = arith.constant 0 : index
    %83 = vector.load %arg4[%c0_8, %c0_9, %c0_10] : memref<8x32x1xf32, #tpu.memory_space<vmem>>, vector<8x32x1xf32>
    %84 = vector.extract_strided_slice %0 {offsets = [0, 0, 0], sizes = [8, 1, 1], strides = [1, 1, 1]} : vector<8x16x1xf32> to vector<8x1x1xf32>
    %85 = vector.extract_strided_slice %82 {offsets = [0, 0, 0], sizes = [1, 32, 1], strides = [1, 1, 1]} : vector<16x32x1xf32> to vector<1x32x1xf32>
    %86 = vector.shape_cast %85 : vector<1x32x1xf32> to vector<32x1xf32>
    %87 = vector.shape_cast %86 : vector<32x1xf32> to vector<1x32x1xf32>
    %88 = vector.broadcast %84 : vector<8x1x1xf32> to vector<8x32x1xf32>
    %89 = vector.broadcast %87 : vector<1x32x1xf32> to vector<8x32x1xf32>
    %90 = arith.mulf %88, %89 : vector<8x32x1xf32>
    %91 = arith.addf %83, %90 : vector<8x32x1xf32>
    %92 = vector.extract_strided_slice %0 {offsets = [0, 1, 0], sizes = [8, 1, 1], strides = [1, 1, 1]} : vector<8x16x1xf32> to vector<8x1x1xf32>
    %93 = vector.extract_strided_slice %82 {offsets = [1, 0, 0], sizes = [1, 32, 1], strides = [1, 1, 1]} : vector<16x32x1xf32> to vector<1x32x1xf32>
    %94 = vector.shape_cast %93 : vector<1x32x1xf32> to vector<32x1xf32>
    %95 = vector.shape_cast %94 : vector<32x1xf32> to vector<1x32x1xf32>
    %96 = vector.broadcast %92 : vector<8x1x1xf32> to vector<8x32x1xf32>
    %97 = vector.broadcast %95 : vector<1x32x1xf32> to vector<8x32x1xf32>
    %98 = arith.mulf %96, %97 : vector<8x32x1xf32>
    %99 = arith.addf %91, %98 : vector<8x32x1xf32>
    %100 = vector.extract_strided_slice %0 {offsets = [0, 2, 0], sizes = [8, 1, 1], strides = [1, 1, 1]} : vector<8x16x1xf32> to vector<8x1x1xf32>
    %101 = vector.extract_strided_slice %82 {offsets = [2, 0, 0], sizes = [1, 32, 1], strides = [1, 1, 1]} : vector<16x32x1xf32> to vector<1x32x1xf32>
    %102 = vector.shape_cast %101 : vector<1x32x1xf32> to vector<32x1xf32>
    %103 = vector.shape_cast %102 : vector<32x1xf32> to vector<1x32x1xf32>
    %104 = vector.broadcast %100 : vector<8x1x1xf32> to vector<8x32x1xf32>
    %105 = vector.broadcast %103 : vector<1x32x1xf32> to vector<8x32x1xf32>
    %106 = arith.mulf %104, %105 : vector<8x32x1xf32>
    %107 = arith.addf %99, %106 : vector<8x32x1xf32>
    %108 = vector.extract_strided_slice %0 {offsets = [0, 3, 0], sizes = [8, 1, 1], strides = [1, 1, 1]} : vector<8x16x1xf32> to vector<8x1x1xf32>
    %109 = vector.extract_strided_slice %82 {offsets = [3, 0, 0], sizes = [1, 32, 1], strides = [1, 1, 1]} : vector<16x32x1xf32> to vector<1x32x1xf32>
    %110 = vector.shape_cast %109 : vector<1x32x1xf32> to vector<32x1xf32>
    %111 = vector.shape_cast %110 : vector<32x1xf32> to vector<1x32x1xf32>
    %112 = vector.broadcast %108 : vector<8x1x1xf32> to vector<8x32x1xf32>
    %113 = vector.broadcast %111 : vector<1x32x1xf32> to vector<8x32x1xf32>
    %114 = arith.mulf %112, %113 : vector<8x32x1xf32>
    %115 = arith.addf %107, %114 : vector<8x32x1xf32>
    %116 = vector.extract_strided_slice %0 {offsets = [0, 4, 0], sizes = [8, 1, 1], strides = [1, 1, 1]} : vector<8x16x1xf32> to vector<8x1x1xf32>
    %117 = vector.extract_strided_slice %82 {offsets = [4, 0, 0], sizes = [1, 32, 1], strides = [1, 1, 1]} : vector<16x32x1xf32> to vector<1x32x1xf32>
    %118 = vector.shape_cast %117 : vector<1x32x1xf32> to vector<32x1xf32>
    %119 = vector.shape_cast %118 : vector<32x1xf32> to vector<1x32x1xf32>
    %120 = vector.broadcast %116 : vector<8x1x1xf32> to vector<8x32x1xf32>
    %121 = vector.broadcast %119 : vector<1x32x1xf32> to vector<8x32x1xf32>
    %122 = arith.mulf %120, %121 : vector<8x32x1xf32>
    %123 = arith.addf %115, %122 : vector<8x32x1xf32>
    %124 = vector.extract_strided_slice %0 {offsets = [0, 5, 0], sizes = [8, 1, 1], strides = [1, 1, 1]} : vector<8x16x1xf32> to vector<8x1x1xf32>
    %125 = vector.extract_strided_slice %82 {offsets = [5, 0, 0], sizes = [1, 32, 1], strides = [1, 1, 1]} : vector<16x32x1xf32> to vector<1x32x1xf32>
    %126 = vector.shape_cast %125 : vector<1x32x1xf32> to vector<32x1xf32>
    %127 = vector.shape_cast %126 : vector<32x1xf32> to vector<1x32x1xf32>
    %128 = vector.broadcast %124 : vector<8x1x1xf32> to vector<8x32x1xf32>
    %129 = vector.broadcast %127 : vector<1x32x1xf32> to vector<8x32x1xf32>
    %130 = arith.mulf %128, %129 : vector<8x32x1xf32>
    %131 = arith.addf %123, %130 : vector<8x32x1xf32>
    %132 = vector.extract_strided_slice %0 {offsets = [0, 6, 0], sizes = [8, 1, 1], strides = [1, 1, 1]} : vector<8x16x1xf32> to vector<8x1x1xf32>
    %133 = vector.extract_strided_slice %82 {offsets = [6, 0, 0], sizes = [1, 32, 1], strides = [1, 1, 1]} : vector<16x32x1xf32> to vector<1x32x1xf32>
    %134 = vector.shape_cast %133 : vector<1x32x1xf32> to vector<32x1xf32>
    %135 = vector.shape_cast %134 : vector<32x1xf32> to vector<1x32x1xf32>
    %136 = vector.broadcast %132 : vector<8x1x1xf32> to vector<8x32x1xf32>
    %137 = vector.broadcast %135 : vector<1x32x1xf32> to vector<8x32x1xf32>
    %138 = arith.mulf %136, %137 : vector<8x32x1xf32>
    %139 = arith.addf %131, %138 : vector<8x32x1xf32>
    %140 = vector.extract_strided_slice %0 {offsets = [0, 7, 0], sizes = [8, 1, 1], strides = [1, 1, 1]} : vector<8x16x1xf32> to vector<8x1x1xf32>
    %141 = vector.extract_strided_slice %82 {offsets = [7, 0, 0], sizes = [1, 32, 1], strides = [1, 1, 1]} : vector<16x32x1xf32> to vector<1x32x1xf32>
    %142 = vector.shape_cast %141 : vector<1x32x1xf32> to vector<32x1xf32>
    %143 = vector.shape_cast %142 : vector<32x1xf32> to vector<1x32x1xf32>
    %144 = vector.broadcast %140 : vector<8x1x1xf32> to vector<8x32x1xf32>
    %145 = vector.broadcast %143 : vector<1x32x1xf32> to vector<8x32x1xf32>
    %146 = arith.mulf %144, %145 : vector<8x32x1xf32>
    %147 = arith.addf %139, %146 : vector<8x32x1xf32>
    %148 = vector.extract_strided_slice %0 {offsets = [0, 8, 0], sizes = [8, 1, 1], strides = [1, 1, 1]} : vector<8x16x1xf32> to vector<8x1x1xf32>
    %149 = vector.extract_strided_slice %82 {offsets = [8, 0, 0], sizes = [1, 32, 1], strides = [1, 1, 1]} : vector<16x32x1xf32> to vector<1x32x1xf32>
    %150 = vector.shape_cast %149 : vector<1x32x1xf32> to vector<32x1xf32>
    %151 = vector.shape_cast %150 : vector<32x1xf32> to vector<1x32x1xf32>
    %152 = vector.broadcast %148 : vector<8x1x1xf32> to vector<8x32x1xf32>
    %153 = vector.broadcast %151 : vector<1x32x1xf32> to vector<8x32x1xf32>
    %154 = arith.mulf %152, %153 : vector<8x32x1xf32>
    %155 = arith.addf %147, %154 : vector<8x32x1xf32>
    %156 = vector.extract_strided_slice %0 {offsets = [0, 9, 0], sizes = [8, 1, 1], strides = [1, 1, 1]} : vector<8x16x1xf32> to vector<8x1x1xf32>
    %157 = vector.extract_strided_slice %82 {offsets = [9, 0, 0], sizes = [1, 32, 1], strides = [1, 1, 1]} : vector<16x32x1xf32> to vector<1x32x1xf32>
    %158 = vector.shape_cast %157 : vector<1x32x1xf32> to vector<32x1xf32>
    %159 = vector.shape_cast %158 : vector<32x1xf32> to vector<1x32x1xf32>
    %160 = vector.broadcast %156 : vector<8x1x1xf32> to vector<8x32x1xf32>
    %161 = vector.broadcast %159 : vector<1x32x1xf32> to vector<8x32x1xf32>
    %162 = arith.mulf %160, %161 : vector<8x32x1xf32>
    %163 = arith.addf %155, %162 : vector<8x32x1xf32>
    %164 = vector.extract_strided_slice %0 {offsets = [0, 10, 0], sizes = [8, 1, 1], strides = [1, 1, 1]} : vector<8x16x1xf32> to vector<8x1x1xf32>
    %165 = vector.extract_strided_slice %82 {offsets = [10, 0, 0], sizes = [1, 32, 1], strides = [1, 1, 1]} : vector<16x32x1xf32> to vector<1x32x1xf32>
    %166 = vector.shape_cast %165 : vector<1x32x1xf32> to vector<32x1xf32>
    %167 = vector.shape_cast %166 : vector<32x1xf32> to vector<1x32x1xf32>
    %168 = vector.broadcast %164 : vector<8x1x1xf32> to vector<8x32x1xf32>
    %169 = vector.broadcast %167 : vector<1x32x1xf32> to vector<8x32x1xf32>
    %170 = arith.mulf %168, %169 : vector<8x32x1xf32>
    %171 = arith.addf %163, %170 : vector<8x32x1xf32>
    %172 = vector.extract_strided_slice %0 {offsets = [0, 11, 0], sizes = [8, 1, 1], strides = [1, 1, 1]} : vector<8x16x1xf32> to vector<8x1x1xf32>
    %173 = vector.extract_strided_slice %82 {offsets = [11, 0, 0], sizes = [1, 32, 1], strides = [1, 1, 1]} : vector<16x32x1xf32> to vector<1x32x1xf32>
    %174 = vector.shape_cast %173 : vector<1x32x1xf32> to vector<32x1xf32>
    %175 = vector.shape_cast %174 : vector<32x1xf32> to vector<1x32x1xf32>
    %176 = vector.broadcast %172 : vector<8x1x1xf32> to vector<8x32x1xf32>
    %177 = vector.broadcast %175 : vector<1x32x1xf32> to vector<8x32x1xf32>
    %178 = arith.mulf %176, %177 : vector<8x32x1xf32>
    %179 = arith.addf %171, %178 : vector<8x32x1xf32>
    %180 = vector.extract_strided_slice %0 {offsets = [0, 12, 0], sizes = [8, 1, 1], strides = [1, 1, 1]} : vector<8x16x1xf32> to vector<8x1x1xf32>
    %181 = vector.extract_strided_slice %82 {offsets = [12, 0, 0], sizes = [1, 32, 1], strides = [1, 1, 1]} : vector<16x32x1xf32> to vector<1x32x1xf32>
    %182 = vector.shape_cast %181 : vector<1x32x1xf32> to vector<32x1xf32>
    %183 = vector.shape_cast %182 : vector<32x1xf32> to vector<1x32x1xf32>
    %184 = vector.broadcast %180 : vector<8x1x1xf32> to vector<8x32x1xf32>
    %185 = vector.broadcast %183 : vector<1x32x1xf32> to vector<8x32x1xf32>
    %186 = arith.mulf %184, %185 : vector<8x32x1xf32>
    %187 = arith.addf %179, %186 : vector<8x32x1xf32>
    %188 = vector.extract_strided_slice %0 {offsets = [0, 13, 0], sizes = [8, 1, 1], strides = [1, 1, 1]} : vector<8x16x1xf32> to vector<8x1x1xf32>
    %189 = vector.extract_strided_slice %82 {offsets = [13, 0, 0], sizes = [1, 32, 1], strides = [1, 1, 1]} : vector<16x32x1xf32> to vector<1x32x1xf32>
    %190 = vector.shape_cast %189 : vector<1x32x1xf32> to vector<32x1xf32>
    %191 = vector.shape_cast %190 : vector<32x1xf32> to vector<1x32x1xf32>
    %192 = vector.broadcast %188 : vector<8x1x1xf32> to vector<8x32x1xf32>
    %193 = vector.broadcast %191 : vector<1x32x1xf32> to vector<8x32x1xf32>
    %194 = arith.mulf %192, %193 : vector<8x32x1xf32>
    %195 = arith.addf %187, %194 : vector<8x32x1xf32>
    %196 = vector.extract_strided_slice %0 {offsets = [0, 14, 0], sizes = [8, 1, 1], strides = [1, 1, 1]} : vector<8x16x1xf32> to vector<8x1x1xf32>
    %197 = vector.extract_strided_slice %82 {offsets = [14, 0, 0], sizes = [1, 32, 1], strides = [1, 1, 1]} : vector<16x32x1xf32> to vector<1x32x1xf32>
    %198 = vector.shape_cast %197 : vector<1x32x1xf32> to vector<32x1xf32>
    %199 = vector.shape_cast %198 : vector<32x1xf32> to vector<1x32x1xf32>
    %200 = vector.broadcast %196 : vector<8x1x1xf32> to vector<8x32x1xf32>
    %201 = vector.broadcast %199 : vector<1x32x1xf32> to vector<8x32x1xf32>
    %202 = arith.mulf %200, %201 : vector<8x32x1xf32>
    %203 = arith.addf %195, %202 : vector<8x32x1xf32>
    %204 = vector.extract_strided_slice %0 {offsets = [0, 15, 0], sizes = [8, 1, 1], strides = [1, 1, 1]} : vector<8x16x1xf32> to vector<8x1x1xf32>
    %205 = vector.extract_strided_slice %82 {offsets = [15, 0, 0], sizes = [1, 32, 1], strides = [1, 1, 1]} : vector<16x32x1xf32> to vector<1x32x1xf32>
    %206 = vector.shape_cast %205 : vector<1x32x1xf32> to vector<32x1xf32>
    %207 = vector.shape_cast %206 : vector<32x1xf32> to vector<1x32x1xf32>
    %208 = vector.broadcast %204 : vector<8x1x1xf32> to vector<8x32x1xf32>
    %209 = vector.broadcast %207 : vector<1x32x1xf32> to vector<8x32x1xf32>
    %210 = arith.mulf %208, %209 : vector<8x32x1xf32>
    %211 = arith.addf %203, %210 : vector<8x32x1xf32>
    %cst = arith.constant dense<0.000000e+00> : vector<32x1xf32>
    %212 = vector.multi_reduction <add>, %211, %cst [0] : vector<8x32x1xf32> to vector<32x1xf32>
    %213 = vector.shape_cast %212 : vector<32x1xf32> to vector<1x32x1xf32>
    %cst_11 = arith.constant dense<0.000000e+00> : vector<1x1xf32>
    %214 = vector.multi_reduction <add>, %213, %cst_11 [1] : vector<1x32x1xf32> to vector<1x1xf32>
    %215 = vector.shape_cast %214 : vector<1x1xf32> to vector<1x1x1xf32>
    %cst_12 = arith.constant 3.906250e-03 : f32
    %216 = vector.broadcast %cst_12 : f32 to vector<1x1x1xf32>
    %217 = arith.mulf %215, %216 : vector<1x1x1xf32>
    %218 = vector.broadcast %217 : vector<1x1x1xf32> to vector<8x32x1xf32>
    %219 = arith.subf %211, %218 : vector<8x32x1xf32>
    %220 = arith.mulf %219, %219 : vector<8x32x1xf32>
    %cst_13 = arith.constant dense<0.000000e+00> : vector<32x1xf32>
    %221 = vector.multi_reduction <add>, %220, %cst_13 [0] : vector<8x32x1xf32> to vector<32x1xf32>
    %222 = vector.shape_cast %221 : vector<32x1xf32> to vector<1x32x1xf32>
    %cst_14 = arith.constant dense<0.000000e+00> : vector<1x1xf32>
    %223 = vector.multi_reduction <add>, %222, %cst_14 [1] : vector<1x32x1xf32> to vector<1x1xf32>
    %224 = vector.shape_cast %223 : vector<1x1xf32> to vector<1x1x1xf32>
    %cst_15 = arith.constant 0.00392156886 : f32
    %225 = vector.broadcast %cst_15 : f32 to vector<1x1x1xf32>
    %226 = arith.mulf %224, %225 : vector<1x1x1xf32>
    %227 = math.rsqrt %226 : vector<1x1x1xf32>
    %228 = vector.broadcast %227 : vector<1x1x1xf32> to vector<8x32x1xf32>
    %229 = arith.mulf %219, %228 : vector<8x32x1xf32>
    %c0_16 = arith.constant 0 : index
    %c0_17 = arith.constant 0 : index
    %c0_18 = arith.constant 0 : index
    %230 = vector.load %arg5[%c0_16, %c0_17, %c0_18] : memref<8x32x1xf32, #tpu.memory_space<vmem>>, vector<8x32x1xf32>
    tpu.vector_store %arg5[%c0_16, %c0_17, %c0_18], %229 {strides = array<i32>} : memref<8x32x1xf32, #tpu.memory_space<vmem>>, vector<8x32x1xf32>,
    return
  }
  func.func @transform_0(%arg0: i32) -> (i32, i32, i32) {
    %c0_i32 = arith.constant 0 : i32
    %c0_i32_0 = arith.constant 0 : i32
    %c0_i32_1 = arith.constant 0 : i32
    return %c0_i32, %c0_i32_0, %arg0 : i32, i32, i32
  }
  func.func @transform_1(%arg0: i32) -> (i32, i32, i32) {
    %c0_i32 = arith.constant 0 : i32
    %c0_i32_0 = arith.constant 0 : i32
    %c0_i32_1 = arith.constant 0 : i32
    return %c0_i32, %c0_i32_0, %arg0 : i32, i32, i32
  }
  func.func @transform_2(%arg0: i32) -> (i32, i32, i32) {
    %c0_i32 = arith.constant 0 : i32
    %c0_i32_0 = arith.constant 0 : i32
    %c0_i32_1 = arith.constant 0 : i32
    return %c0_i32, %c0_i32_0, %arg0 : i32, i32, i32
  }
  func.func @transform_3(%arg0: i32) -> (i32, i32, i32) {
    %c0_i32 = arith.constant 0 : i32
    %c0_i32_0 = arith.constant 0 : i32
    %c0_i32_1 = arith.constant 0 : i32
    return %c0_i32, %c0_i32_0, %arg0 : i32, i32, i32
  }
  func.func @transform_4(%arg0: i32) -> (i32, i32, i32) {
    %c0_i32 = arith.constant 0 : i32
    %c0_i32_0 = arith.constant 0 : i32
    %c0_i32_1 = arith.constant 0 : i32
    return %c0_i32, %c0_i32_0, %arg0 : i32, i32, i32
  }
}

</mosaic_0001>

<llo_original>
// kernel: tpu_custom_call.1
$region0: #{tpu_custom_call.1}
  #allocation0 [shape = 'u32[]', space=smem, size = 0x4, offset = 0x4, fixed_abs, tag = 'smem constant byte address 0x4 - core index']
  #allocation1 [shape = 'u32[72,128]{1,0:T(1,128)}', space=vmem, size = 0x9000, scoped, tag = 'internal scratch']
  %s0 = inlined_call_operand.vmem [shape: f32[8,16,1], index: 0, kind: input, shape index: {}]
  %s1 = inlined_call_operand.vmem [shape: f32[8,32,1], index: 1, kind: input, shape index: {}]
  %s2 = inlined_call_operand.vmem [shape: f32[16,32,1], index: 2, kind: input, shape index: {}]
  %s3 = inlined_call_operand.vmem [shape: f32[8,32,1], index: 3, kind: input, shape index: {}]
  %s4 = inlined_call_operand.vmem [shape: f32[8,32,1], index: 4, kind: output, shape index: {}]
  %s5 = sld [smem:[#allocation0]]
  $region26: #{tpu_custom_call.1} parent=0
    _
  %s7 = ssub.s32 1, %s5
  %s8 = scalar_select 0, %s7, %s5
  // Predicated region
  $region2: #{tpu_custom_call.1} parent=0 // pred_check
    _
  $region3: #{tpu_custom_call.1} parent=0 // pred_check_branch
    %10 = sbr.rel (0) target = $region5
  $region4: #{tpu_custom_call.1} parent=0 // pred_region
    _
  $region5: #{tpu_custom_call.1} parent=0 // pred_fallthru
    _
  // Predicated region
  $region6: #{tpu_custom_call.1} parent=0 // pred_check
    _
  $region7: #{tpu_custom_call.1} parent=0 // pred_check_branch
    %12 = sbr.rel (0) target = $region9
  $region8: #{tpu_custom_call.1} parent=0 // pred_region
    _
  $region9: #{tpu_custom_call.1} parent=0 // pred_fallthru
    _
  // Predicated region
  $region10: #{tpu_custom_call.1} parent=0 // pred_check
    _
  $region11: #{tpu_custom_call.1} parent=0 // pred_check_branch
    %14 = sbr.rel (0) target = $region13
  $region12: #{tpu_custom_call.1} parent=0 // pred_region
    _
  $region13: #{tpu_custom_call.1} parent=0 // pred_fallthru
    _
  // Predicated region
  $region14: #{tpu_custom_call.1} parent=0 // pred_check
    _
  $region15: #{tpu_custom_call.1} parent=0 // pred_check_branch
    %16 = sbr.rel (0) target = $region17
  $region16: #{tpu_custom_call.1} parent=0 // pred_region
    _
  $region17: #{tpu_custom_call.1} parent=0 // pred_fallthru
    _
  %v17 = vld [vmem:[%s0] sm:$0xff]
  %v18 = vld [vmem:[%s0 + $0x8] sm:$0xff]
  %v19 = vld [vmem:[%s0 + $0x10] sm:$0xff]
  %v20 = vld [vmem:[%s0 + $0x18] sm:$0xff]
  %v21 = vld [vmem:[%s0 + $0x20] sm:$0xff]
  %v22 = vld [vmem:[%s0 + $0x28] sm:$0xff]
  %v23 = vld [vmem:[%s0 + $0x30] sm:$0xff]
  %v24 = vld [vmem:[%s0 + $0x38] sm:$0xff]
  %v25 = vld [vmem:[%s0 + $0x40] sm:$0xff]
  %v26 = vld [vmem:[%s0 + $0x48] sm:$0xff]
  %v27 = vld [vmem:[%s0 + $0x50] sm:$0xff]
  %v28 = vld [vmem:[%s0 + $0x58] sm:$0xff]
  %v29 = vld [vmem:[%s0 + $0x60] sm:$0xff]
  %v30 = vld [vmem:[%s0 + $0x68] sm:$0xff]
  %v31 = vld [vmem:[%s0 + $0x70] sm:$0xff]
  %v32 = vld [vmem:[%s0 + $0x78] sm:$0xff]
  %v33 = vld [vmem:[%s1] sm:$0xff]
  %v34 = vld [vmem:[%s1 + $0x8] sm:$0xff]
  %v35 = vld [vmem:[%s1 + $0x10] sm:$0xff]
  %v36 = vld [vmem:[%s1 + $0x18] sm:$0xff]
  %v37 = vld [vmem:[%s1 + $0x20] sm:$0xff]
  %v38 = vld [vmem:[%s1 + $0x28] sm:$0xff]
  %v39 = vld [vmem:[%s1 + $0x30] sm:$0xff]
  %v40 = vld [vmem:[%s1 + $0x38] sm:$0xff]
  %v41 = vld [vmem:[%s1 + $0x40] sm:$0xff]
  %v42 = vld [vmem:[%s1 + $0x48] sm:$0xff]
  %v43 = vld [vmem:[%s1 + $0x50] sm:$0xff]
  %v44 = vld [vmem:[%s1 + $0x58] sm:$0xff]
  %v45 = vld [vmem:[%s1 + $0x60] sm:$0xff]
  %v46 = vld [vmem:[%s1 + $0x68] sm:$0xff]
  %v47 = vld [vmem:[%s1 + $0x70] sm:$0xff]
  %v48 = vld [vmem:[%s1 + $0x78] sm:$0xff]
  %v49 = vld [vmem:[%s1 + $0x80] sm:$0xff]
  %v50 = vld [vmem:[%s1 + $0x88] sm:$0xff]
  %v51 = vld [vmem:[%s1 + $0x90] sm:$0xff]
  %v52 = vld [vmem:[%s1 + $0x98] sm:$0xff]
  %v53 = vld [vmem:[%s1 + $0xa0] sm:$0xff]
  %v54 = vld [vmem:[%s1 + $0xa8] sm:$0xff]
  %v55 = vld [vmem:[%s1 + $0xb0] sm:$0xff]
  %v56 = vld [vmem:[%s1 + $0xb8] sm:$0xff]
  %v57 = vld [vmem:[%s1 + $0xc0] sm:$0xff]
  %v58 = vld [vmem:[%s1 + $0xc8] sm:$0xff]
  %v59 = vld [vmem:[%s1 + $0xd0] sm:$0xff]
  %v60 = vld [vmem:[%s1 + $0xd8] sm:$0xff]
  %v61 = vld [vmem:[%s1 + $0xe0] sm:$0xff]
  %v62 = vld [vmem:[%s1 + $0xe8] sm:$0xff]
  %v63 = vld [vmem:[%s1 + $0xf0] sm:$0xff]
  %v64 = vld [vmem:[%s1 + $0xf8] sm:$0xff]
  %v65 = vld [vmem:[%s2] sm:$0xff]
  %v66 = vld [vmem:[%s2 + $0x8] sm:$0xff]
  %v67 = vld [vmem:[%s2 + $0x10] sm:$0xff]
  %v68 = vld [vmem:[%s2 + $0x18] sm:$0xff]
  %v69 = vld [vmem:[%s2 + $0x20] sm:$0xff]
  %v70 = vld [vmem:[%s2 + $0x28] sm:$0xff]
  %v71 = vld [vmem:[%s2 + $0x30] sm:$0xff]
  %v72 = vld [vmem:[%s2 + $0x38] sm:$0xff]
  %v73 = vld [vmem:[%s2 + $0x40] sm:$0xff]
  %v74 = vld [vmem:[%s2 + $0x48] sm:$0xff]
  %v75 = vld [vmem:[%s2 + $0x50] sm:$0xff]
  %v76 = vld [vmem:[%s2 + $0x58] sm:$0xff]
  %v77 = vld [vmem:[%s2 + $0x60] sm:$0xff]
  %v78 = vld [vmem:[%s2 + $0x68] sm:$0xff]
  %v79 = vld [vmem:[%s2 + $0x70] sm:$0xff]
  %v80 = vld [vmem:[%s2 + $0x78] sm:$0xff]
  %v81 = vld [vmem:[%s2 + $0x80] sm:$0xff]
  %v82 = vld [vmem:[%s2 + $0x88] sm:$0xff]
  %v83 = vld [vmem:[%s2 + $0x90] sm:$0xff]
  %v84 = vld [vmem:[%s2 + $0x98] sm:$0xff]
  %v85 = vld [vmem:[%s2 + $0xa0] sm:$0xff]
  %v86 = vld [vmem:[%s2 + $0xa8] sm:$0xff]
  %v87 = vld [vmem:[%s2 + $0xb0] sm:$0xff]
  %v88 = vld [vmem:[%s2 + $0xb8] sm:$0xff]
  %v89 = vld [vmem:[%s2 + $0xc0] sm:$0xff]
  %v90 = vld [vmem:[%s2 + $0xc8] sm:$0xff]
  %v91 = vld [vmem:[%s2 + $0xd0] sm:$0xff]
  %v92 = vld [vmem:[%s2 + $0xd8] sm:$0xff]
  %v93 = vld [vmem:[%s2 + $0xe0] sm:$0xff]
  %v94 = vld [vmem:[%s2 + $0xe8] sm:$0xff]
  %v95 = vld [vmem:[%s2 + $0xf0] sm:$0xff]
  %v96 = vld [vmem:[%s2 + $0xf8] sm:$0xff]
  %v97 = vld [vmem:[%s2 + $0x100] sm:$0xff]
  %v98 = vld [vmem:[%s2 + $0x108] sm:$0xff]
  %v99 = vld [vmem:[%s2 + $0x110] sm:$0xff]
  %v100 = vld [vmem:[%s2 + $0x118] sm:$0xff]
  %v101 = vld [vmem:[%s2 + $0x120] sm:$0xff]
  %v102 = vld [vmem:[%s2 + $0x128] sm:$0xff]
  %v103 = vld [vmem:[%s2 + $0x130] sm:$0xff]
  %v104 = vld [vmem:[%s2 + $0x138] sm:$0xff]
  %v105 = vld [vmem:[%s2 + $0x140] sm:$0xff]
  %v106 = vld [vmem:[%s2 + $0x148] sm:$0xff]
  %v107 = vld [vmem:[%s2 + $0x150] sm:$0xff]
  %v108 = vld [vmem:[%s2 + $0x158] sm:$0xff]
  %v109 = vld [vmem:[%s2 + $0x160] sm:$0xff]
  %v110 = vld [vmem:[%s2 + $0x168] sm:$0xff]
  %v111 = vld [vmem:[%s2 + $0x170] sm:$0xff]
  %v112 = vld [vmem:[%s2 + $0x178] sm:$0xff]
  %v113 = vld [vmem:[%s2 + $0x180] sm:$0xff]
  %v114 = vld [vmem:[%s2 + $0x188] sm:$0xff]
  %v115 = vld [vmem:[%s2 + $0x190] sm:$0xff]
  %v116 = vld [vmem:[%s2 + $0x198] sm:$0xff]
  %v117 = vld [vmem:[%s2 + $0x1a0] sm:$0xff]
  %v118 = vld [vmem:[%s2 + $0x1a8] sm:$0xff]
  %v119 = vld [vmem:[%s2 + $0x1b0] sm:$0xff]
  %v120 = vld [vmem:[%s2 + $0x1b8] sm:$0xff]
  %v121 = vld [vmem:[%s2 + $0x1c0] sm:$0xff]
  %v122 = vld [vmem:[%s2 + $0x1c8] sm:$0xff]
  %v123 = vld [vmem:[%s2 + $0x1d0] sm:$0xff]
  %v124 = vld [vmem:[%s2 + $0x1d8] sm:$0xff]
  %v125 = vld [vmem:[%s2 + $0x1e0] sm:$0xff]
  %v126 = vld [vmem:[%s2 + $0x1e8] sm:$0xff]
  %v127 = vld [vmem:[%s2 + $0x1f0] sm:$0xff]
  %v128 = vld [vmem:[%s2 + $0x1f8] sm:$0xff]
  %v131 = vrot.slane %v17, 1
  %v132 = vrot.slane %v17, 2
  %v133 = vrot.slane %v17, 3
  %v134 = vrot.slane %v17, 4
  %v135 = vrot.slane %v17, 5
  %v136 = vrot.slane %v17, 6
  %v137 = vrot.slane %v17, 7
  %v138 = vrot.slane %v18, 1
  %v139 = vrot.slane %v18, 2
  %v140 = vrot.slane %v18, 3
  %v141 = vrot.slane %v18, 4
  %v142 = vrot.slane %v18, 5
  %v143 = vrot.slane %v18, 6
  %v144 = vrot.slane %v18, 7
  %v145 = vperm.slane %v17, 0
  %v146 = vperm.slane %v131, 0
  %v147 = vperm.slane %v132, 0
  %v148 = vperm.slane %v133, 0
  %v149 = vperm.slane %v134, 0
  %v150 = vperm.slane %v135, 0
  %v151 = vperm.slane %v136, 0
  %v152 = vperm.slane %v137, 0
  %v153 = vperm.slane %v18, 0
  %v154 = vperm.slane %v138, 0
  %v155 = vperm.slane %v139, 0
  %v156 = vperm.slane %v140, 0
  %v157 = vperm.slane %v141, 0
  %v158 = vperm.slane %v142, 0
  %v159 = vperm.slane %v143, 0
  %v160 = vperm.slane %v144, 0
  %v177 = vmul.f32 %v145, %v33
  %v178 = vmul.f32 %v145, %v34
  %v179 = vmul.f32 %v145, %v35
  %v180 = vmul.f32 %v145, %v36
  %v181 = vmul.f32 %v146, %v33
  %v182 = vmul.f32 %v146, %v34
  %v183 = vmul.f32 %v146, %v35
  %v184 = vmul.f32 %v146, %v36
  %v185 = vmul.f32 %v147, %v33
  %v186 = vmul.f32 %v147, %v34
  %v187 = vmul.f32 %v147, %v35
  %v188 = vmul.f32 %v147, %v36
  %v189 = vmul.f32 %v148, %v33
  %v190 = vmul.f32 %v148, %v34
  %v191 = vmul.f32 %v148, %v35
  %v192 = vmul.f32 %v148, %v36
  %v193 = vmul.f32 %v149, %v33
  %v194 = vmul.f32 %v149, %v34
  %v195 = vmul.f32 %v149, %v35
  %v196 = vmul.f32 %v149, %v36
  %v197 = vmul.f32 %v150, %v33
  %v198 = vmul.f32 %v150, %v34
  %v199 = vmul.f32 %v150, %v35
  %v200 = vmul.f32 %v150, %v36
  %v201 = vmul.f32 %v151, %v33
  %v202 = vmul.f32 %v151, %v34
  %v203 = vmul.f32 %v151, %v35
  %v204 = vmul.f32 %v151, %v36
  %v205 = vmul.f32 %v152, %v33
  %v206 = vmul.f32 %v152, %v34
  %v207 = vmul.f32 %v152, %v35
  %v208 = vmul.f32 %v152, %v36
  %v209 = vmul.f32 %v153, %v33
  %v210 = vmul.f32 %v153, %v34
  %v211 = vmul.f32 %v153, %v35
  %v212 = vmul.f32 %v153, %v36
  %v213 = vmul.f32 %v154, %v33
  %v214 = vmul.f32 %v154, %v34
  %v215 = vmul.f32 %v154, %v35
  %v216 = vmul.f32 %v154, %v36
  %v217 = vmul.f32 %v155, %v33
  %v218 = vmul.f32 %v155, %v34
  %v219 = vmul.f32 %v155, %v35
  %v220 = vmul.f32 %v155, %v36
  %v221 = vmul.f32 %v156, %v33
  %v222 = vmul.f32 %v156, %v34
  %v223 = vmul.f32 %v156, %v35
  %v224 = vmul.f32 %v156, %v36
  %v225 = vmul.f32 %v157, %v33
  %v226 = vmul.f32 %v157, %v34
  %v227 = vmul.f32 %v157, %v35
  %v228 = vmul.f32 %v157, %v36
  %v229 = vmul.f32 %v158, %v33
  %v230 = vmul.f32 %v158, %v34
  %v231 = vmul.f32 %v158, %v35
  %v232 = vmul.f32 %v158, %v36
  %v233 = vmul.f32 %v159, %v33
  %v234 = vmul.f32 %v159, %v34
  %v235 = vmul.f32 %v159, %v35
  %v236 = vmul.f32 %v159, %v36
  %v237 = vmul.f32 %v160, %v33
  %v238 = vmul.f32 %v160, %v34
  %v239 = vmul.f32 %v160, %v35
  %v240 = vmul.f32 %v160, %v36
  %v241 = vadd.f32 %v65, %v177
  %v242 = vadd.f32 %v66, %v178
  %v243 = vadd.f32 %v67, %v179
  %v244 = vadd.f32 %v68, %v180
  %v245 = vadd.f32 %v69, %v181
  %v246 = vadd.f32 %v70, %v182
  %v247 = vadd.f32 %v71, %v183
  %v248 = vadd.f32 %v72, %v184
  %v249 = vadd.f32 %v73, %v185
  %v250 = vadd.f32 %v74, %v186
  %v251 = vadd.f32 %v75, %v187
  %v252 = vadd.f32 %v76, %v188
  %v253 = vadd.f32 %v77, %v189
  %v254 = vadd.f32 %v78, %v190
  %v255 = vadd.f32 %v79, %v191
  %v256 = vadd.f32 %v80, %v192
  %v257 = vadd.f32 %v81, %v193
  %v258 = vadd.f32 %v82, %v194
  %v259 = vadd.f32 %v83, %v195
  %v260 = vadd.f32 %v84, %v196
  %v261 = vadd.f32 %v85, %v197
  %v262 = vadd.f32 %v86, %v198
  %v263 = vadd.f32 %v87, %v199
  %v264 = vadd.f32 %v88, %v200
  %v265 = vadd.f32 %v89, %v201
  %v266 = vadd.f32 %v90, %v202
  %v267 = vadd.f32 %v91, %v203
  %v268 = vadd.f32 %v92, %v204
  %v269 = vadd.f32 %v93, %v205
  %v270 = vadd.f32 %v94, %v206
  %v271 = vadd.f32 %v95, %v207
  %v272 = vadd.f32 %v96, %v208
  %v273 = vadd.f32 %v97, %v209
  %v274 = vadd.f32 %v98, %v210
  %v275 = vadd.f32 %v99, %v211
  %v276 = vadd.f32 %v100, %v212
  %v277 = vadd.f32 %v101, %v213
  %v278 = vadd.f32 %v102, %v214
  %v279 = vadd.f32 %v103, %v215
  %v280 = vadd.f32 %v104, %v216
  %v281 = vadd.f32 %v105, %v217
  %v282 = vadd.f32 %v106, %v218
  %v283 = vadd.f32 %v107, %v219
  %v284 = vadd.f32 %v108, %v220
  %v285 = vadd.f32 %v109, %v221
  %v286 = vadd.f32 %v110, %v222
  %v287 = vadd.f32 %v111, %v223
  %v288 = vadd.f32 %v112, %v224
  %v289 = vadd.f32 %v113, %v225
  %v290 = vadd.f32 %v114, %v226
  %v291 = vadd.f32 %v115, %v227
  %v292 = vadd.f32 %v116, %v228
  %v293 = vadd.f32 %v117, %v229
  %v294 = vadd.f32 %v118, %v230
  %v295 = vadd.f32 %v119, %v231
  %v296 = vadd.f32 %v120, %v232
  %v297 = vadd.f32 %v121, %v233
  %v298 = vadd.f32 %v122, %v234
  %v299 = vadd.f32 %v123, %v235
  %v300 = vadd.f32 %v124, %v236
  %v301 = vadd.f32 %v125, %v237
  %v302 = vadd.f32 %v126, %v238
  %v303 = vadd.f32 %v127, %v239
  %v304 = vadd.f32 %v128, %v240
  %v307 = vrot.slane %v19, 1
  %v308 = vrot.slane %v19, 2
  %v309 = vrot.slane %v19, 3
  %v310 = vrot.slane %v19, 4
  %v311 = vrot.slane %v19, 5
  %v312 = vrot.slane %v19, 6
  %v313 = vrot.slane %v19, 7
  %v314 = vrot.slane %v20, 1
  %v315 = vrot.slane %v20, 2
  %v316 = vrot.slane %v20, 3
  %v317 = vrot.slane %v20, 4
  %v318 = vrot.slane %v20, 5
  %v319 = vrot.slane %v20, 6
  %v320 = vrot.slane %v20, 7
  %v321 = vperm.slane %v19, 0
  %v322 = vperm.slane %v307, 0
  %v323 = vperm.slane %v308, 0
  %v324 = vperm.slane %v309, 0
  %v325 = vperm.slane %v310, 0
  %v326 = vperm.slane %v311, 0
  %v327 = vperm.slane %v312, 0
  %v328 = vperm.slane %v313, 0
  %v329 = vperm.slane %v20, 0
  %v330 = vperm.slane %v314, 0
  %v331 = vperm.slane %v315, 0
  %v332 = vperm.slane %v316, 0
  %v333 = vperm.slane %v317, 0
  %v334 = vperm.slane %v318, 0
  %v335 = vperm.slane %v319, 0
  %v336 = vperm.slane %v320, 0
  %v353 = vmul.f32 %v321, %v37
  %v354 = vmul.f32 %v321, %v38
  %v355 = vmul.f32 %v321, %v39
  %v356 = vmul.f32 %v321, %v40
  %v357 = vmul.f32 %v322, %v37
  %v358 = vmul.f32 %v322, %v38
  %v359 = vmul.f32 %v322, %v39
  %v360 = vmul.f32 %v322, %v40
  %v361 = vmul.f32 %v323, %v37
  %v362 = vmul.f32 %v323, %v38
  %v363 = vmul.f32 %v323, %v39
  %v364 = vmul.f32 %v323, %v40
  %v365 = vmul.f32 %v324, %v37
  %v366 = vmul.f32 %v324, %v38
  %v367 = vmul.f32 %v324, %v39
  %v368 = vmul.f32 %v324, %v40
  %v369 = vmul.f32 %v325, %v37
  %v370 = vmul.f32 %v325, %v38
  %v371 = vmul.f32 %v325, %v39
  %v372 = vmul.f32 %v325, %v40
  %v373 = vmul.f32 %v326, %v37
  %v374 = vmul.f32 %v326, %v38
  %v375 = vmul.f32 %v326, %v39
  %v376 = vmul.f32 %v326, %v40
  %v377 = vmul.f32 %v327, %v37
  %v378 = vmul.f32 %v327, %v38
  %v379 = vmul.f32 %v327, %v39
  %v380 = vmul.f32 %v327, %v40
  %v381 = vmul.f32 %v328, %v37
  %v382 = vmul.f32 %v328, %v38
  %v383 = vmul.f32 %v328, %v39
  %v384 = vmul.f32 %v328, %v40
  %v385 = vmul.f32 %v329, %v37
  %v386 = vmul.f32 %v329, %v38
  %v387 = vmul.f32 %v329, %v39
  %v388 = vmul.f32 %v329, %v40
  %v389 = vmul.f32 %v330, %v37
  %v390 = vmul.f32 %v330, %v38
  %v391 = vmul.f32 %v330, %v39
  %v392 = vmul.f32 %v330, %v40
  %v393 = vmul.f32 %v331, %v37
  %v394 = vmul.f32 %v331, %v38
  %v395 = vmul.f32 %v331, %v39
  %v396 = vmul.f32 %v331, %v40
  %v397 = vmul.f32 %v332, %v37
  %v398 = vmul.f32 %v332, %v38
  %v399 = vmul.f32 %v332, %v39
  %v400 = vmul.f32 %v332, %v40
  %v401 = vmul.f32 %v333, %v37
  %v402 = vmul.f32 %v333, %v38
  %v403 = vmul.f32 %v333, %v39
  %v404 = vmul.f32 %v333, %v40
  %v405 = vmul.f32 %v334, %v37
  %v406 = vmul.f32 %v334, %v38
  %v407 = vmul.f32 %v334, %v39
  %v408 = vmul.f32 %v334, %v40
  %v409 = vmul.f32 %v335, %v37
  %v410 = vmul.f32 %v335, %v38
  %v411 = vmul.f32 %v335, %v39
  %v412 = vmul.f32 %v335, %v40
  %v413 = vmul.f32 %v336, %v37
  %v414 = vmul.f32 %v336, %v38
  %v415 = vmul.f32 %v336, %v39
  %v416 = vmul.f32 %v336, %v40
  %v417 = vadd.f32 %v241, %v353
  %v418 = vadd.f32 %v242, %v354
  %v419 = vadd.f32 %v243, %v355
  %v420 = vadd.f32 %v244, %v356
  %v421 = vadd.f32 %v245, %v357
  %v422 = vadd.f32 %v246, %v358
  %v423 = vadd.f32 %v247, %v359
  %v424 = vadd.f32 %v248, %v360
  %v425 = vadd.f32 %v249, %v361
  %v426 = vadd.f32 %v250, %v362
  %v427 = vadd.f32 %v251, %v363
  %v428 = vadd.f32 %v252, %v364
  %v429 = vadd.f32 %v253, %v365
  %v430 = vadd.f32 %v254, %v366
  %v431 = vadd.f32 %v255, %v367
  %v432 = vadd.f32 %v256, %v368
  %v433 = vadd.f32 %v257, %v369
  %v434 = vadd.f32 %v258, %v370
  %v435 = vadd.f32 %v259, %v371
  %v436 = vadd.f32 %v260, %v372
  %v437 = vadd.f32 %v261, %v373
  %v438 = vadd.f32 %v262, %v374
  %v439 = vadd.f32 %v263, %v375
  %v440 = vadd.f32 %v264, %v376
  %v441 = vadd.f32 %v265, %v377
  %v442 = vadd.f32 %v266, %v378
  %v443 = vadd.f32 %v267, %v379
  %v444 = vadd.f32 %v268, %v380
  %v445 = vadd.f32 %v269, %v381
  %v446 = vadd.f32 %v270, %v382
  %v447 = vadd.f32 %v271, %v383
  %v448 = vadd.f32 %v272, %v384
  %v449 = vadd.f32 %v273, %v385
  %v450 = vadd.f32 %v274, %v386
  %v451 = vadd.f32 %v275, %v387
  %v452 = vadd.f32 %v276, %v388
  %v453 = vadd.f32 %v277, %v389
  %v454 = vadd.f32 %v278, %v390
  %v455 = vadd.f32 %v279, %v391
  %v456 = vadd.f32 %v280, %v392
  %v457 = vadd.f32 %v281, %v393
  %v458 = vadd.f32 %v282, %v394
  %v459 = vadd.f32 %v283, %v395
  %v460 = vadd.f32 %v284, %v396
  %v461 = vadd.f32 %v285, %v397
  %v462 = vadd.f32 %v286, %v398
  %v463 = vadd.f32 %v287, %v399
  %v464 = vadd.f32 %v288, %v400
  %v465 = vadd.f32 %v289, %v401
  %v466 = vadd.f32 %v290, %v402
  %v467 = vadd.f32 %v291, %v403
  %v468 = vadd.f32 %v292, %v404
  %v469 = vadd.f32 %v293, %v405
  %v470 = vadd.f32 %v294, %v406
  %v471 = vadd.f32 %v295, %v407
  %v472 = vadd.f32 %v296, %v408
  %v473 = vadd.f32 %v297, %v409
  %v474 = vadd.f32 %v298, %v410
  %v475 = vadd.f32 %v299, %v411
  %v476 = vadd.f32 %v300, %v412
  %v477 = vadd.f32 %v301, %v413
  %v478 = vadd.f32 %v302, %v414
  %v479 = vadd.f32 %v303, %v415
  %v480 = vadd.f32 %v304, %v416
  %v483 = vrot.slane %v21, 1
  %v484 = vrot.slane %v21, 2
  %v485 = vrot.slane %v21, 3
  %v486 = vrot.slane %v21, 4
  %v487 = vrot.slane %v21, 5
  %v488 = vrot.slane %v21, 6
  %v489 = vrot.slane %v21, 7
  %v490 = vrot.slane %v22, 1
  %v491 = vrot.slane %v22, 2
  %v492 = vrot.slane %v22, 3
  %v493 = vrot.slane %v22, 4
  %v494 = vrot.slane %v22, 5
  %v495 = vrot.slane %v22, 6
  %v496 = vrot.slane %v22, 7
  %v497 = vperm.slane %v21, 0
  %v498 = vperm.slane %v483, 0
  %v499 = vperm.slane %v484, 0
  %v500 = vperm.slane %v485, 0
  %v501 = vperm.slane %v486, 0
  %v502 = vperm.slane %v487, 0
  %v503 = vperm.slane %v488, 0
  %v504 = vperm.slane %v489, 0
  %v505 = vperm.slane %v22, 0
  %v506 = vperm.slane %v490, 0
  %v507 = vperm.slane %v491, 0
  %v508 = vperm.slane %v492, 0
  %v509 = vperm.slane %v493, 0
  %v510 = vperm.slane %v494, 0
  %v511 = vperm.slane %v495, 0
  %v512 = vperm.slane %v496, 0
  %v529 = vmul.f32 %v497, %v41
  %v530 = vmul.f32 %v497, %v42
  %v531 = vmul.f32 %v497, %v43
  %v532 = vmul.f32 %v497, %v44
  %v533 = vmul.f32 %v498, %v41
  %v534 = vmul.f32 %v498, %v42
  %v535 = vmul.f32 %v498, %v43
  %v536 = vmul.f32 %v498, %v44
  %v537 = vmul.f32 %v499, %v41
  %v538 = vmul.f32 %v499, %v42
  %v539 = vmul.f32 %v499, %v43
  %v540 = vmul.f32 %v499, %v44
  %v541 = vmul.f32 %v500, %v41
  %v542 = vmul.f32 %v500, %v42
  %v543 = vmul.f32 %v500, %v43
  %v544 = vmul.f32 %v500, %v44
  %v545 = vmul.f32 %v501, %v41
  %v546 = vmul.f32 %v501, %v42
  %v547 = vmul.f32 %v501, %v43
  %v548 = vmul.f32 %v501, %v44
  %v549 = vmul.f32 %v502, %v41
  %v550 = vmul.f32 %v502, %v42
  %v551 = vmul.f32 %v502, %v43
  %v552 = vmul.f32 %v502, %v44
  %v553 = vmul.f32 %v503, %v41
  %v554 = vmul.f32 %v503, %v42
  %v555 = vmul.f32 %v503, %v43
  %v556 = vmul.f32 %v503, %v44
  %v557 = vmul.f32 %v504, %v41
  %v558 = vmul.f32 %v504, %v42
  %v559 = vmul.f32 %v504, %v43
  %v560 = vmul.f32 %v504, %v44
  %v561 = vmul.f32 %v505, %v41
  %v562 = vmul.f32 %v505, %v42
  %v563 = vmul.f32 %v505, %v43
  %v564 = vmul.f32 %v505, %v44
  %v565 = vmul.f32 %v506, %v41
  %v566 = vmul.f32 %v506, %v42
  %v567 = vmul.f32 %v506, %v43
  %v568 = vmul.f32 %v506, %v44
  %v569 = vmul.f32 %v507, %v41
  %v570 = vmul.f32 %v507, %v42
  %v571 = vmul.f32 %v507, %v43
  %v572 = vmul.f32 %v507, %v44
  %v573 = vmul.f32 %v508, %v41
  %v574 = vmul.f32 %v508, %v42
  %v575 = vmul.f32 %v508, %v43
  %v576 = vmul.f32 %v508, %v44
  %v577 = vmul.f32 %v509, %v41
  %v578 = vmul.f32 %v509, %v42
  %v579 = vmul.f32 %v509, %v43
  %v580 = vmul.f32 %v509, %v44
  %v581 = vmul.f32 %v510, %v41
  %v582 = vmul.f32 %v510, %v42
  %v583 = vmul.f32 %v510, %v43
  %v584 = vmul.f32 %v510, %v44
  %v585 = vmul.f32 %v511, %v41
  %v586 = vmul.f32 %v511, %v42
  %v587 = vmul.f32 %v511, %v43
  %v588 = vmul.f32 %v511, %v44
  %v589 = vmul.f32 %v512, %v41
  %v590 = vmul.f32 %v512, %v42
  %v591 = vmul.f32 %v512, %v43
  %v592 = vmul.f32 %v512, %v44
  %v593 = vadd.f32 %v417, %v529
  %v594 = vadd.f32 %v418, %v530
  %v595 = vadd.f32 %v419, %v531
  %v596 = vadd.f32 %v420, %v532
  %v597 = vadd.f32 %v421, %v533
  %v598 = vadd.f32 %v422, %v534
  %v599 = vadd.f32 %v423, %v535
  %v600 = vadd.f32 %v424, %v536
  %v601 = vadd.f32 %v425, %v537
  %v602 = vadd.f32 %v426, %v538
  %v603 = vadd.f32 %v427, %v539
  %v604 = vadd.f32 %v428, %v540
  %v605 = vadd.f32 %v429, %v541
  %v606 = vadd.f32 %v430, %v542
  %v607 = vadd.f32 %v431, %v543
  %v608 = vadd.f32 %v432, %v544
  %v609 = vadd.f32 %v433, %v545
  %v610 = vadd.f32 %v434, %v546
  %v611 = vadd.f32 %v435, %v547
  %v612 = vadd.f32 %v436, %v548
  %v613 = vadd.f32 %v437, %v549
  %v614 = vadd.f32 %v438, %v550
  %v615 = vadd.f32 %v439, %v551
  %v616 = vadd.f32 %v440, %v552
  %v617 = vadd.f32 %v441, %v553
  %v618 = vadd.f32 %v442, %v554
  %v619 = vadd.f32 %v443, %v555
  %v620 = vadd.f32 %v444, %v556
  %v621 = vadd.f32 %v445, %v557
  %v622 = vadd.f32 %v446, %v558
  %v623 = vadd.f32 %v447, %v559
  %v624 = vadd.f32 %v448, %v560
  %v625 = vadd.f32 %v449, %v561
  %v626 = vadd.f32 %v450, %v562
  %v627 = vadd.f32 %v451, %v563
  %v628 = vadd.f32 %v452, %v564
  %v629 = vadd.f32 %v453, %v565
  %v630 = vadd.f32 %v454, %v566
  %v631 = vadd.f32 %v455, %v567
  %v632 = vadd.f32 %v456, %v568
  %v633 = vadd.f32 %v457, %v569
  %v634 = vadd.f32 %v458, %v570
  %v635 = vadd.f32 %v459, %v571
  %v636 = vadd.f32 %v460, %v572
  %v637 = vadd.f32 %v461, %v573
  %v638 = vadd.f32 %v462, %v574
  %v639 = vadd.f32 %v463, %v575
  %v640 = vadd.f32 %v464, %v576
  %v641 = vadd.f32 %v465, %v577
  %v642 = vadd.f32 %v466, %v578
  %v643 = vadd.f32 %v467, %v579
  %v644 = vadd.f32 %v468, %v580
  %v645 = vadd.f32 %v469, %v581
  %v646 = vadd.f32 %v470, %v582
  %v647 = vadd.f32 %v471, %v583
  %v648 = vadd.f32 %v472, %v584
  %v649 = vadd.f32 %v473, %v585
  %v650 = vadd.f32 %v474, %v586
  %v651 = vadd.f32 %v475, %v587
  %v652 = vadd.f32 %v476, %v588
  %v653 = vadd.f32 %v477, %v589
  %v654 = vadd.f32 %v478, %v590
  %v655 = vadd.f32 %v479, %v591
  %v656 = vadd.f32 %v480, %v592
  %v659 = vrot.slane %v23, 1
  %v660 = vrot.slane %v23, 2
  %v661 = vrot.slane %v23, 3
  %v662 = vrot.slane %v23, 4
  %v663 = vrot.slane %v23, 5
  %v664 = vrot.slane %v23, 6
  %v665 = vrot.slane %v23, 7
  %v666 = vrot.slane %v24, 1
  %v667 = vrot.slane %v24, 2
  %v668 = vrot.slane %v24, 3
  %v669 = vrot.slane %v24, 4
  %v670 = vrot.slane %v24, 5
  %v671 = vrot.slane %v24, 6
  %v672 = vrot.slane %v24, 7
  %v673 = vperm.slane %v23, 0
  %v674 = vperm.slane %v659, 0
  %v675 = vperm.slane %v660, 0
  %v676 = vperm.slane %v661, 0
  %v677 = vperm.slane %v662, 0
  %v678 = vperm.slane %v663, 0
  %v679 = vperm.slane %v664, 0
  %v680 = vperm.slane %v665, 0
  %v681 = vperm.slane %v24, 0
  %v682 = vperm.slane %v666, 0
  %v683 = vperm.slane %v667, 0
  %v684 = vperm.slane %v668, 0
  %v685 = vperm.slane %v669, 0
  %v686 = vperm.slane %v670, 0
  %v687 = vperm.slane %v671, 0
  %v688 = vperm.slane %v672, 0
  %v705 = vmul.f32 %v673, %v45
  %v706 = vmul.f32 %v673, %v46
  %v707 = vmul.f32 %v673, %v47
  %v708 = vmul.f32 %v673, %v48
  %v709 = vmul.f32 %v674, %v45
  %v710 = vmul.f32 %v674, %v46
  %v711 = vmul.f32 %v674, %v47
  %v712 = vmul.f32 %v674, %v48
  %v713 = vmul.f32 %v675, %v45
  %v714 = vmul.f32 %v675, %v46
  %v715 = vmul.f32 %v675, %v47
  %v716 = vmul.f32 %v675, %v48
  %v717 = vmul.f32 %v676, %v45
  %v718 = vmul.f32 %v676, %v46
  %v719 = vmul.f32 %v676, %v47
  %v720 = vmul.f32 %v676, %v48
  %v721 = vmul.f32 %v677, %v45
  %v722 = vmul.f32 %v677, %v46
  %v723 = vmul.f32 %v677, %v47
  %v724 = vmul.f32 %v677, %v48
  %v725 = vmul.f32 %v678, %v45
  %v726 = vmul.f32 %v678, %v46
  %v727 = vmul.f32 %v678, %v47
  %v728 = vmul.f32 %v678, %v48
  %v729 = vmul.f32 %v679, %v45
  %v730 = vmul.f32 %v679, %v46
  %v731 = vmul.f32 %v679, %v47
  %v732 = vmul.f32 %v679, %v48
  %v733 = vmul.f32 %v680, %v45
  %v734 = vmul.f32 %v680, %v46
  %v735 = vmul.f32 %v680, %v47
  %v736 = vmul.f32 %v680, %v48
  %v737 = vmul.f32 %v681, %v45
  %v738 = vmul.f32 %v681, %v46
  %v739 = vmul.f32 %v681, %v47
  %v740 = vmul.f32 %v681, %v48
  %v741 = vmul.f32 %v682, %v45
  %v742 = vmul.f32 %v682, %v46
  %v743 = vmul.f32 %v682, %v47
  %v744 = vmul.f32 %v682, %v48
  %v745 = vmul.f32 %v683, %v45
  %v746 = vmul.f32 %v683, %v46
  %v747 = vmul.f32 %v683, %v47
  %v748 = vmul.f32 %v683, %v48
  %v749 = vmul.f32 %v684, %v45
  %v750 = vmul.f32 %v684, %v46
  %v751 = vmul.f32 %v684, %v47
  %v752 = vmul.f32 %v684, %v48
  %v753 = vmul.f32 %v685, %v45
  %v754 = vmul.f32 %v685, %v46
  %v755 = vmul.f32 %v685, %v47
  %v756 = vmul.f32 %v685, %v48
  %v757 = vmul.f32 %v686, %v45
  %v758 = vmul.f32 %v686, %v46
  %v759 = vmul.f32 %v686, %v47
  %v760 = vmul.f32 %v686, %v48
  %v761 = vmul.f32 %v687, %v45
  %v762 = vmul.f32 %v687, %v46
  %v763 = vmul.f32 %v687, %v47
  %v764 = vmul.f32 %v687, %v48
  %v765 = vmul.f32 %v688, %v45
  %v766 = vmul.f32 %v688, %v46
  %v767 = vmul.f32 %v688, %v47
  %v768 = vmul.f32 %v688, %v48
  %v769 = vadd.f32 %v593, %v705
  %v770 = vadd.f32 %v594, %v706
  %v771 = vadd.f32 %v595, %v707
  %v772 = vadd.f32 %v596, %v708
  %v773 = vadd.f32 %v597, %v709
  %v774 = vadd.f32 %v598, %v710
  %v775 = vadd.f32 %v599, %v711
  %v776 = vadd.f32 %v600, %v712
  %v777 = vadd.f32 %v601, %v713
  %v778 = vadd.f32 %v602, %v714
  %v779 = vadd.f32 %v603, %v715
  %v780 = vadd.f32 %v604, %v716
  %v781 = vadd.f32 %v605, %v717
  %v782 = vadd.f32 %v606, %v718
  %v783 = vadd.f32 %v607, %v719
  %v784 = vadd.f32 %v608, %v720
  %v785 = vadd.f32 %v609, %v721
  %v786 = vadd.f32 %v610, %v722
  %v787 = vadd.f32 %v611, %v723
  %v788 = vadd.f32 %v612, %v724
  %v789 = vadd.f32 %v613, %v725
  %v790 = vadd.f32 %v614, %v726
  %v791 = vadd.f32 %v615, %v727
  %v792 = vadd.f32 %v616, %v728
  %v793 = vadd.f32 %v617, %v729
  %v794 = vadd.f32 %v618, %v730
  %v795 = vadd.f32 %v619, %v731
  %v796 = vadd.f32 %v620, %v732
  %v797 = vadd.f32 %v621, %v733
  %v798 = vadd.f32 %v622, %v734
  %v799 = vadd.f32 %v623, %v735
  %v800 = vadd.f32 %v624, %v736
  %v801 = vadd.f32 %v625, %v737
  %v802 = vadd.f32 %v626, %v738
  %v803 = vadd.f32 %v627, %v739
  %v804 = vadd.f32 %v628, %v740
  %v805 = vadd.f32 %v629, %v741
  %v806 = vadd.f32 %v630, %v742
  %v807 = vadd.f32 %v631, %v743
  %v808 = vadd.f32 %v632, %v744
  %v809 = vadd.f32 %v633, %v745
  %v810 = vadd.f32 %v634, %v746
  %v811 = vadd.f32 %v635, %v747
  %v812 = vadd.f32 %v636, %v748
  %v813 = vadd.f32 %v637, %v749
  %v814 = vadd.f32 %v638, %v750
  %v815 = vadd.f32 %v639, %v751
  %v816 = vadd.f32 %v640, %v752
  %v817 = vadd.f32 %v641, %v753
  %v818 = vadd.f32 %v642, %v754
  %v819 = vadd.f32 %v643, %v755
  %v820 = vadd.f32 %v644, %v756
  %v821 = vadd.f32 %v645, %v757
  %v822 = vadd.f32 %v646, %v758
  %v823 = vadd.f32 %v647, %v759
  %v824 = vadd.f32 %v648, %v760
  %v825 = vadd.f32 %v649, %v761
  %v826 = vadd.f32 %v650, %v762
  %v827 = vadd.f32 %v651, %v763
  %v828 = vadd.f32 %v652, %v764
  %v829 = vadd.f32 %v653, %v765
  %v830 = vadd.f32 %v654, %v766
  %v831 = vadd.f32 %v655, %v767
  %v832 = vadd.f32 %v656, %v768
  %v835 = vrot.slane %v25, 1
  %v836 = vrot.slane %v25, 2
  %v837 = vrot.slane %v25, 3
  %v838 = vrot.slane %v25, 4
  %v839 = vrot.slane %v25, 5
  %v840 = vrot.slane %v25, 6
  %v841 = vrot.slane %v25, 7
  %v842 = vrot.slane %v26, 1
  %v843 = vrot.slane %v26, 2
  %v844 = vrot.slane %v26, 3
  %v845 = vrot.slane %v26, 4
  %v846 = vrot.slane %v26, 5
  %v847 = vrot.slane %v26, 6
  %v848 = vrot.slane %v26, 7
  %v849 = vperm.slane %v25, 0
  %v850 = vperm.slane %v835, 0
  %v851 = vperm.slane %v836, 0
  %v852 = vperm.slane %v837, 0
  %v853 = vperm.slane %v838, 0
  %v854 = vperm.slane %v839, 0
  %v855 = vperm.slane %v840, 0
  %v856 = vperm.slane %v841, 0
  %v857 = vperm.slane %v26, 0
  %v858 = vperm.slane %v842, 0
  %v859 = vperm.slane %v843, 0
  %v860 = vperm.slane %v844, 0
  %v861 = vperm.slane %v845, 0
  %v862 = vperm.slane %v846, 0
  %v863 = vperm.slane %v847, 0
  %v864 = vperm.slane %v848, 0
  %v881 = vmul.f32 %v849, %v49
  %v882 = vmul.f32 %v849, %v50
  %v883 = vmul.f32 %v849, %v51
  %v884 = vmul.f32 %v849, %v52
  %v885 = vmul.f32 %v850, %v49
  %v886 = vmul.f32 %v850, %v50
  %v887 = vmul.f32 %v850, %v51
  %v888 = vmul.f32 %v850, %v52
  %v889 = vmul.f32 %v851, %v49
  %v890 = vmul.f32 %v851, %v50
  %v891 = vmul.f32 %v851, %v51
  %v892 = vmul.f32 %v851, %v52
  %v893 = vmul.f32 %v852, %v49
  %v894 = vmul.f32 %v852, %v50
  %v895 = vmul.f32 %v852, %v51
  %v896 = vmul.f32 %v852, %v52
  %v897 = vmul.f32 %v853, %v49
  %v898 = vmul.f32 %v853, %v50
  %v899 = vmul.f32 %v853, %v51
  %v900 = vmul.f32 %v853, %v52
  %v901 = vmul.f32 %v854, %v49
  %v902 = vmul.f32 %v854, %v50
  %v903 = vmul.f32 %v854, %v51
  %v904 = vmul.f32 %v854, %v52
  %v905 = vmul.f32 %v855, %v49
  %v906 = vmul.f32 %v855, %v50
  %v907 = vmul.f32 %v855, %v51
  %v908 = vmul.f32 %v855, %v52
  %v909 = vmul.f32 %v856, %v49
  %v910 = vmul.f32 %v856, %v50
  %v911 = vmul.f32 %v856, %v51
  %v912 = vmul.f32 %v856, %v52
  %v913 = vmul.f32 %v857, %v49
  %v914 = vmul.f32 %v857, %v50
  %v915 = vmul.f32 %v857, %v51
  %v916 = vmul.f32 %v857, %v52
  %v917 = vmul.f32 %v858, %v49
  %v918 = vmul.f32 %v858, %v50
  %v919 = vmul.f32 %v858, %v51
  %v920 = vmul.f32 %v858, %v52
  %v921 = vmul.f32 %v859, %v49
  %v922 = vmul.f32 %v859, %v50
  %v923 = vmul.f32 %v859, %v51
  %v924 = vmul.f32 %v859, %v52
  %v925 = vmul.f32 %v860, %v49
  %v926 = vmul.f32 %v860, %v50
  %v927 = vmul.f32 %v860, %v51
  %v928 = vmul.f32 %v860, %v52
  %v929 = vmul.f32 %v861, %v49
  %v930 = vmul.f32 %v861, %v50
  %v931 = vmul.f32 %v861, %v51
  %v932 = vmul.f32 %v861, %v52
  %v933 = vmul.f32 %v862, %v49
  %v934 = vmul.f32 %v862, %v50
  %v935 = vmul.f32 %v862, %v51
  %v936 = vmul.f32 %v862, %v52
  %v937 = vmul.f32 %v863, %v49
  %v938 = vmul.f32 %v863, %v50
  %v939 = vmul.f32 %v863, %v51
  %v940 = vmul.f32 %v863, %v52
  %v941 = vmul.f32 %v864, %v49
  %v942 = vmul.f32 %v864, %v50
  %v943 = vmul.f32 %v864, %v51
  %v944 = vmul.f32 %v864, %v52
  %v945 = vadd.f32 %v769, %v881
  %v946 = vadd.f32 %v770, %v882
  %v947 = vadd.f32 %v771, %v883
  %v948 = vadd.f32 %v772, %v884
  %v949 = vadd.f32 %v773, %v885
  %v950 = vadd.f32 %v774, %v886
  %v951 = vadd.f32 %v775, %v887
  %v952 = vadd.f32 %v776, %v888
  %v953 = vadd.f32 %v777, %v889
  %v954 = vadd.f32 %v778, %v890
  %v955 = vadd.f32 %v779, %v891
  %v956 = vadd.f32 %v780, %v892
  %v957 = vadd.f32 %v781, %v893
  %v958 = vadd.f32 %v782, %v894
  %v959 = vadd.f32 %v783, %v895
  %v960 = vadd.f32 %v784, %v896
  %v961 = vadd.f32 %v785, %v897
  %v962 = vadd.f32 %v786, %v898
  %v963 = vadd.f32 %v787, %v899
  %v964 = vadd.f32 %v788, %v900
  %v965 = vadd.f32 %v789, %v901
  %v966 = vadd.f32 %v790, %v902
  %v967 = vadd.f32 %v791, %v903
  %v968 = vadd.f32 %v792, %v904
  %v969 = vadd.f32 %v793, %v905
  %v970 = vadd.f32 %v794, %v906
  %v971 = vadd.f32 %v795, %v907
  %v972 = vadd.f32 %v796, %v908
  %v973 = vadd.f32 %v797, %v909
  %v974 = vadd.f32 %v798, %v910
  %v975 = vadd.f32 %v799, %v911
  %v976 = vadd.f32 %v800, %v912
  %v977 = vadd.f32 %v801, %v913
  %v978 = vadd.f32 %v802, %v914
  %v979 = vadd.f32 %v803, %v915
  %v980 = vadd.f32 %v804, %v916
  %v981 = vadd.f32 %v805, %v917
  %v982 = vadd.f32 %v806, %v918
  %v983 = vadd.f32 %v807, %v919
  %v984 = vadd.f32 %v808, %v920
  %v985 = vadd.f32 %v809, %v921
  %v986 = vadd.f32 %v810, %v922
  %v987 = vadd.f32 %v811, %v923
  %v988 = vadd.f32 %v812, %v924
  %v989 = vadd.f32 %v813, %v925
  %v990 = vadd.f32 %v814, %v926
  %v991 = vadd.f32 %v815, %v927
  %v992 = vadd.f32 %v816, %v928
  %v993 = vadd.f32 %v817, %v929
  %v994 = vadd.f32 %v818, %v930
  %v995 = vadd.f32 %v819, %v931
  %v996 = vadd.f32 %v820, %v932
  %v997 = vadd.f32 %v821, %v933
  %v998 = vadd.f32 %v822, %v934
  %v999 = vadd.f32 %v823, %v935
  %v1000 = vadd.f32 %v824, %v936
  %v1001 = vadd.f32 %v825, %v937
  %v1002 = vadd.f32 %v826, %v938
  %v1003 = vadd.f32 %v827, %v939
  %v1004 = vadd.f32 %v828, %v940
  %v1005 = vadd.f32 %v829, %v941
  %v1006 = vadd.f32 %v830, %v942
  %v1007 = vadd.f32 %v831, %v943
  %v1008 = vadd.f32 %v832, %v944
  %v1011 = vrot.slane %v27, 1
  %v1012 = vrot.slane %v27, 2
  %v1013 = vrot.slane %v27, 3
  %v1014 = vrot.slane %v27, 4
  %v1015 = vrot.slane %v27, 5
  %v1016 = vrot.slane %v27, 6
  %v1017 = vrot.slane %v27, 7
  %v1018 = vrot.slane %v28, 1
  %v1019 = vrot.slane %v28, 2
  %v1020 = vrot.slane %v28, 3
  %v1021 = vrot.slane %v28, 4
  %v1022 = vrot.slane %v28, 5
  %v1023 = vrot.slane %v28, 6
  %v1024 = vrot.slane %v28, 7
  %v1025 = vperm.slane %v27, 0
  %v1026 = vperm.slane %v1011, 0
  %v1027 = vperm.slane %v1012, 0
  %v1028 = vperm.slane %v1013, 0
  %v1029 = vperm.slane %v1014, 0
  %v1030 = vperm.slane %v1015, 0
  %v1031 = vperm.slane %v1016, 0
  %v1032 = vperm.slane %v1017, 0
  %v1033 = vperm.slane %v28, 0
  %v1034 = vperm.slane %v1018, 0
  %v1035 = vperm.slane %v1019, 0
  %v1036 = vperm.slane %v1020, 0
  %v1037 = vperm.slane %v1021, 0
  %v1038 = vperm.slane %v1022, 0
  %v1039 = vperm.slane %v1023, 0
  %v1040 = vperm.slane %v1024, 0
  %v1057 = vmul.f32 %v1025, %v53
  %v1058 = vmul.f32 %v1025, %v54
  %v1059 = vmul.f32 %v1025, %v55
  %v1060 = vmul.f32 %v1025, %v56
  %v1061 = vmul.f32 %v1026, %v53
  %v1062 = vmul.f32 %v1026, %v54
  %v1063 = vmul.f32 %v1026, %v55
  %v1064 = vmul.f32 %v1026, %v56
  %v1065 = vmul.f32 %v1027, %v53
  %v1066 = vmul.f32 %v1027, %v54
  %v1067 = vmul.f32 %v1027, %v55
  %v1068 = vmul.f32 %v1027, %v56
  %v1069 = vmul.f32 %v1028, %v53
  %v1070 = vmul.f32 %v1028, %v54
  %v1071 = vmul.f32 %v1028, %v55
  %v1072 = vmul.f32 %v1028, %v56
  %v1073 = vmul.f32 %v1029, %v53
  %v1074 = vmul.f32 %v1029, %v54
  %v1075 = vmul.f32 %v1029, %v55
  %v1076 = vmul.f32 %v1029, %v56
  %v1077 = vmul.f32 %v1030, %v53
  %v1078 = vmul.f32 %v1030, %v54
  %v1079 = vmul.f32 %v1030, %v55
  %v1080 = vmul.f32 %v1030, %v56
  %v1081 = vmul.f32 %v1031, %v53
  %v1082 = vmul.f32 %v1031, %v54
  %v1083 = vmul.f32 %v1031, %v55
  %v1084 = vmul.f32 %v1031, %v56
  %v1085 = vmul.f32 %v1032, %v53
  %v1086 = vmul.f32 %v1032, %v54
  %v1087 = vmul.f32 %v1032, %v55
  %v1088 = vmul.f32 %v1032, %v56
  %v1089 = vmul.f32 %v1033, %v53
  %v1090 = vmul.f32 %v1033, %v54
  %v1091 = vmul.f32 %v1033, %v55
  %v1092 = vmul.f32 %v1033, %v56
  %v1093 = vmul.f32 %v1034, %v53
  %v1094 = vmul.f32 %v1034, %v54
  %v1095 = vmul.f32 %v1034, %v55
  %v1096 = vmul.f32 %v1034, %v56
  %v1097 = vmul.f32 %v1035, %v53
  %v1098 = vmul.f32 %v1035, %v54
  %v1099 = vmul.f32 %v1035, %v55
  %v1100 = vmul.f32 %v1035, %v56
  %v1101 = vmul.f32 %v1036, %v53
  %v1102 = vmul.f32 %v1036, %v54
  %v1103 = vmul.f32 %v1036, %v55
  %v1104 = vmul.f32 %v1036, %v56
  %v1105 = vmul.f32 %v1037, %v53
  %v1106 = vmul.f32 %v1037, %v54
  %v1107 = vmul.f32 %v1037, %v55
  %v1108 = vmul.f32 %v1037, %v56
  %v1109 = vmul.f32 %v1038, %v53
  %v1110 = vmul.f32 %v1038, %v54
  %v1111 = vmul.f32 %v1038, %v55
  %v1112 = vmul.f32 %v1038, %v56
  %v1113 = vmul.f32 %v1039, %v53
  %v1114 = vmul.f32 %v1039, %v54
  %v1115 = vmul.f32 %v1039, %v55
  %v1116 = vmul.f32 %v1039, %v56
  %v1117 = vmul.f32 %v1040, %v53
  %v1118 = vmul.f32 %v1040, %v54
  %v1119 = vmul.f32 %v1040, %v55
  %v1120 = vmul.f32 %v1040, %v56
  %v1121 = vadd.f32 %v945, %v1057
  %v1122 = vadd.f32 %v946, %v1058
  %v1123 = vadd.f32 %v947, %v1059
  %v1124 = vadd.f32 %v948, %v1060
  %v1125 = vadd.f32 %v949, %v1061
  %v1126 = vadd.f32 %v950, %v1062
  %v1127 = vadd.f32 %v951, %v1063
  %v1128 = vadd.f32 %v952, %v1064
  %v1129 = vadd.f32 %v953, %v1065
  %v1130 = vadd.f32 %v954, %v1066
  %v1131 = vadd.f32 %v955, %v1067
  %v1132 = vadd.f32 %v956, %v1068
  %v1133 = vadd.f32 %v957, %v1069
  %v1134 = vadd.f32 %v958, %v1070
  %v1135 = vadd.f32 %v959, %v1071
  %v1136 = vadd.f32 %v960, %v1072
  %v1137 = vadd.f32 %v961, %v1073
  %v1138 = vadd.f32 %v962, %v1074
  %v1139 = vadd.f32 %v963, %v1075
  %v1140 = vadd.f32 %v964, %v1076
  %v1141 = vadd.f32 %v965, %v1077
  %v1142 = vadd.f32 %v966, %v1078
  %v1143 = vadd.f32 %v967, %v1079
  %v1144 = vadd.f32 %v968, %v1080
  %v1145 = vadd.f32 %v969, %v1081
  %v1146 = vadd.f32 %v970, %v1082
  %v1147 = vadd.f32 %v971, %v1083
  %v1148 = vadd.f32 %v972, %v1084
  %v1149 = vadd.f32 %v973, %v1085
  %v1150 = vadd.f32 %v974, %v1086
  %v1151 = vadd.f32 %v975, %v1087
  %v1152 = vadd.f32 %v976, %v1088
  %v1153 = vadd.f32 %v977, %v1089
  %v1154 = vadd.f32 %v978, %v1090
  %v1155 = vadd.f32 %v979, %v1091
  %v1156 = vadd.f32 %v980, %v1092
  %v1157 = vadd.f32 %v981, %v1093
  %v1158 = vadd.f32 %v982, %v1094
  %v1159 = vadd.f32 %v983, %v1095
  %v1160 = vadd.f32 %v984, %v1096
  %v1161 = vadd.f32 %v985, %v1097
  %v1162 = vadd.f32 %v986, %v1098
  %v1163 = vadd.f32 %v987, %v1099
  %v1164 = vadd.f32 %v988, %v1100
  %v1165 = vadd.f32 %v989, %v1101
  %v1166 = vadd.f32 %v990, %v1102
  %v1167 = vadd.f32 %v991, %v1103
  %v1168 = vadd.f32 %v992, %v1104
  %v1169 = vadd.f32 %v993, %v1105
  %v1170 = vadd.f32 %v994, %v1106
  %v1171 = vadd.f32 %v995, %v1107
  %v1172 = vadd.f32 %v996, %v1108
  %v1173 = vadd.f32 %v997, %v1109
  %v1174 = vadd.f32 %v998, %v1110
  %v1175 = vadd.f32 %v999, %v1111
  %v1176 = vadd.f32 %v1000, %v1112
  %v1177 = vadd.f32 %v1001, %v1113
  %v1178 = vadd.f32 %v1002, %v1114
  %v1179 = vadd.f32 %v1003, %v1115
  %v1180 = vadd.f32 %v1004, %v1116
  %v1181 = vadd.f32 %v1005, %v1117
  %v1182 = vadd.f32 %v1006, %v1118
  %v1183 = vadd.f32 %v1007, %v1119
  %v1184 = vadd.f32 %v1008, %v1120
  %v1187 = vrot.slane %v29, 1
  %v1188 = vrot.slane %v29, 2
  %v1189 = vrot.slane %v29, 3
  %v1190 = vrot.slane %v29, 4
  %v1191 = vrot.slane %v29, 5
  %v1192 = vrot.slane %v29, 6
  %v1193 = vrot.slane %v29, 7
  %v1194 = vrot.slane %v30, 1
  %v1195 = vrot.slane %v30, 2
  %v1196 = vrot.slane %v30, 3
  %v1197 = vrot.slane %v30, 4
  %v1198 = vrot.slane %v30, 5
  %v1199 = vrot.slane %v30, 6
  %v1200 = vrot.slane %v30, 7
  %v1201 = vperm.slane %v29, 0
  %v1202 = vperm.slane %v1187, 0
  %v1203 = vperm.slane %v1188, 0
  %v1204 = vperm.slane %v1189, 0
  %v1205 = vperm.slane %v1190, 0
  %v1206 = vperm.slane %v1191, 0
  %v1207 = vperm.slane %v1192, 0
  %v1208 = vperm.slane %v1193, 0
  %v1209 = vperm.slane %v30, 0
  %v1210 = vperm.slane %v1194, 0
  %v1211 = vperm.slane %v1195, 0
  %v1212 = vperm.slane %v1196, 0
  %v1213 = vperm.slane %v1197, 0
  %v1214 = vperm.slane %v1198, 0
  %v1215 = vperm.slane %v1199, 0
  %v1216 = vperm.slane %v1200, 0
  %v1233 = vmul.f32 %v1201, %v57
  %v1234 = vmul.f32 %v1201, %v58
  %v1235 = vmul.f32 %v1201, %v59
  %v1236 = vmul.f32 %v1201, %v60
  %v1237 = vmul.f32 %v1202, %v57
  %v1238 = vmul.f32 %v1202, %v58
  %v1239 = vmul.f32 %v1202, %v59
  %v1240 = vmul.f32 %v1202, %v60
  %v1241 = vmul.f32 %v1203, %v57
  %v1242 = vmul.f32 %v1203, %v58
  %v1243 = vmul.f32 %v1203, %v59
  %v1244 = vmul.f32 %v1203, %v60
  %v1245 = vmul.f32 %v1204, %v57
  %v1246 = vmul.f32 %v1204, %v58
  %v1247 = vmul.f32 %v1204, %v59
  %v1248 = vmul.f32 %v1204, %v60
  %v1249 = vmul.f32 %v1205, %v57
  %v1250 = vmul.f32 %v1205, %v58
  %v1251 = vmul.f32 %v1205, %v59
  %v1252 = vmul.f32 %v1205, %v60
  %v1253 = vmul.f32 %v1206, %v57
  %v1254 = vmul.f32 %v1206, %v58
  %v1255 = vmul.f32 %v1206, %v59
  %v1256 = vmul.f32 %v1206, %v60
  %v1257 = vmul.f32 %v1207, %v57
  %v1258 = vmul.f32 %v1207, %v58
  %v1259 = vmul.f32 %v1207, %v59
  %v1260 = vmul.f32 %v1207, %v60
  %v1261 = vmul.f32 %v1208, %v57
  %v1262 = vmul.f32 %v1208, %v58
  %v1263 = vmul.f32 %v1208, %v59
  %v1264 = vmul.f32 %v1208, %v60
  %v1265 = vmul.f32 %v1209, %v57
  %v1266 = vmul.f32 %v1209, %v58
  %v1267 = vmul.f32 %v1209, %v59
  %v1268 = vmul.f32 %v1209, %v60
  %v1269 = vmul.f32 %v1210, %v57
  %v1270 = vmul.f32 %v1210, %v58
  %v1271 = vmul.f32 %v1210, %v59
  %v1272 = vmul.f32 %v1210, %v60
  %v1273 = vmul.f32 %v1211, %v57
  %v1274 = vmul.f32 %v1211, %v58
  %v1275 = vmul.f32 %v1211, %v59
  %v1276 = vmul.f32 %v1211, %v60
  %v1277 = vmul.f32 %v1212, %v57
  %v1278 = vmul.f32 %v1212, %v58
  %v1279 = vmul.f32 %v1212, %v59
  %v1280 = vmul.f32 %v1212, %v60
  %v1281 = vmul.f32 %v1213, %v57
  %v1282 = vmul.f32 %v1213, %v58
  %v1283 = vmul.f32 %v1213, %v59
  %v1284 = vmul.f32 %v1213, %v60
  %v1285 = vmul.f32 %v1214, %v57
  %v1286 = vmul.f32 %v1214, %v58
  %v1287 = vmul.f32 %v1214, %v59
  %v1288 = vmul.f32 %v1214, %v60
  %v1289 = vmul.f32 %v1215, %v57
  %v1290 = vmul.f32 %v1215, %v58
  %v1291 = vmul.f32 %v1215, %v59
  %v1292 = vmul.f32 %v1215, %v60
  %v1293 = vmul.f32 %v1216, %v57
  %v1294 = vmul.f32 %v1216, %v58
  %v1295 = vmul.f32 %v1216, %v59
  %v1296 = vmul.f32 %v1216, %v60
  %v1297 = vadd.f32 %v1121, %v1233
  %v1298 = vadd.f32 %v1122, %v1234
  %v1299 = vadd.f32 %v1123, %v1235
  %v1300 = vadd.f32 %v1124, %v1236
  %v1301 = vadd.f32 %v1125, %v1237
  %v1302 = vadd.f32 %v1126, %v1238
  %v1303 = vadd.f32 %v1127, %v1239
  %v1304 = vadd.f32 %v1128, %v1240
  %v1305 = vadd.f32 %v1129, %v1241
  %v1306 = vadd.f32 %v1130, %v1242
  %v1307 = vadd.f32 %v1131, %v1243
  %v1308 = vadd.f32 %v1132, %v1244
  %v1309 = vadd.f32 %v1133, %v1245
  %v1310 = vadd.f32 %v1134, %v1246
  %v1311 = vadd.f32 %v1135, %v1247
  %v1312 = vadd.f32 %v1136, %v1248
  %v1313 = vadd.f32 %v1137, %v1249
  %v1314 = vadd.f32 %v1138, %v1250
  %v1315 = vadd.f32 %v1139, %v1251
  %v1316 = vadd.f32 %v1140, %v1252
  %v1317 = vadd.f32 %v1141, %v1253
  %v1318 = vadd.f32 %v1142, %v1254
  %v1319 = vadd.f32 %v1143, %v1255
  %v1320 = vadd.f32 %v1144, %v1256
  %v1321 = vadd.f32 %v1145, %v1257
  %v1322 = vadd.f32 %v1146, %v1258
  %v1323 = vadd.f32 %v1147, %v1259
  %v1324 = vadd.f32 %v1148, %v1260
  %v1325 = vadd.f32 %v1149, %v1261
  %v1326 = vadd.f32 %v1150, %v1262
  %v1327 = vadd.f32 %v1151, %v1263
  %v1328 = vadd.f32 %v1152, %v1264
  %v1329 = vadd.f32 %v1153, %v1265
  %v1330 = vadd.f32 %v1154, %v1266
  %v1331 = vadd.f32 %v1155, %v1267
  %v1332 = vadd.f32 %v1156, %v1268
  %v1333 = vadd.f32 %v1157, %v1269
  %v1334 = vadd.f32 %v1158, %v1270
  %v1335 = vadd.f32 %v1159, %v1271
  %v1336 = vadd.f32 %v1160, %v1272
  %v1337 = vadd.f32 %v1161, %v1273
  %v1338 = vadd.f32 %v1162, %v1274
  %v1339 = vadd.f32 %v1163, %v1275
  %v1340 = vadd.f32 %v1164, %v1276
  %v1341 = vadd.f32 %v1165, %v1277
  %v1342 = vadd.f32 %v1166, %v1278
  %v1343 = vadd.f32 %v1167, %v1279
  %v1344 = vadd.f32 %v1168, %v1280
  %v1345 = vadd.f32 %v1169, %v1281
  %v1346 = vadd.f32 %v1170, %v1282
  %v1347 = vadd.f32 %v1171, %v1283
  %v1348 = vadd.f32 %v1172, %v1284
  %v1349 = vadd.f32 %v1173, %v1285
  %v1350 = vadd.f32 %v1174, %v1286
  %v1351 = vadd.f32 %v1175, %v1287
  %v1352 = vadd.f32 %v1176, %v1288
  %v1353 = vadd.f32 %v1177, %v1289
  %v1354 = vadd.f32 %v1178, %v1290
  %v1355 = vadd.f32 %v1179, %v1291
  %v1356 = vadd.f32 %v1180, %v1292
  %v1357 = vadd.f32 %v1181, %v1293
  %v1358 = vadd.f32 %v1182, %v1294
  %v1359 = vadd.f32 %v1183, %v1295
  %v1360 = vadd.f32 %v1184, %v1296
  %v1363 = vrot.slane %v31, 1
  %v1364 = vrot.slane %v31, 2
  %v1365 = vrot.slane %v31, 3
  %v1366 = vrot.slane %v31, 4
  %v1367 = vrot.slane %v31, 5
  %v1368 = vrot.slane %v31, 6
  %v1369 = vrot.slane %v31, 7
  %v1370 = vrot.slane %v32, 1
  %v1371 = vrot.slane %v32, 2
  %v1372 = vrot.slane %v32, 3
  %v1373 = vrot.slane %v32, 4
  %v1374 = vrot.slane %v32, 5
  %v1375 = vrot.slane %v32, 6
  %v1376 = vrot.slane %v32, 7
  %v1377 = vperm.slane %v31, 0
  %v1378 = vperm.slane %v1363, 0
  %v1379 = vperm.slane %v1364, 0
  %v1380 = vperm.slane %v1365, 0
  %v1381 = vperm.slane %v1366, 0
  %v1382 = vperm.slane %v1367, 0
  %v1383 = vperm.slane %v1368, 0
  %v1384 = vperm.slane %v1369, 0
  %v1385 = vperm.slane %v32, 0
  %v1386 = vperm.slane %v1370, 0
  %v1387 = vperm.slane %v1371, 0
  %v1388 = vperm.slane %v1372, 0
  %v1389 = vperm.slane %v1373, 0
  %v1390 = vperm.slane %v1374, 0
  %v1391 = vperm.slane %v1375, 0
  %v1392 = vperm.slane %v1376, 0
  %v1409 = vmul.f32 %v1377, %v61
  %v1410 = vmul.f32 %v1377, %v62
  %v1411 = vmul.f32 %v1377, %v63
  %v1412 = vmul.f32 %v1377, %v64
  %v1413 = vmul.f32 %v1378, %v61
  %v1414 = vmul.f32 %v1378, %v62
  %v1415 = vmul.f32 %v1378, %v63
  %v1416 = vmul.f32 %v1378, %v64
  %v1417 = vmul.f32 %v1379, %v61
  %v1418 = vmul.f32 %v1379, %v62
  %v1419 = vmul.f32 %v1379, %v63
  %v1420 = vmul.f32 %v1379, %v64
  %v1421 = vmul.f32 %v1380, %v61
  %v1422 = vmul.f32 %v1380, %v62
  %v1423 = vmul.f32 %v1380, %v63
  %v1424 = vmul.f32 %v1380, %v64
  %v1425 = vmul.f32 %v1381, %v61
  %v1426 = vmul.f32 %v1381, %v62
  %v1427 = vmul.f32 %v1381, %v63
  %v1428 = vmul.f32 %v1381, %v64
  %v1429 = vmul.f32 %v1382, %v61
  %v1430 = vmul.f32 %v1382, %v62
  %v1431 = vmul.f32 %v1382, %v63
  %v1432 = vmul.f32 %v1382, %v64
  %v1433 = vmul.f32 %v1383, %v61
  %v1434 = vmul.f32 %v1383, %v62
  %v1435 = vmul.f32 %v1383, %v63
  %v1436 = vmul.f32 %v1383, %v64
  %v1437 = vmul.f32 %v1384, %v61
  %v1438 = vmul.f32 %v1384, %v62
  %v1439 = vmul.f32 %v1384, %v63
  %v1440 = vmul.f32 %v1384, %v64
  %v1441 = vmul.f32 %v1385, %v61
  %v1442 = vmul.f32 %v1385, %v62
  %v1443 = vmul.f32 %v1385, %v63
  %v1444 = vmul.f32 %v1385, %v64
  %v1445 = vmul.f32 %v1386, %v61
  %v1446 = vmul.f32 %v1386, %v62
  %v1447 = vmul.f32 %v1386, %v63
  %v1448 = vmul.f32 %v1386, %v64
  %v1449 = vmul.f32 %v1387, %v61
  %v1450 = vmul.f32 %v1387, %v62
  %v1451 = vmul.f32 %v1387, %v63
  %v1452 = vmul.f32 %v1387, %v64
  %v1453 = vmul.f32 %v1388, %v61
  %v1454 = vmul.f32 %v1388, %v62
  %v1455 = vmul.f32 %v1388, %v63
  %v1456 = vmul.f32 %v1388, %v64
  %v1457 = vmul.f32 %v1389, %v61
  %v1458 = vmul.f32 %v1389, %v62
  %v1459 = vmul.f32 %v1389, %v63
  %v1460 = vmul.f32 %v1389, %v64
  %v1461 = vmul.f32 %v1390, %v61
  %v1462 = vmul.f32 %v1390, %v62
  %v1463 = vmul.f32 %v1390, %v63
  %v1464 = vmul.f32 %v1390, %v64
  %v1465 = vmul.f32 %v1391, %v61
  %v1466 = vmul.f32 %v1391, %v62
  %v1467 = vmul.f32 %v1391, %v63
  %v1468 = vmul.f32 %v1391, %v64
  %v1469 = vmul.f32 %v1392, %v61
  %v1470 = vmul.f32 %v1392, %v62
  %v1471 = vmul.f32 %v1392, %v63
  %v1472 = vmul.f32 %v1392, %v64
  %v1473 = vadd.f32 %v1297, %v1409
  %v1474 = vadd.f32 %v1298, %v1410
  %v1475 = vadd.f32 %v1299, %v1411
  %v1476 = vadd.f32 %v1300, %v1412
  %v1477 = vadd.f32 %v1301, %v1413
  %v1478 = vadd.f32 %v1302, %v1414
  %v1479 = vadd.f32 %v1303, %v1415
  %v1480 = vadd.f32 %v1304, %v1416
  %v1481 = vadd.f32 %v1305, %v1417
  %v1482 = vadd.f32 %v1306, %v1418
  %v1483 = vadd.f32 %v1307, %v1419
  %v1484 = vadd.f32 %v1308, %v1420
  %v1485 = vadd.f32 %v1309, %v1421
  %v1486 = vadd.f32 %v1310, %v1422
  %v1487 = vadd.f32 %v1311, %v1423
  %v1488 = vadd.f32 %v1312, %v1424
  %v1489 = vadd.f32 %v1313, %v1425
  %v1490 = vadd.f32 %v1314, %v1426
  %v1491 = vadd.f32 %v1315, %v1427
  %v1492 = vadd.f32 %v1316, %v1428
  %v1493 = vadd.f32 %v1317, %v1429
  %v1494 = vadd.f32 %v1318, %v1430
  %v1495 = vadd.f32 %v1319, %v1431
  %v1496 = vadd.f32 %v1320, %v1432
  %v1497 = vadd.f32 %v1321, %v1433
  %v1498 = vadd.f32 %v1322, %v1434
  %v1499 = vadd.f32 %v1323, %v1435
  %v1500 = vadd.f32 %v1324, %v1436
  %v1501 = vadd.f32 %v1325, %v1437
  %v1502 = vadd.f32 %v1326, %v1438
  %v1503 = vadd.f32 %v1327, %v1439
  %v1504 = vadd.f32 %v1328, %v1440
  %v1505 = vadd.f32 %v1329, %v1441
  %v1506 = vadd.f32 %v1330, %v1442
  %v1507 = vadd.f32 %v1331, %v1443
  %v1508 = vadd.f32 %v1332, %v1444
  %v1509 = vadd.f32 %v1333, %v1445
  %v1510 = vadd.f32 %v1334, %v1446
  %v1511 = vadd.f32 %v1335, %v1447
  %v1512 = vadd.f32 %v1336, %v1448
  %v1513 = vadd.f32 %v1337, %v1449
  %v1514 = vadd.f32 %v1338, %v1450
  %v1515 = vadd.f32 %v1339, %v1451
  %v1516 = vadd.f32 %v1340, %v1452
  %v1517 = vadd.f32 %v1341, %v1453
  %v1518 = vadd.f32 %v1342, %v1454
  %v1519 = vadd.f32 %v1343, %v1455
  %v1520 = vadd.f32 %v1344, %v1456
  %v1521 = vadd.f32 %v1345, %v1457
  %v1522 = vadd.f32 %v1346, %v1458
  %v1523 = vadd.f32 %v1347, %v1459
  %v1524 = vadd.f32 %v1348, %v1460
  %v1525 = vadd.f32 %v1349, %v1461
  %v1526 = vadd.f32 %v1350, %v1462
  %v1527 = vadd.f32 %v1351, %v1463
  %v1528 = vadd.f32 %v1352, %v1464
  %v1529 = vadd.f32 %v1353, %v1465
  %v1530 = vadd.f32 %v1354, %v1466
  %v1531 = vadd.f32 %v1355, %v1467
  %v1532 = vadd.f32 %v1356, %v1468
  %v1533 = vadd.f32 %v1357, %v1469
  %v1534 = vadd.f32 %v1358, %v1470
  %v1535 = vadd.f32 %v1359, %v1471
  %v1536 = vadd.f32 %v1360, %v1472
  %v1537 = vld [vmem:[%s3] sm:$0xff]
  %v1538 = vld [vmem:[%s3 + $0x8] sm:$0xff]
  %v1539 = vld [vmem:[%s3 + $0x10] sm:$0xff]
  %v1540 = vld [vmem:[%s3 + $0x18] sm:$0xff]
  %v1541 = vld [vmem:[%s3 + $0x20] sm:$0xff]
  %v1542 = vld [vmem:[%s3 + $0x28] sm:$0xff]
  %v1543 = vld [vmem:[%s3 + $0x30] sm:$0xff]
  %v1544 = vld [vmem:[%s3 + $0x38] sm:$0xff]
  %v1545 = vld [vmem:[%s3 + $0x40] sm:$0xff]
  %v1546 = vld [vmem:[%s3 + $0x48] sm:$0xff]
  %v1547 = vld [vmem:[%s3 + $0x50] sm:$0xff]
  %v1548 = vld [vmem:[%s3 + $0x58] sm:$0xff]
  %v1549 = vld [vmem:[%s3 + $0x60] sm:$0xff]
  %v1550 = vld [vmem:[%s3 + $0x68] sm:$0xff]
  %v1551 = vld [vmem:[%s3 + $0x70] sm:$0xff]
  %v1552 = vld [vmem:[%s3 + $0x78] sm:$0xff]
  %v1553 = vld [vmem:[%s3 + $0x80] sm:$0xff]
  %v1554 = vld [vmem:[%s3 + $0x88] sm:$0xff]
  %v1555 = vld [vmem:[%s3 + $0x90] sm:$0xff]
  %v1556 = vld [vmem:[%s3 + $0x98] sm:$0xff]
  %v1557 = vld [vmem:[%s3 + $0xa0] sm:$0xff]
  %v1558 = vld [vmem:[%s3 + $0xa8] sm:$0xff]
  %v1559 = vld [vmem:[%s3 + $0xb0] sm:$0xff]
  %v1560 = vld [vmem:[%s3 + $0xb8] sm:$0xff]
  %v1561 = vld [vmem:[%s3 + $0xc0] sm:$0xff]
  %v1562 = vld [vmem:[%s3 + $0xc8] sm:$0xff]
  %v1563 = vld [vmem:[%s3 + $0xd0] sm:$0xff]
  %v1564 = vld [vmem:[%s3 + $0xd8] sm:$0xff]
  %v1565 = vld [vmem:[%s3 + $0xe0] sm:$0xff]
  %v1566 = vld [vmem:[%s3 + $0xe8] sm:$0xff]
  %v1567 = vld [vmem:[%s3 + $0xf0] sm:$0xff]
  %v1568 = vld [vmem:[%s3 + $0xf8] sm:$0xff]
  %v1569 = vperm.slane %v17, 0
  %v1570 = vperm.slane %v19, 0
  %v1571 = vperm.slane %v21, 0
  %v1572 = vperm.slane %v23, 0
  %v1573 = vperm.slane %v25, 0
  %v1574 = vperm.slane %v27, 0
  %v1575 = vperm.slane %v29, 0
  %v1576 = vperm.slane %v31, 0
  %v1577 = vmul.f32 %v1569, %v1473
  %v1578 = vmul.f32 %v1569, %v1474
  %v1579 = vmul.f32 %v1569, %v1475
  %v1580 = vmul.f32 %v1569, %v1476
  %v1581 = vmul.f32 %v1570, %v1473
  %v1582 = vmul.f32 %v1570, %v1474
  %v1583 = vmul.f32 %v1570, %v1475
  %v1584 = vmul.f32 %v1570, %v1476
  %v1585 = vmul.f32 %v1571, %v1473
  %v1586 = vmul.f32 %v1571, %v1474
  %v1587 = vmul.f32 %v1571, %v1475
  %v1588 = vmul.f32 %v1571, %v1476
  %v1589 = vmul.f32 %v1572, %v1473
  %v1590 = vmul.f32 %v1572, %v1474
  %v1591 = vmul.f32 %v1572, %v1475
  %v1592 = vmul.f32 %v1572, %v1476
  %v1593 = vmul.f32 %v1573, %v1473
  %v1594 = vmul.f32 %v1573, %v1474
  %v1595 = vmul.f32 %v1573, %v1475
  %v1596 = vmul.f32 %v1573, %v1476
  %v1597 = vmul.f32 %v1574, %v1473
  %v1598 = vmul.f32 %v1574, %v1474
  %v1599 = vmul.f32 %v1574, %v1475
  %v1600 = vmul.f32 %v1574, %v1476
  %v1601 = vmul.f32 %v1575, %v1473
  %v1602 = vmul.f32 %v1575, %v1474
  %v1603 = vmul.f32 %v1575, %v1475
  %v1604 = vmul.f32 %v1575, %v1476
  %v1605 = vmul.f32 %v1576, %v1473
  %v1606 = vmul.f32 %v1576, %v1474
  %v1607 = vmul.f32 %v1576, %v1475
  %v1608 = vmul.f32 %v1576, %v1476
  %v1609 = vadd.f32 %v1537, %v1577
  %v1610 = vadd.f32 %v1538, %v1578
  %v1611 = vadd.f32 %v1539, %v1579
  %v1612 = vadd.f32 %v1540, %v1580
  %v1613 = vadd.f32 %v1541, %v1581
  %v1614 = vadd.f32 %v1542, %v1582
  %v1615 = vadd.f32 %v1543, %v1583
  %v1616 = vadd.f32 %v1544, %v1584
  %v1617 = vadd.f32 %v1545, %v1585
  %v1618 = vadd.f32 %v1546, %v1586
  %v1619 = vadd.f32 %v1547, %v1587
  %v1620 = vadd.f32 %v1548, %v1588
  %v1621 = vadd.f32 %v1549, %v1589
  %v1622 = vadd.f32 %v1550, %v1590
  %v1623 = vadd.f32 %v1551, %v1591
  %v1624 = vadd.f32 %v1552, %v1592
  %v1625 = vadd.f32 %v1553, %v1593
  %v1626 = vadd.f32 %v1554, %v1594
  %v1627 = vadd.f32 %v1555, %v1595
  %v1628 = vadd.f32 %v1556, %v1596
  %v1629 = vadd.f32 %v1557, %v1597
  %v1630 = vadd.f32 %v1558, %v1598
  %v1631 = vadd.f32 %v1559, %v1599
  %v1632 = vadd.f32 %v1560, %v1600
  %v1633 = vadd.f32 %v1561, %v1601
  %v1634 = vadd.f32 %v1562, %v1602
  %v1635 = vadd.f32 %v1563, %v1603
  %v1636 = vadd.f32 %v1564, %v1604
  %v1637 = vadd.f32 %v1565, %v1605
  %v1638 = vadd.f32 %v1566, %v1606
  %v1639 = vadd.f32 %v1567, %v1607
  %v1640 = vadd.f32 %v1568, %v1608
  %v1641 = vperm.slane %v17, 1
  %v1642 = vperm.slane %v19, 1
  %v1643 = vperm.slane %v21, 1
  %v1644 = vperm.slane %v23, 1
  %v1645 = vperm.slane %v25, 1
  %v1646 = vperm.slane %v27, 1
  %v1647 = vperm.slane %v29, 1
  %v1648 = vperm.slane %v31, 1
  %v1649 = vmul.f32 %v1641, %v1477
  %v1650 = vmul.f32 %v1641, %v1478
  %v1651 = vmul.f32 %v1641, %v1479
  %v1652 = vmul.f32 %v1641, %v1480
  %v1653 = vmul.f32 %v1642, %v1477
  %v1654 = vmul.f32 %v1642, %v1478
  %v1655 = vmul.f32 %v1642, %v1479
  %v1656 = vmul.f32 %v1642, %v1480
  %v1657 = vmul.f32 %v1643, %v1477
  %v1658 = vmul.f32 %v1643, %v1478
  %v1659 = vmul.f32 %v1643, %v1479
  %v1660 = vmul.f32 %v1643, %v1480
  %v1661 = vmul.f32 %v1644, %v1477
  %v1662 = vmul.f32 %v1644, %v1478
  %v1663 = vmul.f32 %v1644, %v1479
  %v1664 = vmul.f32 %v1644, %v1480
  %v1665 = vmul.f32 %v1645, %v1477
  %v1666 = vmul.f32 %v1645, %v1478
  %v1667 = vmul.f32 %v1645, %v1479
  %v1668 = vmul.f32 %v1645, %v1480
  %v1669 = vmul.f32 %v1646, %v1477
  %v1670 = vmul.f32 %v1646, %v1478
  %v1671 = vmul.f32 %v1646, %v1479
  %v1672 = vmul.f32 %v1646, %v1480
  %v1673 = vmul.f32 %v1647, %v1477
  %v1674 = vmul.f32 %v1647, %v1478
  %v1675 = vmul.f32 %v1647, %v1479
  %v1676 = vmul.f32 %v1647, %v1480
  %v1677 = vmul.f32 %v1648, %v1477
  %v1678 = vmul.f32 %v1648, %v1478
  %v1679 = vmul.f32 %v1648, %v1479
  %v1680 = vmul.f32 %v1648, %v1480
  %v1681 = vadd.f32 %v1609, %v1649
  %v1682 = vadd.f32 %v1610, %v1650
  %v1683 = vadd.f32 %v1611, %v1651
  %v1684 = vadd.f32 %v1612, %v1652
  %v1685 = vadd.f32 %v1613, %v1653
  %v1686 = vadd.f32 %v1614, %v1654
  %v1687 = vadd.f32 %v1615, %v1655
  %v1688 = vadd.f32 %v1616, %v1656
  %v1689 = vadd.f32 %v1617, %v1657
  %v1690 = vadd.f32 %v1618, %v1658
  %v1691 = vadd.f32 %v1619, %v1659
  %v1692 = vadd.f32 %v1620, %v1660
  %v1693 = vadd.f32 %v1621, %v1661
  %v1694 = vadd.f32 %v1622, %v1662
  %v1695 = vadd.f32 %v1623, %v1663
  %v1696 = vadd.f32 %v1624, %v1664
  %v1697 = vadd.f32 %v1625, %v1665
  %v1698 = vadd.f32 %v1626, %v1666
  %v1699 = vadd.f32 %v1627, %v1667
  %v1700 = vadd.f32 %v1628, %v1668
  %v1701 = vadd.f32 %v1629, %v1669
  %v1702 = vadd.f32 %v1630, %v1670
  %v1703 = vadd.f32 %v1631, %v1671
  %v1704 = vadd.f32 %v1632, %v1672
  %v1705 = vadd.f32 %v1633, %v1673
  %v1706 = vadd.f32 %v1634, %v1674
  %v1707 = vadd.f32 %v1635, %v1675
  %v1708 = vadd.f32 %v1636, %v1676
  %v1709 = vadd.f32 %v1637, %v1677
  %v1710 = vadd.f32 %v1638, %v1678
  %v1711 = vadd.f32 %v1639, %v1679
  %v1712 = vadd.f32 %v1640, %v1680
  %v1713 = vperm.slane %v17, 2
  %v1714 = vperm.slane %v19, 2
  %v1715 = vperm.slane %v21, 2
  %v1716 = vperm.slane %v23, 2
  %v1717 = vperm.slane %v25, 2
  %v1718 = vperm.slane %v27, 2
  %v1719 = vperm.slane %v29, 2
  %v1720 = vperm.slane %v31, 2
  %v1721 = vmul.f32 %v1713, %v1481
  %v1722 = vmul.f32 %v1713, %v1482
  %v1723 = vmul.f32 %v1713, %v1483
  %v1724 = vmul.f32 %v1713, %v1484
  %v1725 = vmul.f32 %v1714, %v1481
  %v1726 = vmul.f32 %v1714, %v1482
  %v1727 = vmul.f32 %v1714, %v1483
  %v1728 = vmul.f32 %v1714, %v1484
  %v1729 = vmul.f32 %v1715, %v1481
  %v1730 = vmul.f32 %v1715, %v1482
  %v1731 = vmul.f32 %v1715, %v1483
  %v1732 = vmul.f32 %v1715, %v1484
  %v1733 = vmul.f32 %v1716, %v1481
  %v1734 = vmul.f32 %v1716, %v1482
  %v1735 = vmul.f32 %v1716, %v1483
  %v1736 = vmul.f32 %v1716, %v1484
  %v1737 = vmul.f32 %v1717, %v1481
  %v1738 = vmul.f32 %v1717, %v1482
  %v1739 = vmul.f32 %v1717, %v1483
  %v1740 = vmul.f32 %v1717, %v1484
  %v1741 = vmul.f32 %v1718, %v1481
  %v1742 = vmul.f32 %v1718, %v1482
  %v1743 = vmul.f32 %v1718, %v1483
  %v1744 = vmul.f32 %v1718, %v1484
  %v1745 = vmul.f32 %v1719, %v1481
  %v1746 = vmul.f32 %v1719, %v1482
  %v1747 = vmul.f32 %v1719, %v1483
  %v1748 = vmul.f32 %v1719, %v1484
  %v1749 = vmul.f32 %v1720, %v1481
  %v1750 = vmul.f32 %v1720, %v1482
  %v1751 = vmul.f32 %v1720, %v1483
  %v1752 = vmul.f32 %v1720, %v1484
  %v1753 = vadd.f32 %v1681, %v1721
  %v1754 = vadd.f32 %v1682, %v1722
  %v1755 = vadd.f32 %v1683, %v1723
  %v1756 = vadd.f32 %v1684, %v1724
  %v1757 = vadd.f32 %v1685, %v1725
  %v1758 = vadd.f32 %v1686, %v1726
  %v1759 = vadd.f32 %v1687, %v1727
  %v1760 = vadd.f32 %v1688, %v1728
  %v1761 = vadd.f32 %v1689, %v1729
  %v1762 = vadd.f32 %v1690, %v1730
  %v1763 = vadd.f32 %v1691, %v1731
  %v1764 = vadd.f32 %v1692, %v1732
  %v1765 = vadd.f32 %v1693, %v1733
  %v1766 = vadd.f32 %v1694, %v1734
  %v1767 = vadd.f32 %v1695, %v1735
  %v1768 = vadd.f32 %v1696, %v1736
  %v1769 = vadd.f32 %v1697, %v1737
  %v1770 = vadd.f32 %v1698, %v1738
  %v1771 = vadd.f32 %v1699, %v1739
  %v1772 = vadd.f32 %v1700, %v1740
  %v1773 = vadd.f32 %v1701, %v1741
  %v1774 = vadd.f32 %v1702, %v1742
  %v1775 = vadd.f32 %v1703, %v1743
  %v1776 = vadd.f32 %v1704, %v1744
  %v1777 = vadd.f32 %v1705, %v1745
  %v1778 = vadd.f32 %v1706, %v1746
  %v1779 = vadd.f32 %v1707, %v1747
  %v1780 = vadd.f32 %v1708, %v1748
  %v1781 = vadd.f32 %v1709, %v1749
  %v1782 = vadd.f32 %v1710, %v1750
  %v1783 = vadd.f32 %v1711, %v1751
  %v1784 = vadd.f32 %v1712, %v1752
  %v1785 = vperm.slane %v17, 3
  %v1786 = vperm.slane %v19, 3
  %v1787 = vperm.slane %v21, 3
  %v1788 = vperm.slane %v23, 3
  %v1789 = vperm.slane %v25, 3
  %v1790 = vperm.slane %v27, 3
  %v1791 = vperm.slane %v29, 3
  %v1792 = vperm.slane %v31, 3
  %v1793 = vmul.f32 %v1785, %v1485
  %v1794 = vmul.f32 %v1785, %v1486
  %v1795 = vmul.f32 %v1785, %v1487
  %v1796 = vmul.f32 %v1785, %v1488
  %v1797 = vmul.f32 %v1786, %v1485
  %v1798 = vmul.f32 %v1786, %v1486
  %v1799 = vmul.f32 %v1786, %v1487
  %v1800 = vmul.f32 %v1786, %v1488
  %v1801 = vmul.f32 %v1787, %v1485
  %v1802 = vmul.f32 %v1787, %v1486
  %v1803 = vmul.f32 %v1787, %v1487
  %v1804 = vmul.f32 %v1787, %v1488
  %v1805 = vmul.f32 %v1788, %v1485
  %v1806 = vmul.f32 %v1788, %v1486
  %v1807 = vmul.f32 %v1788, %v1487
  %v1808 = vmul.f32 %v1788, %v1488
  %v1809 = vmul.f32 %v1789, %v1485
  %v1810 = vmul.f32 %v1789, %v1486
  %v1811 = vmul.f32 %v1789, %v1487
  %v1812 = vmul.f32 %v1789, %v1488
  %v1813 = vmul.f32 %v1790, %v1485
  %v1814 = vmul.f32 %v1790, %v1486
  %v1815 = vmul.f32 %v1790, %v1487
  %v1816 = vmul.f32 %v1790, %v1488
  %v1817 = vmul.f32 %v1791, %v1485
  %v1818 = vmul.f32 %v1791, %v1486
  %v1819 = vmul.f32 %v1791, %v1487
  %v1820 = vmul.f32 %v1791, %v1488
  %v1821 = vmul.f32 %v1792, %v1485
  %v1822 = vmul.f32 %v1792, %v1486
  %v1823 = vmul.f32 %v1792, %v1487
  %v1824 = vmul.f32 %v1792, %v1488
  %v1825 = vadd.f32 %v1753, %v1793
  %v1826 = vadd.f32 %v1754, %v1794
  %v1827 = vadd.f32 %v1755, %v1795
  %v1828 = vadd.f32 %v1756, %v1796
  %v1829 = vadd.f32 %v1757, %v1797
  %v1830 = vadd.f32 %v1758, %v1798
  %v1831 = vadd.f32 %v1759, %v1799
  %v1832 = vadd.f32 %v1760, %v1800
  %v1833 = vadd.f32 %v1761, %v1801
  %v1834 = vadd.f32 %v1762, %v1802
  %v1835 = vadd.f32 %v1763, %v1803
  %v1836 = vadd.f32 %v1764, %v1804
  %v1837 = vadd.f32 %v1765, %v1805
  %v1838 = vadd.f32 %v1766, %v1806
  %v1839 = vadd.f32 %v1767, %v1807
  %v1840 = vadd.f32 %v1768, %v1808
  %v1841 = vadd.f32 %v1769, %v1809
  %v1842 = vadd.f32 %v1770, %v1810
  %v1843 = vadd.f32 %v1771, %v1811
  %v1844 = vadd.f32 %v1772, %v1812
  %v1845 = vadd.f32 %v1773, %v1813
  %v1846 = vadd.f32 %v1774, %v1814
  %v1847 = vadd.f32 %v1775, %v1815
  %v1848 = vadd.f32 %v1776, %v1816
  %v1849 = vadd.f32 %v1777, %v1817
  %v1850 = vadd.f32 %v1778, %v1818
  %v1851 = vadd.f32 %v1779, %v1819
  %v1852 = vadd.f32 %v1780, %v1820
  %v1853 = vadd.f32 %v1781, %v1821
  %v1854 = vadd.f32 %v1782, %v1822
  %v1855 = vadd.f32 %v1783, %v1823
  %v1856 = vadd.f32 %v1784, %v1824
  %v1857 = vperm.slane %v17, 4
  %v1858 = vperm.slane %v19, 4
  %v1859 = vperm.slane %v21, 4
  %v1860 = vperm.slane %v23, 4
  %v1861 = vperm.slane %v25, 4
  %v1862 = vperm.slane %v27, 4
  %v1863 = vperm.slane %v29, 4
  %v1864 = vperm.slane %v31, 4
  %v1865 = vmul.f32 %v1857, %v1489
  %v1866 = vmul.f32 %v1857, %v1490
  %v1867 = vmul.f32 %v1857, %v1491
  %v1868 = vmul.f32 %v1857, %v1492
  %v1869 = vmul.f32 %v1858, %v1489
  %v1870 = vmul.f32 %v1858, %v1490
  %v1871 = vmul.f32 %v1858, %v1491
  %v1872 = vmul.f32 %v1858, %v1492
  %v1873 = vmul.f32 %v1859, %v1489
  %v1874 = vmul.f32 %v1859, %v1490
  %v1875 = vmul.f32 %v1859, %v1491
  %v1876 = vmul.f32 %v1859, %v1492
  %v1877 = vmul.f32 %v1860, %v1489
  %v1878 = vmul.f32 %v1860, %v1490
  %v1879 = vmul.f32 %v1860, %v1491
  %v1880 = vmul.f32 %v1860, %v1492
  %v1881 = vmul.f32 %v1861, %v1489
  %v1882 = vmul.f32 %v1861, %v1490
  %v1883 = vmul.f32 %v1861, %v1491
  %v1884 = vmul.f32 %v1861, %v1492
  %v1885 = vmul.f32 %v1862, %v1489
  %v1886 = vmul.f32 %v1862, %v1490
  %v1887 = vmul.f32 %v1862, %v1491
  %v1888 = vmul.f32 %v1862, %v1492
  %v1889 = vmul.f32 %v1863, %v1489
  %v1890 = vmul.f32 %v1863, %v1490
  %v1891 = vmul.f32 %v1863, %v1491
  %v1892 = vmul.f32 %v1863, %v1492
  %v1893 = vmul.f32 %v1864, %v1489
  %v1894 = vmul.f32 %v1864, %v1490
  %v1895 = vmul.f32 %v1864, %v1491
  %v1896 = vmul.f32 %v1864, %v1492
  %v1897 = vadd.f32 %v1825, %v1865
  %v1898 = vadd.f32 %v1826, %v1866
  %v1899 = vadd.f32 %v1827, %v1867
  %v1900 = vadd.f32 %v1828, %v1868
  %v1901 = vadd.f32 %v1829, %v1869
  %v1902 = vadd.f32 %v1830, %v1870
  %v1903 = vadd.f32 %v1831, %v1871
  %v1904 = vadd.f32 %v1832, %v1872
  %v1905 = vadd.f32 %v1833, %v1873
  %v1906 = vadd.f32 %v1834, %v1874
  %v1907 = vadd.f32 %v1835, %v1875
  %v1908 = vadd.f32 %v1836, %v1876
  %v1909 = vadd.f32 %v1837, %v1877
  %v1910 = vadd.f32 %v1838, %v1878
  %v1911 = vadd.f32 %v1839, %v1879
  %v1912 = vadd.f32 %v1840, %v1880
  %v1913 = vadd.f32 %v1841, %v1881
  %v1914 = vadd.f32 %v1842, %v1882
  %v1915 = vadd.f32 %v1843, %v1883
  %v1916 = vadd.f32 %v1844, %v1884
  %v1917 = vadd.f32 %v1845, %v1885
  %v1918 = vadd.f32 %v1846, %v1886
  %v1919 = vadd.f32 %v1847, %v1887
  %v1920 = vadd.f32 %v1848, %v1888
  %v1921 = vadd.f32 %v1849, %v1889
  %v1922 = vadd.f32 %v1850, %v1890
  %v1923 = vadd.f32 %v1851, %v1891
  %v1924 = vadd.f32 %v1852, %v1892
  %v1925 = vadd.f32 %v1853, %v1893
  %v1926 = vadd.f32 %v1854, %v1894
  %v1927 = vadd.f32 %v1855, %v1895
  %v1928 = vadd.f32 %v1856, %v1896
  %v1929 = vperm.slane %v17, 5
  %v1930 = vperm.slane %v19, 5
  %v1931 = vperm.slane %v21, 5
  %v1932 = vperm.slane %v23, 5
  %v1933 = vperm.slane %v25, 5
  %v1934 = vperm.slane %v27, 5
  %v1935 = vperm.slane %v29, 5
  %v1936 = vperm.slane %v31, 5
  %v1937 = vmul.f32 %v1929, %v1493
  %v1938 = vmul.f32 %v1929, %v1494
  %v1939 = vmul.f32 %v1929, %v1495
  %v1940 = vmul.f32 %v1929, %v1496
  %v1941 = vmul.f32 %v1930, %v1493
  %v1942 = vmul.f32 %v1930, %v1494
  %v1943 = vmul.f32 %v1930, %v1495
  %v1944 = vmul.f32 %v1930, %v1496
  %v1945 = vmul.f32 %v1931, %v1493
  %v1946 = vmul.f32 %v1931, %v1494
  %v1947 = vmul.f32 %v1931, %v1495
  %v1948 = vmul.f32 %v1931, %v1496
  %v1949 = vmul.f32 %v1932, %v1493
  %v1950 = vmul.f32 %v1932, %v1494
  %v1951 = vmul.f32 %v1932, %v1495
  %v1952 = vmul.f32 %v1932, %v1496
  %v1953 = vmul.f32 %v1933, %v1493
  %v1954 = vmul.f32 %v1933, %v1494
  %v1955 = vmul.f32 %v1933, %v1495
  %v1956 = vmul.f32 %v1933, %v1496
  %v1957 = vmul.f32 %v1934, %v1493
  %v1958 = vmul.f32 %v1934, %v1494
  %v1959 = vmul.f32 %v1934, %v1495
  %v1960 = vmul.f32 %v1934, %v1496
  %v1961 = vmul.f32 %v1935, %v1493
  %v1962 = vmul.f32 %v1935, %v1494
  %v1963 = vmul.f32 %v1935, %v1495
  %v1964 = vmul.f32 %v1935, %v1496
  %v1965 = vmul.f32 %v1936, %v1493
  %v1966 = vmul.f32 %v1936, %v1494
  %v1967 = vmul.f32 %v1936, %v1495
  %v1968 = vmul.f32 %v1936, %v1496
  %v1969 = vadd.f32 %v1897, %v1937
  %v1970 = vadd.f32 %v1898, %v1938
  %v1971 = vadd.f32 %v1899, %v1939
  %v1972 = vadd.f32 %v1900, %v1940
  %v1973 = vadd.f32 %v1901, %v1941
  %v1974 = vadd.f32 %v1902, %v1942
  %v1975 = vadd.f32 %v1903, %v1943
  %v1976 = vadd.f32 %v1904, %v1944
  %v1977 = vadd.f32 %v1905, %v1945
  %v1978 = vadd.f32 %v1906, %v1946
  %v1979 = vadd.f32 %v1907, %v1947
  %v1980 = vadd.f32 %v1908, %v1948
  %v1981 = vadd.f32 %v1909, %v1949
  %v1982 = vadd.f32 %v1910, %v1950
  %v1983 = vadd.f32 %v1911, %v1951
  %v1984 = vadd.f32 %v1912, %v1952
  %v1985 = vadd.f32 %v1913, %v1953
  %v1986 = vadd.f32 %v1914, %v1954
  %v1987 = vadd.f32 %v1915, %v1955
  %v1988 = vadd.f32 %v1916, %v1956
  %v1989 = vadd.f32 %v1917, %v1957
  %v1990 = vadd.f32 %v1918, %v1958
  %v1991 = vadd.f32 %v1919, %v1959
  %v1992 = vadd.f32 %v1920, %v1960
  %v1993 = vadd.f32 %v1921, %v1961
  %v1994 = vadd.f32 %v1922, %v1962
  %v1995 = vadd.f32 %v1923, %v1963
  %v1996 = vadd.f32 %v1924, %v1964
  %v1997 = vadd.f32 %v1925, %v1965
  %v1998 = vadd.f32 %v1926, %v1966
  %v1999 = vadd.f32 %v1927, %v1967
  %v2000 = vadd.f32 %v1928, %v1968
  %v2001 = vperm.slane %v17, 6
  %v2002 = vperm.slane %v19, 6
  %v2003 = vperm.slane %v21, 6
  %v2004 = vperm.slane %v23, 6
  %v2005 = vperm.slane %v25, 6
  %v2006 = vperm.slane %v27, 6
  %v2007 = vperm.slane %v29, 6
  %v2008 = vperm.slane %v31, 6
  %v2009 = vmul.f32 %v2001, %v1497
  %v2010 = vmul.f32 %v2001, %v1498
  %v2011 = vmul.f32 %v2001, %v1499
  %v2012 = vmul.f32 %v2001, %v1500
  %v2013 = vmul.f32 %v2002, %v1497
  %v2014 = vmul.f32 %v2002, %v1498
  %v2015 = vmul.f32 %v2002, %v1499
  %v2016 = vmul.f32 %v2002, %v1500
  %v2017 = vmul.f32 %v2003, %v1497
  %v2018 = vmul.f32 %v2003, %v1498
  %v2019 = vmul.f32 %v2003, %v1499
  %v2020 = vmul.f32 %v2003, %v1500
  %v2021 = vmul.f32 %v2004, %v1497
  %v2022 = vmul.f32 %v2004, %v1498
  %v2023 = vmul.f32 %v2004, %v1499
  %v2024 = vmul.f32 %v2004, %v1500
  %v2025 = vmul.f32 %v2005, %v1497
  %v2026 = vmul.f32 %v2005, %v1498
  %v2027 = vmul.f32 %v2005, %v1499
  %v2028 = vmul.f32 %v2005, %v1500
  %v2029 = vmul.f32 %v2006, %v1497
  %v2030 = vmul.f32 %v2006, %v1498
  %v2031 = vmul.f32 %v2006, %v1499
  %v2032 = vmul.f32 %v2006, %v1500
  %v2033 = vmul.f32 %v2007, %v1497
  %v2034 = vmul.f32 %v2007, %v1498
  %v2035 = vmul.f32 %v2007, %v1499
  %v2036 = vmul.f32 %v2007, %v1500
  %v2037 = vmul.f32 %v2008, %v1497
  %v2038 = vmul.f32 %v2008, %v1498
  %v2039 = vmul.f32 %v2008, %v1499
  %v2040 = vmul.f32 %v2008, %v1500
  %v2041 = vadd.f32 %v1969, %v2009
  %v2042 = vadd.f32 %v1970, %v2010
  %v2043 = vadd.f32 %v1971, %v2011
  %v2044 = vadd.f32 %v1972, %v2012
  %v2045 = vadd.f32 %v1973, %v2013
  %v2046 = vadd.f32 %v1974, %v2014
  %v2047 = vadd.f32 %v1975, %v2015
  %v2048 = vadd.f32 %v1976, %v2016
  %v2049 = vadd.f32 %v1977, %v2017
  %v2050 = vadd.f32 %v1978, %v2018
  %v2051 = vadd.f32 %v1979, %v2019
  %v2052 = vadd.f32 %v1980, %v2020
  %v2053 = vadd.f32 %v1981, %v2021
  %v2054 = vadd.f32 %v1982, %v2022
  %v2055 = vadd.f32 %v1983, %v2023
  %v2056 = vadd.f32 %v1984, %v2024
  %v2057 = vadd.f32 %v1985, %v2025
  %v2058 = vadd.f32 %v1986, %v2026
  %v2059 = vadd.f32 %v1987, %v2027
  %v2060 = vadd.f32 %v1988, %v2028
  %v2061 = vadd.f32 %v1989, %v2029
  %v2062 = vadd.f32 %v1990, %v2030
  %v2063 = vadd.f32 %v1991, %v2031
  %v2064 = vadd.f32 %v1992, %v2032
  %v2065 = vadd.f32 %v1993, %v2033
  %v2066 = vadd.f32 %v1994, %v2034
  %v2067 = vadd.f32 %v1995, %v2035
  %v2068 = vadd.f32 %v1996, %v2036
  %v2069 = vadd.f32 %v1997, %v2037
  %v2070 = vadd.f32 %v1998, %v2038
  %v2071 = vadd.f32 %v1999, %v2039
  %v2072 = vadd.f32 %v2000, %v2040
  %v2073 = vperm.slane %v17, 7
  %v2074 = vperm.slane %v19, 7
  %v2075 = vperm.slane %v21, 7
  %v2076 = vperm.slane %v23, 7
  %v2077 = vperm.slane %v25, 7
  %v2078 = vperm.slane %v27, 7
  %v2079 = vperm.slane %v29, 7
  %v2080 = vperm.slane %v31, 7
  %v2081 = vmul.f32 %v2073, %v1501
  %v2082 = vmul.f32 %v2073, %v1502
  %v2083 = vmul.f32 %v2073, %v1503
  %v2084 = vmul.f32 %v2073, %v1504
  %v2085 = vmul.f32 %v2074, %v1501
  %v2086 = vmul.f32 %v2074, %v1502
  %v2087 = vmul.f32 %v2074, %v1503
  %v2088 = vmul.f32 %v2074, %v1504
  %v2089 = vmul.f32 %v2075, %v1501
  %v2090 = vmul.f32 %v2075, %v1502
  %v2091 = vmul.f32 %v2075, %v1503
  %v2092 = vmul.f32 %v2075, %v1504
  %v2093 = vmul.f32 %v2076, %v1501
  %v2094 = vmul.f32 %v2076, %v1502
  %v2095 = vmul.f32 %v2076, %v1503
  %v2096 = vmul.f32 %v2076, %v1504
  %v2097 = vmul.f32 %v2077, %v1501
  %v2098 = vmul.f32 %v2077, %v1502
  %v2099 = vmul.f32 %v2077, %v1503
  %v2100 = vmul.f32 %v2077, %v1504
  %v2101 = vmul.f32 %v2078, %v1501
  %v2102 = vmul.f32 %v2078, %v1502
  %v2103 = vmul.f32 %v2078, %v1503
  %v2104 = vmul.f32 %v2078, %v1504
  %v2105 = vmul.f32 %v2079, %v1501
  %v2106 = vmul.f32 %v2079, %v1502
  %v2107 = vmul.f32 %v2079, %v1503
  %v2108 = vmul.f32 %v2079, %v1504
  %v2109 = vmul.f32 %v2080, %v1501
  %v2110 = vmul.f32 %v2080, %v1502
  %v2111 = vmul.f32 %v2080, %v1503
  %v2112 = vmul.f32 %v2080, %v1504
  %v2113 = vadd.f32 %v2041, %v2081
  %v2114 = vadd.f32 %v2042, %v2082
  %v2115 = vadd.f32 %v2043, %v2083
  %v2116 = vadd.f32 %v2044, %v2084
  %v2117 = vadd.f32 %v2045, %v2085
  %v2118 = vadd.f32 %v2046, %v2086
  %v2119 = vadd.f32 %v2047, %v2087
  %v2120 = vadd.f32 %v2048, %v2088
  %v2121 = vadd.f32 %v2049, %v2089
  %v2122 = vadd.f32 %v2050, %v2090
  %v2123 = vadd.f32 %v2051, %v2091
  %v2124 = vadd.f32 %v2052, %v2092
  %v2125 = vadd.f32 %v2053, %v2093
  %v2126 = vadd.f32 %v2054, %v2094
  %v2127 = vadd.f32 %v2055, %v2095
  %v2128 = vadd.f32 %v2056, %v2096
  %v2129 = vadd.f32 %v2057, %v2097
  %v2130 = vadd.f32 %v2058, %v2098
  %v2131 = vadd.f32 %v2059, %v2099
  %v2132 = vadd.f32 %v2060, %v2100
  %v2133 = vadd.f32 %v2061, %v2101
  %v2134 = vadd.f32 %v2062, %v2102
  %v2135 = vadd.f32 %v2063, %v2103
  %v2136 = vadd.f32 %v2064, %v2104
  %v2137 = vadd.f32 %v2065, %v2105
  %v2138 = vadd.f32 %v2066, %v2106
  %v2139 = vadd.f32 %v2067, %v2107
  %v2140 = vadd.f32 %v2068, %v2108
  %v2141 = vadd.f32 %v2069, %v2109
  %v2142 = vadd.f32 %v2070, %v2110
  %v2143 = vadd.f32 %v2071, %v2111
  %v2144 = vadd.f32 %v2072, %v2112
  %v2145 = vperm.slane %v18, 0
  %v2146 = vperm.slane %v20, 0
  %v2147 = vperm.slane %v22, 0
  %v2148 = vperm.slane %v24, 0
  %v2149 = vperm.slane %v26, 0
  %v2150 = vperm.slane %v28, 0
  %v2151 = vperm.slane %v30, 0
  %v2152 = vperm.slane %v32, 0
  %v2153 = vmul.f32 %v2145, %v1505
  %v2154 = vmul.f32 %v2145, %v1506
  %v2155 = vmul.f32 %v2145, %v1507
  %v2156 = vmul.f32 %v2145, %v1508
  %v2157 = vmul.f32 %v2146, %v1505
  %v2158 = vmul.f32 %v2146, %v1506
  %v2159 = vmul.f32 %v2146, %v1507
  %v2160 = vmul.f32 %v2146, %v1508
  %v2161 = vmul.f32 %v2147, %v1505
  %v2162 = vmul.f32 %v2147, %v1506
  %v2163 = vmul.f32 %v2147, %v1507
  %v2164 = vmul.f32 %v2147, %v1508
  %v2165 = vmul.f32 %v2148, %v1505
  %v2166 = vmul.f32 %v2148, %v1506
  %v2167 = vmul.f32 %v2148, %v1507
  %v2168 = vmul.f32 %v2148, %v1508
  %v2169 = vmul.f32 %v2149, %v1505
  %v2170 = vmul.f32 %v2149, %v1506
  %v2171 = vmul.f32 %v2149, %v1507
  %v2172 = vmul.f32 %v2149, %v1508
  %v2173 = vmul.f32 %v2150, %v1505
  %v2174 = vmul.f32 %v2150, %v1506
  %v2175 = vmul.f32 %v2150, %v1507
  %v2176 = vmul.f32 %v2150, %v1508
  %v2177 = vmul.f32 %v2151, %v1505
  %v2178 = vmul.f32 %v2151, %v1506
  %v2179 = vmul.f32 %v2151, %v1507
  %v2180 = vmul.f32 %v2151, %v1508
  %v2181 = vmul.f32 %v2152, %v1505
  %v2182 = vmul.f32 %v2152, %v1506
  %v2183 = vmul.f32 %v2152, %v1507
  %v2184 = vmul.f32 %v2152, %v1508
  %v2185 = vadd.f32 %v2113, %v2153
  %v2186 = vadd.f32 %v2114, %v2154
  %v2187 = vadd.f32 %v2115, %v2155
  %v2188 = vadd.f32 %v2116, %v2156
  %v2189 = vadd.f32 %v2117, %v2157
  %v2190 = vadd.f32 %v2118, %v2158
  %v2191 = vadd.f32 %v2119, %v2159
  %v2192 = vadd.f32 %v2120, %v2160
  %v2193 = vadd.f32 %v2121, %v2161
  %v2194 = vadd.f32 %v2122, %v2162
  %v2195 = vadd.f32 %v2123, %v2163
  %v2196 = vadd.f32 %v2124, %v2164
  %v2197 = vadd.f32 %v2125, %v2165
  %v2198 = vadd.f32 %v2126, %v2166
  %v2199 = vadd.f32 %v2127, %v2167
  %v2200 = vadd.f32 %v2128, %v2168
  %v2201 = vadd.f32 %v2129, %v2169
  %v2202 = vadd.f32 %v2130, %v2170
  %v2203 = vadd.f32 %v2131, %v2171
  %v2204 = vadd.f32 %v2132, %v2172
  %v2205 = vadd.f32 %v2133, %v2173
  %v2206 = vadd.f32 %v2134, %v2174
  %v2207 = vadd.f32 %v2135, %v2175
  %v2208 = vadd.f32 %v2136, %v2176
  %v2209 = vadd.f32 %v2137, %v2177
  %v2210 = vadd.f32 %v2138, %v2178
  %v2211 = vadd.f32 %v2139, %v2179
  %v2212 = vadd.f32 %v2140, %v2180
  %v2213 = vadd.f32 %v2141, %v2181
  %v2214 = vadd.f32 %v2142, %v2182
  %v2215 = vadd.f32 %v2143, %v2183
  %v2216 = vadd.f32 %v2144, %v2184
  %v2217 = vperm.slane %v18, 1
  %v2218 = vperm.slane %v20, 1
  %v2219 = vperm.slane %v22, 1
  %v2220 = vperm.slane %v24, 1
  %v2221 = vperm.slane %v26, 1
  %v2222 = vperm.slane %v28, 1
  %v2223 = vperm.slane %v30, 1
  %v2224 = vperm.slane %v32, 1
  %v2225 = vmul.f32 %v2217, %v1509
  %v2226 = vmul.f32 %v2217, %v1510
  %v2227 = vmul.f32 %v2217, %v1511
  %v2228 = vmul.f32 %v2217, %v1512
  %v2229 = vmul.f32 %v2218, %v1509
  %v2230 = vmul.f32 %v2218, %v1510
  %v2231 = vmul.f32 %v2218, %v1511
  %v2232 = vmul.f32 %v2218, %v1512
  %v2233 = vmul.f32 %v2219, %v1509
  %v2234 = vmul.f32 %v2219, %v1510
  %v2235 = vmul.f32 %v2219, %v1511
  %v2236 = vmul.f32 %v2219, %v1512
  %v2237 = vmul.f32 %v2220, %v1509
  %v2238 = vmul.f32 %v2220, %v1510
  %v2239 = vmul.f32 %v2220, %v1511
  %v2240 = vmul.f32 %v2220, %v1512
  %v2241 = vmul.f32 %v2221, %v1509
  %v2242 = vmul.f32 %v2221, %v1510
  %v2243 = vmul.f32 %v2221, %v1511
  %v2244 = vmul.f32 %v2221, %v1512
  %v2245 = vmul.f32 %v2222, %v1509
  %v2246 = vmul.f32 %v2222, %v1510
  %v2247 = vmul.f32 %v2222, %v1511
  %v2248 = vmul.f32 %v2222, %v1512
  %v2249 = vmul.f32 %v2223, %v1509
  %v2250 = vmul.f32 %v2223, %v1510
  %v2251 = vmul.f32 %v2223, %v1511
  %v2252 = vmul.f32 %v2223, %v1512
  %v2253 = vmul.f32 %v2224, %v1509
  %v2254 = vmul.f32 %v2224, %v1510
  %v2255 = vmul.f32 %v2224, %v1511
  %v2256 = vmul.f32 %v2224, %v1512
  %v2257 = vadd.f32 %v2185, %v2225
  %v2258 = vadd.f32 %v2186, %v2226
  %v2259 = vadd.f32 %v2187, %v2227
  %v2260 = vadd.f32 %v2188, %v2228
  %v2261 = vadd.f32 %v2189, %v2229
  %v2262 = vadd.f32 %v2190, %v2230
  %v2263 = vadd.f32 %v2191, %v2231
  %v2264 = vadd.f32 %v2192, %v2232
  %v2265 = vadd.f32 %v2193, %v2233
  %v2266 = vadd.f32 %v2194, %v2234
  %v2267 = vadd.f32 %v2195, %v2235
  %v2268 = vadd.f32 %v2196, %v2236
  %v2269 = vadd.f32 %v2197, %v2237
  %v2270 = vadd.f32 %v2198, %v2238
  %v2271 = vadd.f32 %v2199, %v2239
  %v2272 = vadd.f32 %v2200, %v2240
  %v2273 = vadd.f32 %v2201, %v2241
  %v2274 = vadd.f32 %v2202, %v2242
  %v2275 = vadd.f32 %v2203, %v2243
  %v2276 = vadd.f32 %v2204, %v2244
  %v2277 = vadd.f32 %v2205, %v2245
  %v2278 = vadd.f32 %v2206, %v2246
  %v2279 = vadd.f32 %v2207, %v2247
  %v2280 = vadd.f32 %v2208, %v2248
  %v2281 = vadd.f32 %v2209, %v2249
  %v2282 = vadd.f32 %v2210, %v2250
  %v2283 = vadd.f32 %v2211, %v2251
  %v2284 = vadd.f32 %v2212, %v2252
  %v2285 = vadd.f32 %v2213, %v2253
  %v2286 = vadd.f32 %v2214, %v2254
  %v2287 = vadd.f32 %v2215, %v2255
  %v2288 = vadd.f32 %v2216, %v2256
  %v2289 = vperm.slane %v18, 2
  %v2290 = vperm.slane %v20, 2
  %v2291 = vperm.slane %v22, 2
  %v2292 = vperm.slane %v24, 2
  %v2293 = vperm.slane %v26, 2
  %v2294 = vperm.slane %v28, 2
  %v2295 = vperm.slane %v30, 2
  %v2296 = vperm.slane %v32, 2
  %v2297 = vmul.f32 %v2289, %v1513
  %v2298 = vmul.f32 %v2289, %v1514
  %v2299 = vmul.f32 %v2289, %v1515
  %v2300 = vmul.f32 %v2289, %v1516
  %v2301 = vmul.f32 %v2290, %v1513
  %v2302 = vmul.f32 %v2290, %v1514
  %v2303 = vmul.f32 %v2290, %v1515
  %v2304 = vmul.f32 %v2290, %v1516
  %v2305 = vmul.f32 %v2291, %v1513
  %v2306 = vmul.f32 %v2291, %v1514
  %v2307 = vmul.f32 %v2291, %v1515
  %v2308 = vmul.f32 %v2291, %v1516
  %v2309 = vmul.f32 %v2292, %v1513
  %v2310 = vmul.f32 %v2292, %v1514
  %v2311 = vmul.f32 %v2292, %v1515
  %v2312 = vmul.f32 %v2292, %v1516
  %v2313 = vmul.f32 %v2293, %v1513
  %v2314 = vmul.f32 %v2293, %v1514
  %v2315 = vmul.f32 %v2293, %v1515
  %v2316 = vmul.f32 %v2293, %v1516
  %v2317 = vmul.f32 %v2294, %v1513
  %v2318 = vmul.f32 %v2294, %v1514
  %v2319 = vmul.f32 %v2294, %v1515
  %v2320 = vmul.f32 %v2294, %v1516
  %v2321 = vmul.f32 %v2295, %v1513
  %v2322 = vmul.f32 %v2295, %v1514
  %v2323 = vmul.f32 %v2295, %v1515
  %v2324 = vmul.f32 %v2295, %v1516
  %v2325 = vmul.f32 %v2296, %v1513
  %v2326 = vmul.f32 %v2296, %v1514
  %v2327 = vmul.f32 %v2296, %v1515
  %v2328 = vmul.f32 %v2296, %v1516
  %v2329 = vadd.f32 %v2257, %v2297
  %v2330 = vadd.f32 %v2258, %v2298
  %v2331 = vadd.f32 %v2259, %v2299
  %v2332 = vadd.f32 %v2260, %v2300
  %v2333 = vadd.f32 %v2261, %v2301
  %v2334 = vadd.f32 %v2262, %v2302
  %v2335 = vadd.f32 %v2263, %v2303
  %v2336 = vadd.f32 %v2264, %v2304
  %v2337 = vadd.f32 %v2265, %v2305
  %v2338 = vadd.f32 %v2266, %v2306
  %v2339 = vadd.f32 %v2267, %v2307
  %v2340 = vadd.f32 %v2268, %v2308
  %v2341 = vadd.f32 %v2269, %v2309
  %v2342 = vadd.f32 %v2270, %v2310
  %v2343 = vadd.f32 %v2271, %v2311
  %v2344 = vadd.f32 %v2272, %v2312
  %v2345 = vadd.f32 %v2273, %v2313
  %v2346 = vadd.f32 %v2274, %v2314
  %v2347 = vadd.f32 %v2275, %v2315
  %v2348 = vadd.f32 %v2276, %v2316
  %v2349 = vadd.f32 %v2277, %v2317
  %v2350 = vadd.f32 %v2278, %v2318
  %v2351 = vadd.f32 %v2279, %v2319
  %v2352 = vadd.f32 %v2280, %v2320
  %v2353 = vadd.f32 %v2281, %v2321
  %v2354 = vadd.f32 %v2282, %v2322
  %v2355 = vadd.f32 %v2283, %v2323
  %v2356 = vadd.f32 %v2284, %v2324
  %v2357 = vadd.f32 %v2285, %v2325
  %v2358 = vadd.f32 %v2286, %v2326
  %v2359 = vadd.f32 %v2287, %v2327
  %v2360 = vadd.f32 %v2288, %v2328
  %v2361 = vperm.slane %v18, 3
  %v2362 = vperm.slane %v20, 3
  %v2363 = vperm.slane %v22, 3
  %v2364 = vperm.slane %v24, 3
  %v2365 = vperm.slane %v26, 3
  %v2366 = vperm.slane %v28, 3
  %v2367 = vperm.slane %v30, 3
  %v2368 = vperm.slane %v32, 3
  %v2369 = vmul.f32 %v2361, %v1517
  %v2370 = vmul.f32 %v2361, %v1518
  %v2371 = vmul.f32 %v2361, %v1519
  %v2372 = vmul.f32 %v2361, %v1520
  %v2373 = vmul.f32 %v2362, %v1517
  %v2374 = vmul.f32 %v2362, %v1518
  %v2375 = vmul.f32 %v2362, %v1519
  %v2376 = vmul.f32 %v2362, %v1520
  %v2377 = vmul.f32 %v2363, %v1517
  %v2378 = vmul.f32 %v2363, %v1518
  %v2379 = vmul.f32 %v2363, %v1519
  %v2380 = vmul.f32 %v2363, %v1520
  %v2381 = vmul.f32 %v2364, %v1517
  %v2382 = vmul.f32 %v2364, %v1518
  %v2383 = vmul.f32 %v2364, %v1519
  %v2384 = vmul.f32 %v2364, %v1520
  %v2385 = vmul.f32 %v2365, %v1517
  %v2386 = vmul.f32 %v2365, %v1518
  %v2387 = vmul.f32 %v2365, %v1519
  %v2388 = vmul.f32 %v2365, %v1520
  %v2389 = vmul.f32 %v2366, %v1517
  %v2390 = vmul.f32 %v2366, %v1518
  %v2391 = vmul.f32 %v2366, %v1519
  %v2392 = vmul.f32 %v2366, %v1520
  %v2393 = vmul.f32 %v2367, %v1517
  %v2394 = vmul.f32 %v2367, %v1518
  %v2395 = vmul.f32 %v2367, %v1519
  %v2396 = vmul.f32 %v2367, %v1520
  %v2397 = vmul.f32 %v2368, %v1517
  %v2398 = vmul.f32 %v2368, %v1518
  %v2399 = vmul.f32 %v2368, %v1519
  %v2400 = vmul.f32 %v2368, %v1520
  %v2401 = vadd.f32 %v2329, %v2369
  %v2402 = vadd.f32 %v2330, %v2370
  %v2403 = vadd.f32 %v2331, %v2371
  %v2404 = vadd.f32 %v2332, %v2372
  %v2405 = vadd.f32 %v2333, %v2373
  %v2406 = vadd.f32 %v2334, %v2374
  %v2407 = vadd.f32 %v2335, %v2375
  %v2408 = vadd.f32 %v2336, %v2376
  %v2409 = vadd.f32 %v2337, %v2377
  %v2410 = vadd.f32 %v2338, %v2378
  %v2411 = vadd.f32 %v2339, %v2379
  %v2412 = vadd.f32 %v2340, %v2380
  %v2413 = vadd.f32 %v2341, %v2381
  %v2414 = vadd.f32 %v2342, %v2382
  %v2415 = vadd.f32 %v2343, %v2383
  %v2416 = vadd.f32 %v2344, %v2384
  %v2417 = vadd.f32 %v2345, %v2385
  %v2418 = vadd.f32 %v2346, %v2386
  %v2419 = vadd.f32 %v2347, %v2387
  %v2420 = vadd.f32 %v2348, %v2388
  %v2421 = vadd.f32 %v2349, %v2389
  %v2422 = vadd.f32 %v2350, %v2390
  %v2423 = vadd.f32 %v2351, %v2391
  %v2424 = vadd.f32 %v2352, %v2392
  %v2425 = vadd.f32 %v2353, %v2393
  %v2426 = vadd.f32 %v2354, %v2394
  %v2427 = vadd.f32 %v2355, %v2395
  %v2428 = vadd.f32 %v2356, %v2396
  %v2429 = vadd.f32 %v2357, %v2397
  %v2430 = vadd.f32 %v2358, %v2398
  %v2431 = vadd.f32 %v2359, %v2399
  %v2432 = vadd.f32 %v2360, %v2400
  %v2433 = vperm.slane %v18, 4
  %v2434 = vperm.slane %v20, 4
  %v2435 = vperm.slane %v22, 4
  %v2436 = vperm.slane %v24, 4
  %v2437 = vperm.slane %v26, 4
  %v2438 = vperm.slane %v28, 4
  %v2439 = vperm.slane %v30, 4
  %v2440 = vperm.slane %v32, 4
  %v2441 = vmul.f32 %v2433, %v1521
  %v2442 = vmul.f32 %v2433, %v1522
  %v2443 = vmul.f32 %v2433, %v1523
  %v2444 = vmul.f32 %v2433, %v1524
  %v2445 = vmul.f32 %v2434, %v1521
  %v2446 = vmul.f32 %v2434, %v1522
  %v2447 = vmul.f32 %v2434, %v1523
  %v2448 = vmul.f32 %v2434, %v1524
  %v2449 = vmul.f32 %v2435, %v1521
  %v2450 = vmul.f32 %v2435, %v1522
  %v2451 = vmul.f32 %v2435, %v1523
  %v2452 = vmul.f32 %v2435, %v1524
  %v2453 = vmul.f32 %v2436, %v1521
  %v2454 = vmul.f32 %v2436, %v1522
  %v2455 = vmul.f32 %v2436, %v1523
  %v2456 = vmul.f32 %v2436, %v1524
  %v2457 = vmul.f32 %v2437, %v1521
  %v2458 = vmul.f32 %v2437, %v1522
  %v2459 = vmul.f32 %v2437, %v1523
  %v2460 = vmul.f32 %v2437, %v1524
  %v2461 = vmul.f32 %v2438, %v1521
  %v2462 = vmul.f32 %v2438, %v1522
  %v2463 = vmul.f32 %v2438, %v1523
  %v2464 = vmul.f32 %v2438, %v1524
  %v2465 = vmul.f32 %v2439, %v1521
  %v2466 = vmul.f32 %v2439, %v1522
  %v2467 = vmul.f32 %v2439, %v1523
  %v2468 = vmul.f32 %v2439, %v1524
  %v2469 = vmul.f32 %v2440, %v1521
  %v2470 = vmul.f32 %v2440, %v1522
  %v2471 = vmul.f32 %v2440, %v1523
  %v2472 = vmul.f32 %v2440, %v1524
  %v2473 = vadd.f32 %v2401, %v2441
  %v2474 = vadd.f32 %v2402, %v2442
  %v2475 = vadd.f32 %v2403, %v2443
  %v2476 = vadd.f32 %v2404, %v2444
  %v2477 = vadd.f32 %v2405, %v2445
  %v2478 = vadd.f32 %v2406, %v2446
  %v2479 = vadd.f32 %v2407, %v2447
  %v2480 = vadd.f32 %v2408, %v2448
  %v2481 = vadd.f32 %v2409, %v2449
  %v2482 = vadd.f32 %v2410, %v2450
  %v2483 = vadd.f32 %v2411, %v2451
  %v2484 = vadd.f32 %v2412, %v2452
  %v2485 = vadd.f32 %v2413, %v2453
  %v2486 = vadd.f32 %v2414, %v2454
  %v2487 = vadd.f32 %v2415, %v2455
  %v2488 = vadd.f32 %v2416, %v2456
  %v2489 = vadd.f32 %v2417, %v2457
  %v2490 = vadd.f32 %v2418, %v2458
  %v2491 = vadd.f32 %v2419, %v2459
  %v2492 = vadd.f32 %v2420, %v2460
  %v2493 = vadd.f32 %v2421, %v2461
  %v2494 = vadd.f32 %v2422, %v2462
  %v2495 = vadd.f32 %v2423, %v2463
  %v2496 = vadd.f32 %v2424, %v2464
  %v2497 = vadd.f32 %v2425, %v2465
  %v2498 = vadd.f32 %v2426, %v2466
  %v2499 = vadd.f32 %v2427, %v2467
  %v2500 = vadd.f32 %v2428, %v2468
  %v2501 = vadd.f32 %v2429, %v2469
  %v2502 = vadd.f32 %v2430, %v2470
  %v2503 = vadd.f32 %v2431, %v2471
  %v2504 = vadd.f32 %v2432, %v2472
  %v2505 = vperm.slane %v18, 5
  %v2506 = vperm.slane %v20, 5
  %v2507 = vperm.slane %v22, 5
  %v2508 = vperm.slane %v24, 5
  %v2509 = vperm.slane %v26, 5
  %v2510 = vperm.slane %v28, 5
  %v2511 = vperm.slane %v30, 5
  %v2512 = vperm.slane %v32, 5
  %v2513 = vmul.f32 %v2505, %v1525
  %v2514 = vmul.f32 %v2505, %v1526
  %v2515 = vmul.f32 %v2505, %v1527
  %v2516 = vmul.f32 %v2505, %v1528
  %v2517 = vmul.f32 %v2506, %v1525
  %v2518 = vmul.f32 %v2506, %v1526
  %v2519 = vmul.f32 %v2506, %v1527
  %v2520 = vmul.f32 %v2506, %v1528
  %v2521 = vmul.f32 %v2507, %v1525
  %v2522 = vmul.f32 %v2507, %v1526
  %v2523 = vmul.f32 %v2507, %v1527
  %v2524 = vmul.f32 %v2507, %v1528
  %v2525 = vmul.f32 %v2508, %v1525
  %v2526 = vmul.f32 %v2508, %v1526
  %v2527 = vmul.f32 %v2508, %v1527
  %v2528 = vmul.f32 %v2508, %v1528
  %v2529 = vmul.f32 %v2509, %v1525
  %v2530 = vmul.f32 %v2509, %v1526
  %v2531 = vmul.f32 %v2509, %v1527
  %v2532 = vmul.f32 %v2509, %v1528
  %v2533 = vmul.f32 %v2510, %v1525
  %v2534 = vmul.f32 %v2510, %v1526
  %v2535 = vmul.f32 %v2510, %v1527
  %v2536 = vmul.f32 %v2510, %v1528
  %v2537 = vmul.f32 %v2511, %v1525
  %v2538 = vmul.f32 %v2511, %v1526
  %v2539 = vmul.f32 %v2511, %v1527
  %v2540 = vmul.f32 %v2511, %v1528
  %v2541 = vmul.f32 %v2512, %v1525
  %v2542 = vmul.f32 %v2512, %v1526
  %v2543 = vmul.f32 %v2512, %v1527
  %v2544 = vmul.f32 %v2512, %v1528
  %v2545 = vadd.f32 %v2473, %v2513
  %v2546 = vadd.f32 %v2474, %v2514
  %v2547 = vadd.f32 %v2475, %v2515
  %v2548 = vadd.f32 %v2476, %v2516
  %v2549 = vadd.f32 %v2477, %v2517
  %v2550 = vadd.f32 %v2478, %v2518
  %v2551 = vadd.f32 %v2479, %v2519
  %v2552 = vadd.f32 %v2480, %v2520
  %v2553 = vadd.f32 %v2481, %v2521
  %v2554 = vadd.f32 %v2482, %v2522
  %v2555 = vadd.f32 %v2483, %v2523
  %v2556 = vadd.f32 %v2484, %v2524
  %v2557 = vadd.f32 %v2485, %v2525
  %v2558 = vadd.f32 %v2486, %v2526
  %v2559 = vadd.f32 %v2487, %v2527
  %v2560 = vadd.f32 %v2488, %v2528
  %v2561 = vadd.f32 %v2489, %v2529
  %v2562 = vadd.f32 %v2490, %v2530
  %v2563 = vadd.f32 %v2491, %v2531
  %v2564 = vadd.f32 %v2492, %v2532
  %v2565 = vadd.f32 %v2493, %v2533
  %v2566 = vadd.f32 %v2494, %v2534
  %v2567 = vadd.f32 %v2495, %v2535
  %v2568 = vadd.f32 %v2496, %v2536
  %v2569 = vadd.f32 %v2497, %v2537
  %v2570 = vadd.f32 %v2498, %v2538
  %v2571 = vadd.f32 %v2499, %v2539
  %v2572 = vadd.f32 %v2500, %v2540
  %v2573 = vadd.f32 %v2501, %v2541
  %v2574 = vadd.f32 %v2502, %v2542
  %v2575 = vadd.f32 %v2503, %v2543
  %v2576 = vadd.f32 %v2504, %v2544
  %v2577 = vperm.slane %v18, 6
  %v2578 = vperm.slane %v20, 6
  %v2579 = vperm.slane %v22, 6
  %v2580 = vperm.slane %v24, 6
  %v2581 = vperm.slane %v26, 6
  %v2582 = vperm.slane %v28, 6
  %v2583 = vperm.slane %v30, 6
  %v2584 = vperm.slane %v32, 6
  %v2585 = vmul.f32 %v2577, %v1529
  %v2586 = vmul.f32 %v2577, %v1530
  %v2587 = vmul.f32 %v2577, %v1531
  %v2588 = vmul.f32 %v2577, %v1532
  %v2589 = vmul.f32 %v2578, %v1529
  %v2590 = vmul.f32 %v2578, %v1530
  %v2591 = vmul.f32 %v2578, %v1531
  %v2592 = vmul.f32 %v2578, %v1532
  %v2593 = vmul.f32 %v2579, %v1529
  %v2594 = vmul.f32 %v2579, %v1530
  %v2595 = vmul.f32 %v2579, %v1531
  %v2596 = vmul.f32 %v2579, %v1532
  %v2597 = vmul.f32 %v2580, %v1529
  %v2598 = vmul.f32 %v2580, %v1530
  %v2599 = vmul.f32 %v2580, %v1531
  %v2600 = vmul.f32 %v2580, %v1532
  %v2601 = vmul.f32 %v2581, %v1529
  %v2602 = vmul.f32 %v2581, %v1530
  %v2603 = vmul.f32 %v2581, %v1531
  %v2604 = vmul.f32 %v2581, %v1532
  %v2605 = vmul.f32 %v2582, %v1529
  %v2606 = vmul.f32 %v2582, %v1530
  %v2607 = vmul.f32 %v2582, %v1531
  %v2608 = vmul.f32 %v2582, %v1532
  %v2609 = vmul.f32 %v2583, %v1529
  %v2610 = vmul.f32 %v2583, %v1530
  %v2611 = vmul.f32 %v2583, %v1531
  %v2612 = vmul.f32 %v2583, %v1532
  %v2613 = vmul.f32 %v2584, %v1529
  %v2614 = vmul.f32 %v2584, %v1530
  %v2615 = vmul.f32 %v2584, %v1531
  %v2616 = vmul.f32 %v2584, %v1532
  %v2617 = vadd.f32 %v2545, %v2585
  %v2618 = vadd.f32 %v2546, %v2586
  %v2619 = vadd.f32 %v2547, %v2587
  %v2620 = vadd.f32 %v2548, %v2588
  %v2621 = vadd.f32 %v2549, %v2589
  %v2622 = vadd.f32 %v2550, %v2590
  %v2623 = vadd.f32 %v2551, %v2591
  %v2624 = vadd.f32 %v2552, %v2592
  %v2625 = vadd.f32 %v2553, %v2593
  %v2626 = vadd.f32 %v2554, %v2594
  %v2627 = vadd.f32 %v2555, %v2595
  %v2628 = vadd.f32 %v2556, %v2596
  %v2629 = vadd.f32 %v2557, %v2597
  %v2630 = vadd.f32 %v2558, %v2598
  %v2631 = vadd.f32 %v2559, %v2599
  %v2632 = vadd.f32 %v2560, %v2600
  %v2633 = vadd.f32 %v2561, %v2601
  %v2634 = vadd.f32 %v2562, %v2602
  %v2635 = vadd.f32 %v2563, %v2603
  %v2636 = vadd.f32 %v2564, %v2604
  %v2637 = vadd.f32 %v2565, %v2605
  %v2638 = vadd.f32 %v2566, %v2606
  %v2639 = vadd.f32 %v2567, %v2607
  %v2640 = vadd.f32 %v2568, %v2608
  %v2641 = vadd.f32 %v2569, %v2609
  %v2642 = vadd.f32 %v2570, %v2610
  %v2643 = vadd.f32 %v2571, %v2611
  %v2644 = vadd.f32 %v2572, %v2612
  %v2645 = vadd.f32 %v2573, %v2613
  %v2646 = vadd.f32 %v2574, %v2614
  %v2647 = vadd.f32 %v2575, %v2615
  %v2648 = vadd.f32 %v2576, %v2616
  %v2649 = vperm.slane %v18, 7
  %v2650 = vperm.slane %v20, 7
  %v2651 = vperm.slane %v22, 7
  %v2652 = vperm.slane %v24, 7
  %v2653 = vperm.slane %v26, 7
  %v2654 = vperm.slane %v28, 7
  %v2655 = vperm.slane %v30, 7
  %v2656 = vperm.slane %v32, 7
  %v2657 = vmul.f32 %v2649, %v1533
  %v2658 = vmul.f32 %v2649, %v1534
  %v2659 = vmul.f32 %v2649, %v1535
  %v2660 = vmul.f32 %v2649, %v1536
  %v2661 = vmul.f32 %v2650, %v1533
  %v2662 = vmul.f32 %v2650, %v1534
  %v2663 = vmul.f32 %v2650, %v1535
  %v2664 = vmul.f32 %v2650, %v1536
  %v2665 = vmul.f32 %v2651, %v1533
  %v2666 = vmul.f32 %v2651, %v1534
  %v2667 = vmul.f32 %v2651, %v1535
  %v2668 = vmul.f32 %v2651, %v1536
  %v2669 = vmul.f32 %v2652, %v1533
  %v2670 = vmul.f32 %v2652, %v1534
  %v2671 = vmul.f32 %v2652, %v1535
  %v2672 = vmul.f32 %v2652, %v1536
  %v2673 = vmul.f32 %v2653, %v1533
  %v2674 = vmul.f32 %v2653, %v1534
  %v2675 = vmul.f32 %v2653, %v1535
  %v2676 = vmul.f32 %v2653, %v1536
  %v2677 = vmul.f32 %v2654, %v1533
  %v2678 = vmul.f32 %v2654, %v1534
  %v2679 = vmul.f32 %v2654, %v1535
  %v2680 = vmul.f32 %v2654, %v1536
  %v2681 = vmul.f32 %v2655, %v1533
  %v2682 = vmul.f32 %v2655, %v1534
  %v2683 = vmul.f32 %v2655, %v1535
  %v2684 = vmul.f32 %v2655, %v1536
  %v2685 = vmul.f32 %v2656, %v1533
  %v2686 = vmul.f32 %v2656, %v1534
  %v2687 = vmul.f32 %v2656, %v1535
  %v2688 = vmul.f32 %v2656, %v1536
  %v2689 = vadd.f32 %v2617, %v2657
  %v2690 = vadd.f32 %v2618, %v2658
  %v2691 = vadd.f32 %v2619, %v2659
  %v2692 = vadd.f32 %v2620, %v2660
  %v2693 = vadd.f32 %v2621, %v2661
  %v2694 = vadd.f32 %v2622, %v2662
  %v2695 = vadd.f32 %v2623, %v2663
  %v2696 = vadd.f32 %v2624, %v2664
  %v2697 = vadd.f32 %v2625, %v2665
  %v2698 = vadd.f32 %v2626, %v2666
  %v2699 = vadd.f32 %v2627, %v2667
  %v2700 = vadd.f32 %v2628, %v2668
  %v2701 = vadd.f32 %v2629, %v2669
  %v2702 = vadd.f32 %v2630, %v2670
  %v2703 = vadd.f32 %v2631, %v2671
  %v2704 = vadd.f32 %v2632, %v2672
  %v2705 = vadd.f32 %v2633, %v2673
  %v2706 = vadd.f32 %v2634, %v2674
  %v2707 = vadd.f32 %v2635, %v2675
  %v2708 = vadd.f32 %v2636, %v2676
  %v2709 = vadd.f32 %v2637, %v2677
  %v2710 = vadd.f32 %v2638, %v2678
  %v2711 = vadd.f32 %v2639, %v2679
  %v2712 = vadd.f32 %v2640, %v2680
  %v2713 = vadd.f32 %v2641, %v2681
  %v2714 = vadd.f32 %v2642, %v2682
  %v2715 = vadd.f32 %v2643, %v2683
  %v2716 = vadd.f32 %v2644, %v2684
  %v2717 = vadd.f32 %v2645, %v2685
  %v2718 = vadd.f32 %v2646, %v2686
  %v2719 = vadd.f32 %v2647, %v2687
  %v2720 = vadd.f32 %v2648, %v2688
  %vm2721 = vcmask 7168
  %v2722 = vsel %vm2721, %v2689, 0.0
  %v2723 = vsel %vm2721, %v2693, 0.0
  %v2724 = vadd.f32 %v2722, %v2723
  %v2725 = vsel %vm2721, %v2697, 0.0
  %v2726 = vadd.f32 %v2724, %v2725
  %v2727 = vsel %vm2721, %v2701, 0.0
  %v2728 = vadd.f32 %v2726, %v2727
  %v2729 = vsel %vm2721, %v2705, 0.0
  %v2730 = vadd.f32 %v2728, %v2729
  %v2731 = vsel %vm2721, %v2709, 0.0
  %v2732 = vadd.f32 %v2730, %v2731
  %v2733 = vsel %vm2721, %v2713, 0.0
  %v2734 = vadd.f32 %v2732, %v2733
  %v2735 = vsel %vm2721, %v2717, 0.0
  %v2736 = vadd.f32 %v2734, %v2735
  %v2737 = vsel %vm2721, %v2690, 0.0
  %v2738 = vsel %vm2721, %v2694, 0.0
  %v2739 = vadd.f32 %v2737, %v2738
  %v2740 = vsel %vm2721, %v2698, 0.0
  %v2741 = vadd.f32 %v2739, %v2740
  %v2742 = vsel %vm2721, %v2702, 0.0
  %v2743 = vadd.f32 %v2741, %v2742
  %v2744 = vsel %vm2721, %v2706, 0.0
  %v2745 = vadd.f32 %v2743, %v2744
  %v2746 = vsel %vm2721, %v2710, 0.0
  %v2747 = vadd.f32 %v2745, %v2746
  %v2748 = vsel %vm2721, %v2714, 0.0
  %v2749 = vadd.f32 %v2747, %v2748
  %v2750 = vsel %vm2721, %v2718, 0.0
  %v2751 = vadd.f32 %v2749, %v2750
  %v2752 = vsel %vm2721, %v2691, 0.0
  %v2753 = vsel %vm2721, %v2695, 0.0
  %v2754 = vadd.f32 %v2752, %v2753
  %v2755 = vsel %vm2721, %v2699, 0.0
  %v2756 = vadd.f32 %v2754, %v2755
  %v2757 = vsel %vm2721, %v2703, 0.0
  %v2758 = vadd.f32 %v2756, %v2757
  %v2759 = vsel %vm2721, %v2707, 0.0
  %v2760 = vadd.f32 %v2758, %v2759
  %v2761 = vsel %vm2721, %v2711, 0.0
  %v2762 = vadd.f32 %v2760, %v2761
  %v2763 = vsel %vm2721, %v2715, 0.0
  %v2764 = vadd.f32 %v2762, %v2763
  %v2765 = vsel %vm2721, %v2719, 0.0
  %v2766 = vadd.f32 %v2764, %v2765
  %v2767 = vsel %vm2721, %v2692, 0.0
  %v2768 = vsel %vm2721, %v2696, 0.0
  %v2769 = vadd.f32 %v2767, %v2768
  %v2770 = vsel %vm2721, %v2700, 0.0
  %v2771 = vadd.f32 %v2769, %v2770
  %v2772 = vsel %vm2721, %v2704, 0.0
  %v2773 = vadd.f32 %v2771, %v2772
  %v2774 = vsel %vm2721, %v2708, 0.0
  %v2775 = vadd.f32 %v2773, %v2774
  %v2776 = vsel %vm2721, %v2712, 0.0
  %v2777 = vadd.f32 %v2775, %v2776
  %v2778 = vsel %vm2721, %v2716, 0.0
  %v2779 = vadd.f32 %v2777, %v2778
  %v2780 = vsel %vm2721, %v2720, 0.0
  %v2781 = vadd.f32 %v2779, %v2780
  %v2782 = vsel %vm2721, %v2736, 0.0
  %v2783 = vsel %vm2721, %v2751, 0.0
  %v2784 = vadd.f32 %v2782, %v2783
  %v2785 = vsel %vm2721, %v2766, 0.0
  %v2786 = vadd.f32 %v2784, %v2785
  %v2787 = vsel %vm2721, %v2781, 0.0
  %v2788 = vadd.f32 %v2786, %v2787
  %v2789 = vrot.slane %v2788, 4
  %v2790 = vadd.f32 %v2788, %v2789
  %v2791 = vrot.slane %v2790, 2
  %v2792 = vadd.f32 %v2790, %v2791
  %v2793 = vrot.slane %v2792, 1
  %v2794 = vadd.f32 %v2792, %v2793
  %v2795 = vmul.f32 %v2794, 0.00390625
  %v2796 = vsub.f32 %v2689, %v2795
  %v2797 = vsub.f32 %v2690, %v2795
  %v2798 = vsub.f32 %v2691, %v2795
  %v2799 = vsub.f32 %v2692, %v2795
  %v2800 = vsub.f32 %v2693, %v2795
  %v2801 = vsub.f32 %v2694, %v2795
  %v2802 = vsub.f32 %v2695, %v2795
  %v2803 = vsub.f32 %v2696, %v2795
  %v2804 = vsub.f32 %v2697, %v2795
  %v2805 = vsub.f32 %v2698, %v2795
  %v2806 = vsub.f32 %v2699, %v2795
  %v2807 = vsub.f32 %v2700, %v2795
  %v2808 = vsub.f32 %v2701, %v2795
  %v2809 = vsub.f32 %v2702, %v2795
  %v2810 = vsub.f32 %v2703, %v2795
  %v2811 = vsub.f32 %v2704, %v2795
  %v2812 = vsub.f32 %v2705, %v2795
  %v2813 = vsub.f32 %v2706, %v2795
  %v2814 = vsub.f32 %v2707, %v2795
  %v2815 = vsub.f32 %v2708, %v2795
  %v2816 = vsub.f32 %v2709, %v2795
  %v2817 = vsub.f32 %v2710, %v2795
  %v2818 = vsub.f32 %v2711, %v2795
  %v2819 = vsub.f32 %v2712, %v2795
  %v2820 = vsub.f32 %v2713, %v2795
  %v2821 = vsub.f32 %v2714, %v2795
  %v2822 = vsub.f32 %v2715, %v2795
  %v2823 = vsub.f32 %v2716, %v2795
  %v2824 = vsub.f32 %v2717, %v2795
  %v2825 = vsub.f32 %v2718, %v2795
  %v2826 = vsub.f32 %v2719, %v2795
  %v2827 = vsub.f32 %v2720, %v2795
  %v2828 = vmul.f32 %v2796, %v2796
  %v2829 = vmul.f32 %v2797, %v2797
  %v2830 = vmul.f32 %v2798, %v2798
  %v2831 = vmul.f32 %v2799, %v2799
  %v2832 = vmul.f32 %v2800, %v2800
  %v2833 = vmul.f32 %v2801, %v2801
  %v2834 = vmul.f32 %v2802, %v2802
  %v2835 = vmul.f32 %v2803, %v2803
  %v2836 = vmul.f32 %v2804, %v2804
  %v2837 = vmul.f32 %v2805, %v2805
  %v2838 = vmul.f32 %v2806, %v2806
  %v2839 = vmul.f32 %v2807, %v2807
  %v2840 = vmul.f32 %v2808, %v2808
  %v2841 = vmul.f32 %v2809, %v2809
  %v2842 = vmul.f32 %v2810, %v2810
  %v2843 = vmul.f32 %v2811, %v2811
  %v2844 = vmul.f32 %v2812, %v2812
  %v2845 = vmul.f32 %v2813, %v2813
  %v2846 = vmul.f32 %v2814, %v2814
  %v2847 = vmul.f32 %v2815, %v2815
  %v2848 = vmul.f32 %v2816, %v2816
  %v2849 = vmul.f32 %v2817, %v2817
  %v2850 = vmul.f32 %v2818, %v2818
  %v2851 = vmul.f32 %v2819, %v2819
  %v2852 = vmul.f32 %v2820, %v2820
  %v2853 = vmul.f32 %v2821, %v2821
  %v2854 = vmul.f32 %v2822, %v2822
  %v2855 = vmul.f32 %v2823, %v2823
  %v2856 = vmul.f32 %v2824, %v2824
  %v2857 = vmul.f32 %v2825, %v2825
  %v2858 = vmul.f32 %v2826, %v2826
  %v2859 = vmul.f32 %v2827, %v2827
  %v2860 = vsel %vm2721, %v2828, 0.0
  %v2861 = vsel %vm2721, %v2832, 0.0
  %v2862 = vadd.f32 %v2860, %v2861
  %v2863 = vsel %vm2721, %v2836, 0.0
  %v2864 = vadd.f32 %v2862, %v2863
  %v2865 = vsel %vm2721, %v2840, 0.0
  %v2866 = vadd.f32 %v2864, %v2865
  %v2867 = vsel %vm2721, %v2844, 0.0
  %v2868 = vadd.f32 %v2866, %v2867
  %v2869 = vsel %vm2721, %v2848, 0.0
  %v2870 = vadd.f32 %v2868, %v2869
  %v2871 = vsel %vm2721, %v2852, 0.0
  %v2872 = vadd.f32 %v2870, %v2871
  %v2873 = vsel %vm2721, %v2856, 0.0
  %v2874 = vadd.f32 %v2872, %v2873
  %v2875 = vsel %vm2721, %v2829, 0.0
  %v2876 = vsel %vm2721, %v2833, 0.0
  %v2877 = vadd.f32 %v2875, %v2876
  %v2878 = vsel %vm2721, %v2837, 0.0
  %v2879 = vadd.f32 %v2877, %v2878
  %v2880 = vsel %vm2721, %v2841, 0.0
  %v2881 = vadd.f32 %v2879, %v2880
  %v2882 = vsel %vm2721, %v2845, 0.0
  %v2883 = vadd.f32 %v2881, %v2882
  %v2884 = vsel %vm2721, %v2849, 0.0
  %v2885 = vadd.f32 %v2883, %v2884
  %v2886 = vsel %vm2721, %v2853, 0.0
  %v2887 = vadd.f32 %v2885, %v2886
  %v2888 = vsel %vm2721, %v2857, 0.0
  %v2889 = vadd.f32 %v2887, %v2888
  %v2890 = vsel %vm2721, %v2830, 0.0
  %v2891 = vsel %vm2721, %v2834, 0.0
  %v2892 = vadd.f32 %v2890, %v2891
  %v2893 = vsel %vm2721, %v2838, 0.0
  %v2894 = vadd.f32 %v2892, %v2893
  %v2895 = vsel %vm2721, %v2842, 0.0
  %v2896 = vadd.f32 %v2894, %v2895
  %v2897 = vsel %vm2721, %v2846, 0.0
  %v2898 = vadd.f32 %v2896, %v2897
  %v2899 = vsel %vm2721, %v2850, 0.0
  %v2900 = vadd.f32 %v2898, %v2899
  %v2901 = vsel %vm2721, %v2854, 0.0
  %v2902 = vadd.f32 %v2900, %v2901
  %v2903 = vsel %vm2721, %v2858, 0.0
  %v2904 = vadd.f32 %v2902, %v2903
  %v2905 = vsel %vm2721, %v2831, 0.0
  %v2906 = vsel %vm2721, %v2835, 0.0
  %v2907 = vadd.f32 %v2905, %v2906
  %v2908 = vsel %vm2721, %v2839, 0.0
  %v2909 = vadd.f32 %v2907, %v2908
  %v2910 = vsel %vm2721, %v2843, 0.0
  %v2911 = vadd.f32 %v2909, %v2910
  %v2912 = vsel %vm2721, %v2847, 0.0
  %v2913 = vadd.f32 %v2911, %v2912
  %v2914 = vsel %vm2721, %v2851, 0.0
  %v2915 = vadd.f32 %v2913, %v2914
  %v2916 = vsel %vm2721, %v2855, 0.0
  %v2917 = vadd.f32 %v2915, %v2916
  %v2918 = vsel %vm2721, %v2859, 0.0
  %v2919 = vadd.f32 %v2917, %v2918
  %v2920 = vsel %vm2721, %v2874, 0.0
  %v2921 = vsel %vm2721, %v2889, 0.0
  %v2922 = vadd.f32 %v2920, %v2921
  %v2923 = vsel %vm2721, %v2904, 0.0
  %v2924 = vadd.f32 %v2922, %v2923
  %v2925 = vsel %vm2721, %v2919, 0.0
  %v2926 = vadd.f32 %v2924, %v2925
  %v2927 = vrot.slane %v2926, 4
  %v2928 = vadd.f32 %v2926, %v2927
  %v2929 = vrot.slane %v2928, 2
  %v2930 = vadd.f32 %v2928, %v2929
  %v2931 = vrot.slane %v2930, 1
  %v2932 = vadd.f32 %v2930, %v2931
  %v2933 = vmul.f32 %v2932, 0.003921569
  %v2934 = vrsqrt.pop %v2933
  %v2935 = vmul.f32 %v2934, %v2933
  %v2936 = vmul.f32 %v2935, %v2934
  %v2937 = vmul.f32 0.5, %v2936
  %v2938 = vsub.f32 1.5, %v2937
  %v2939 = vmul.f32 %v2934, %v2938
  %vm2940 = vweird.f32 %v2933
  %vm2941 = vweird.f32 %v2934
  %vm2942 = vmor %vm2940, %vm2941
  %v2943 = vsel %vm2942, %v2934, %v2939
  %v2944 = vmul.f32 %v2796, %v2943
  %v2945 = vmul.f32 %v2797, %v2943
  %v2946 = vmul.f32 %v2798, %v2943
  %v2947 = vmul.f32 %v2799, %v2943
  %v2948 = vmul.f32 %v2800, %v2943
  %v2949 = vmul.f32 %v2801, %v2943
  %v2950 = vmul.f32 %v2802, %v2943
  %v2951 = vmul.f32 %v2803, %v2943
  %v2952 = vmul.f32 %v2804, %v2943
  %v2953 = vmul.f32 %v2805, %v2943
  %v2954 = vmul.f32 %v2806, %v2943
  %v2955 = vmul.f32 %v2807, %v2943
  %v2956 = vmul.f32 %v2808, %v2943
  %v2957 = vmul.f32 %v2809, %v2943
  %v2958 = vmul.f32 %v2810, %v2943
  %v2959 = vmul.f32 %v2811, %v2943
  %v2960 = vmul.f32 %v2812, %v2943
  %v2961 = vmul.f32 %v2813, %v2943
  %v2962 = vmul.f32 %v2814, %v2943
  %v2963 = vmul.f32 %v2815, %v2943
  %v2964 = vmul.f32 %v2816, %v2943
  %v2965 = vmul.f32 %v2817, %v2943
  %v2966 = vmul.f32 %v2818, %v2943
  %v2967 = vmul.f32 %v2819, %v2943
  %v2968 = vmul.f32 %v2820, %v2943
  %v2969 = vmul.f32 %v2821, %v2943
  %v2970 = vmul.f32 %v2822, %v2943
  %v2971 = vmul.f32 %v2823, %v2943
  %v2972 = vmul.f32 %v2824, %v2943
  %v2973 = vmul.f32 %v2825, %v2943
  %v2974 = vmul.f32 %v2826, %v2943
  %v2975 = vmul.f32 %v2827, %v2943
  %2976 = vst.msk [vmem:[%s4] sm:$0xff] %vm2721, %v2944
  %2977 = vst.msk [vmem:[%s4 + $0x8] sm:$0xff] %vm2721, %v2945
  %2978 = vst.msk [vmem:[%s4 + $0x10] sm:$0xff] %vm2721, %v2946
  %2979 = vst.msk [vmem:[%s4 + $0x18] sm:$0xff] %vm2721, %v2947
  %2980 = vst.msk [vmem:[%s4 + $0x20] sm:$0xff] %vm2721, %v2948
  %2981 = vst.msk [vmem:[%s4 + $0x28] sm:$0xff] %vm2721, %v2949
  %2982 = vst.msk [vmem:[%s4 + $0x30] sm:$0xff] %vm2721, %v2950
  %2983 = vst.msk [vmem:[%s4 + $0x38] sm:$0xff] %vm2721, %v2951
  %2984 = vst.msk [vmem:[%s4 + $0x40] sm:$0xff] %vm2721, %v2952
  %2985 = vst.msk [vmem:[%s4 + $0x48] sm:$0xff] %vm2721, %v2953
  %2986 = vst.msk [vmem:[%s4 + $0x50] sm:$0xff] %vm2721, %v2954
  %2987 = vst.msk [vmem:[%s4 + $0x58] sm:$0xff] %vm2721, %v2955
  %2988 = vst.msk [vmem:[%s4 + $0x60] sm:$0xff] %vm2721, %v2956
  %2989 = vst.msk [vmem:[%s4 + $0x68] sm:$0xff] %vm2721, %v2957
  %2990 = vst.msk [vmem:[%s4 + $0x70] sm:$0xff] %vm2721, %v2958
  %2991 = vst.msk [vmem:[%s4 + $0x78] sm:$0xff] %vm2721, %v2959
  %2992 = vst.msk [vmem:[%s4 + $0x80] sm:$0xff] %vm2721, %v2960
  %2993 = vst.msk [vmem:[%s4 + $0x88] sm:$0xff] %vm2721, %v2961
  %2994 = vst.msk [vmem:[%s4 + $0x90] sm:$0xff] %vm2721, %v2962
  %2995 = vst.msk [vmem:[%s4 + $0x98] sm:$0xff] %vm2721, %v2963
  %2996 = vst.msk [vmem:[%s4 + $0xa0] sm:$0xff] %vm2721, %v2964
  %2997 = vst.msk [vmem:[%s4 + $0xa8] sm:$0xff] %vm2721, %v2965
  %2998 = vst.msk [vmem:[%s4 + $0xb0] sm:$0xff] %vm2721, %v2966
  %2999 = vst.msk [vmem:[%s4 + $0xb8] sm:$0xff] %vm2721, %v2967
  %3000 = vst.msk [vmem:[%s4 + $0xc0] sm:$0xff] %vm2721, %v2968
  %3001 = vst.msk [vmem:[%s4 + $0xc8] sm:$0xff] %vm2721, %v2969
  %3002 = vst.msk [vmem:[%s4 + $0xd0] sm:$0xff] %vm2721, %v2970
  %3003 = vst.msk [vmem:[%s4 + $0xd8] sm:$0xff] %vm2721, %v2971
  %3004 = vst.msk [vmem:[%s4 + $0xe0] sm:$0xff] %vm2721, %v2972
  %3005 = vst.msk [vmem:[%s4 + $0xe8] sm:$0xff] %vm2721, %v2973
  %3006 = vst.msk [vmem:[%s4 + $0xf0] sm:$0xff] %vm2721, %v2974
  %3007 = vst.msk [vmem:[%s4 + $0xf8] sm:$0xff] %vm2721, %v2975
  // Predicated region
  $region18: #{tpu_custom_call.1} parent=0 // pred_check
    _
  $region19: #{tpu_custom_call.1} parent=0 // pred_check_branch
    %3009 = sbr.rel (0) target = $region21
  $region20: #{tpu_custom_call.1} parent=0 // pred_region
    _
  $region21: #{tpu_custom_call.1} parent=0 // pred_fallthru
    _
  // Predicated region
  $region22: #{tpu_custom_call.1} parent=0 // pred_check
    _
  $region23: #{tpu_custom_call.1} parent=0 // pred_check_branch
    %3011 = sbr.rel (0) target = $region25
  $region24: #{tpu_custom_call.1} parent=0 // pred_region
    _
  $region25: #{tpu_custom_call.1} parent=0 // pred_fallthru
    _

</llo_original>
